<compile_context>
chip_gen: v7x
topology: tpu7x:2x2x1
jax: 0.10.0
libtpu: 0.0.40
codegen_flags: <defaults>
</compile_context>

<pallas_src>
import functools

import jax
import jax.numpy as jnp
import numpy as np
from jax.experimental import pallas as pl
from jax.experimental.pallas import tpu as pltpu


LANE = 128      # TPU lane width; all FC widths are padded to this
TB_CONV = 4     # images per conv grid step (keeps VMEM footprint small on every gen)
TM_FC = 256     # max rows per FC grid step


def _round_up(x, m):
    return ((x + m - 1) // m) * m


# -------------------- fused conv (im2col matmul) + ReLU + 2x2 max-pool --------------------

def _conv_relu_pool_kernel(cols_ref, w_ref, b_ref, o_ref, *, tb, oh, ow, cout):
    # Matmul over the im2col rows of `tb` whole images, with bias + ReLU epilogue.
    acc = jnp.dot(cols_ref[...], w_ref[...], preferred_element_type=jnp.float32)
    acc = jnp.maximum(acc + b_ref[...], 0.0)
    # Fused 2x2 / stride-2 max pool.  Rows are (img, oh, ow)-ordered; lane dim stays = cout.
    y = acc.reshape(tb, oh // 2, 2, ow, cout)        # split oh (major dims only)
    y = jnp.max(y, axis=2)                           # pool along oh -> (tb, oh//2, ow, cout)
    y = y.reshape(tb, oh // 2, ow // 2, 2, cout)     # split ow
    y = jnp.max(y, axis=3)                           # pool along ow -> (tb, oh//2, ow//2, cout)
    o_ref[...] = y.astype(o_ref.dtype)


def conv_relu_pool(cols, w, b, *, b_pad, tb, oh, ow, cout):
    """cols: (b_pad*oh*ow, K) im2col matrix -> pooled NHWC (b_pad, oh//2, ow//2, cout)."""
    rows = oh * ow
    K = cols.shape[1]
    grid = (b_pad // tb,)
    kernel = functools.partial(_conv_relu_pool_kernel, tb=tb, oh=oh, ow=ow, cout=cout)
    return pl.pallas_call(
        kernel,
        out_shape=jax.ShapeDtypeStruct((b_pad, oh // 2, ow // 2, cout), cols.dtype),
        grid=grid,
        in_specs=[
            pl.BlockSpec((tb * rows, K), lambda i: (i, 0)),
            pl.BlockSpec((K, cout), lambda i: (0, 0)),
            pl.BlockSpec((1, cout), lambda i: (0, 0)),
        ],
        out_specs=pl.BlockSpec((tb, oh // 2, ow // 2, cout), lambda i: (i, 0, 0, 0)),
        compiler_params=pltpu.CompilerParams(dimension_semantics=("parallel",)),
    )(cols, w, b)


# ------------------------------ fused fc1/fc2/fc3 kernel ------------------------------

def _fc_fused_kernel(x_ref, w1_ref, b1_ref, w2_ref, b2_ref, w3_ref, b3_ref, o_ref):
    h = jnp.dot(x_ref[...], w1_ref[...], preferred_element_type=jnp.float32)
    h = jnp.maximum(h + b1_ref[...], 0.0)
    h = jnp.dot(h, w2_ref[...], preferred_element_type=jnp.float32)
    h = jnp.maximum(h + b2_ref[...], 0.0)
    o = jnp.dot(h, w3_ref[...], preferred_element_type=jnp.float32) + b3_ref[...]
    o_ref[...] = o.astype(o_ref.dtype)


def fc_fused(x, w1, b1, w2, b2, w3, b3, *, tm):
    M, K = x.shape                       # K = 256 (multiple of 128)
    n_out = w3.shape[1]                  # padded to a multiple of 128
    grid = (M // tm,)
    return pl.pallas_call(
        _fc_fused_kernel,
        out_shape=jax.ShapeDtypeStruct((M, n_out), x.dtype),
        grid=grid,
        in_specs=[
            pl.BlockSpec((tm, K), lambda i: (i, 0)),
            pl.BlockSpec(w1.shape, lambda i: (0, 0)),
            pl.BlockSpec(b1.shape, lambda i: (0, 0)),
            pl.BlockSpec(w2.shape, lambda i: (0, 0)),
            pl.BlockSpec(b2.shape, lambda i: (0, 0)),
            pl.BlockSpec(w3.shape, lambda i: (0, 0)),
            pl.BlockSpec(b3.shape, lambda i: (0, 0)),
        ],
        out_specs=pl.BlockSpec((tm, n_out), lambda i: (i, 0)),
        compiler_params=pltpu.CompilerParams(dimension_semantics=("parallel",)),
    )(x, w1, b1, w2, b2, w3, b3)


# ------------------------------------ glue (JAX) ------------------------------------

def im2col(x, kh, kw):
    """x: (B, H, W, C) -> (B*OH*OW, kh*kw*C), column order = (ki, kj, c)."""
    B, H, W, C = x.shape
    OH, OW = H - kh + 1, W - kw + 1
    cols = [x[:, i:i + OH, j:j + OW, :] for i in range(kh) for j in range(kw)]
    p = jnp.stack(cols, axis=3)          # (B, OH, OW, kh*kw, C)
    return p.reshape(B * OH * OW, kh * kw * C)


def prepare_params(params):
    """One-time weight prep: im2col layouts, NCHW-flatten folded into fc1, 128-lane padding."""
    nc = params["fc3_w"].shape[0]
    n_out_pad = _round_up(nc, LANE)

    w1 = jnp.transpose(params["conv1_w"], (2, 3, 1, 0)).reshape(5 * 5 * 1, 6)
    b1 = params["conv1_b"].reshape(1, 6)
    w2 = jnp.transpose(params["conv2_w"], (2, 3, 1, 0)).reshape(5 * 5 * 6, 16)
    b2 = params["conv2_b"].reshape(1, 16)

    # fc1 consumes the NHWC-flattened conv2 output; fold torch's NCHW flatten into the weight.
    f1 = params["fc1_w"].reshape(120, 16, 4, 4).transpose(0, 2, 3, 1).reshape(120, 256).T
    f1 = jnp.pad(f1, ((0, 0), (0, LANE - 120)))                          # (256, 128)
    fb1 = jnp.pad(params["fc1_b"], (0, LANE - 120)).reshape(1, LANE)
    f2 = jnp.pad(params["fc2_w"].T, ((0, LANE - 120), (0, LANE - 84)))   # (128, 128)
    fb2 = jnp.pad(params["fc2_b"], (0, LANE - 84)).reshape(1, LANE)
    f3 = jnp.pad(params["fc3_w"].T, ((0, LANE - 84), (0, n_out_pad - nc)))
    fb3 = jnp.pad(params["fc3_b"], (0, n_out_pad - nc)).reshape(1, n_out_pad)

    return {"w1": w1, "b1": b1, "w2": w2, "b2": b2,
            "f1": f1, "fb1": fb1, "f2": f2, "fb2": fb2, "f3": f3, "fb3": fb3}


def cnn_forward(prepped, x_nchw, *, num_classes):
    """Pallas implementation of CNNNetGray.forward.  x_nchw: (B, 1, 28, 28)."""
    B = x_nchw.shape[0]
    tb = min(TB_CONV, B)
    b_pad = _round_up(B, tb)

    x = jnp.transpose(x_nchw, (0, 2, 3, 1))                 # NCHW -> NHWC (B, 28, 28, 1)
    if b_pad != B:
        x = jnp.pad(x, ((0, b_pad - B), (0, 0), (0, 0), (0, 0)))

    # conv1 (1->6, 5x5) + ReLU + 2x2 pool, fused in one kernel
    cols = im2col(x, 5, 5)                                  # (b_pad*576, 25)
    y = conv_relu_pool(cols, prepped["w1"], prepped["b1"],
                       b_pad=b_pad, tb=tb, oh=24, ow=24, cout=6)    # (b_pad, 12, 12, 6)

    # conv2 (6->16, 5x5) + ReLU + 2x2 pool, fused in one kernel
    # TODO(synk): for very large batches, move the im2col patch extraction in-kernel to avoid
    # materializing the expanded column matrix in HBM.
    cols = im2col(y, 5, 5)                                  # (b_pad*64, 150)
    y = conv_relu_pool(cols, prepped["w2"], prepped["b2"],
                       b_pad=b_pad, tb=tb, oh=8, ow=8, cout=16)     # (b_pad, 4, 4, 16)

    # Contiguous NHWC flatten (free); torch's NCHW flatten order is folded into the fc1 weight.
    feats = y.reshape(b_pad, 4 * 4 * 16)                    # (b_pad, 256)

    # fc1+ReLU, fc2+ReLU, fc3 fused in one kernel over 128-lane-padded weights.
    tm = min(TM_FC, _round_up(b_pad, 8))
    m_pad = _round_up(b_pad, tm)
    if m_pad != b_pad:
        feats = jnp.pad(feats, ((0, m_pad - b_pad), (0, 0)))
    logits = fc_fused(feats, prepped["f1"], prepped["fb1"], prepped["f2"],
                      prepped["fb2"], prepped["f3"], prepped["fb3"], tm=tm)
    return logits[:B, :num_classes]


def init_params(key, num_classes):
    ks = jax.random.split(key, 10)

    def w(k, shape, scale=0.1):
        return scale * jax.random.normal(k, shape, jnp.float32)

    return {
        "conv1_w": w(ks[0], (6, 1, 5, 5)),     # torch OIHW
        "conv1_b": w(ks[1], (6,)),
        "conv2_w": w(ks[2], (16, 6, 5, 5)),
        "conv2_b": w(ks[3], (16,)),
        "fc1_w": w(ks[4], (120, 16 * 4 * 4)),  # torch (out, in)
        "fc1_b": w(ks[5], (120,)),
        "fc2_w": w(ks[6], (84, 120)),
        "fc2_b": w(ks[7], (84,)),
        "fc3_w": w(ks[8], (num_classes, 84)),
        "fc3_b": w(ks[9], (num_classes,)),
    }


def reference_forward(params, x_nchw):
    """Pure-JAX reference reproducing the PyTorch module (for validation)."""
    def conv2d(x, w, b):
        y = jax.lax.conv_general_dilated(
            x, w, window_strides=(1, 1), padding="VALID",
            dimension_numbers=("NCHW", "OIHW", "NCHW"))
        return y + b[None, :, None, None]

    def pool(x):
        B, C, H, W = x.shape
        return x.reshape(B, C, H // 2, 2, W // 2, 2).max(axis=(3, 5))

    y = pool(jax.nn.relu(conv2d(x_nchw, params["conv1_w"], params["conv1_b"])))
    y = pool(jax.nn.relu(conv2d(y, params["conv2_w"], params["conv2_b"])))
    y = y.reshape(y.shape[0], -1)
    y = jax.nn.relu(y @ params["fc1_w"].T + params["fc1_b"])
    y = jax.nn.relu(y @ params["fc2_w"].T + params["fc2_b"])
    return y @ params["fc3_w"].T + params["fc3_b"]


if __name__ == "__main__":
    key = jax.random.PRNGKey(0)
    pkey, xkey = jax.random.split(key)
    num_classes = 10

    params = init_params(pkey, num_classes)
    # Input implied by the module: grayscale 28x28 (fc1 in-features = 16*4*4).
    x = jax.random.normal(xkey, (2, 1, 28, 28), jnp.float32)

    prepped = prepare_params(params)
    fwd = jax.jit(cnn_forward, static_argnames=("num_classes",))

    out = jax.block_until_ready(fwd(prepped, x, num_classes=num_classes))
    ref = jax.block_until_ready(reference_forward(params, x))

    assert out.shape == (2, num_classes)
    np.testing.assert_allclose(np.asarray(out), np.asarray(ref), rtol=2e-3, atol=2e-3)
    print("KERNEL_OK")
</pallas_src>

<mosaic_0001>
module attributes {stable_mosaic.version = 11 : i64} {
  func.func @_conv_relu_pool_kernel(%arg0: i32, %arg1: memref<1152x25xf32, #tpu.memory_space<vmem>>, %arg2: memref<25x6xf32, #tpu.memory_space<vmem>>, %arg3: memref<1x6xf32, #tpu.memory_space<vmem>>, %arg4: memref<2x12x12x6xf32, #tpu.memory_space<vmem>>) attributes {dimension_semantics = [#tpu.dimension_semantics<parallel>], iteration_bounds = array<i64: 1>, scalar_prefetch = 0 : i64, scratch_operands = 0 : i64, tpu.core_type = #tpu.core_type<tc>, window_params = [{transform_indices = @transform_0, window_bounds = array<i64: 1152, 25>}, {pipeline_mode = #tpu.pipeline_mode<synchronous>, transform_indices = @transform_1, window_bounds = array<i64: 25, 6>}, {pipeline_mode = #tpu.pipeline_mode<synchronous>, transform_indices = @transform_2, window_bounds = array<i64: 1, 6>}, {transform_indices = @transform_3, window_bounds = array<i64: 2, 12, 12, 6>}]} {
    %c0 = arith.constant 0 : index
    %c0_0 = arith.constant 0 : index
    %0 = vector.load %arg1[%c0, %c0_0] : memref<1152x25xf32, #tpu.memory_space<vmem>>, vector<1152x25xf32>
    %c0_1 = arith.constant 0 : index
    %c0_2 = arith.constant 0 : index
    %1 = vector.load %arg2[%c0_1, %c0_2] : memref<25x6xf32, #tpu.memory_space<vmem>>, vector<25x6xf32>
    %cst = arith.constant dense<0.000000e+00> : vector<1152x6xf32>
    %2 = tpu.matmul %0, %1, %cst {dimension_numbers = #tpu.dot_dimension_numbers<[1], [0], [0], [1], [0, 0, 1, 1], [], []>} : vector<1152x25xf32>, vector<25x6xf32>, vector<1152x6xf32> -> vector<1152x6xf32>
    %c0_3 = arith.constant 0 : index
    %c0_4 = arith.constant 0 : index
    %3 = vector.load %arg3[%c0_3, %c0_4] : memref<1x6xf32, #tpu.memory_space<vmem>>, vector<1x6xf32>
    %4 = vector.broadcast %3 : vector<1x6xf32> to vector<1152x6xf32>
    %5 = arith.addf %2, %4 : vector<1152x6xf32>
    %cst_5 = arith.constant 0.000000e+00 : f32
    %6 = vector.broadcast %cst_5 : f32 to vector<1152x6xf32>
    %7 = arith.maximumf %5, %6 : vector<1152x6xf32>
    %8 = vector.shape_cast %7 : vector<1152x6xf32> to vector<2x12x2x24x6xf32>
    %cst_6 = arith.constant dense<0xFF800000> : vector<2x12x24x6xf32>
    %9 = vector.multi_reduction <maximumf>, %8, %cst_6 [2] : vector<2x12x2x24x6xf32> to vector<2x12x24x6xf32>
    %10 = vector.shape_cast %9 : vector<2x12x24x6xf32> to vector<2x12x12x2x6xf32>
    %cst_7 = arith.constant dense<0xFF800000> : vector<2x12x12x6xf32>
    %11 = vector.multi_reduction <maximumf>, %10, %cst_7 [3] : vector<2x12x12x2x6xf32> to vector<2x12x12x6xf32>
    %c0_8 = arith.constant 0 : index
    %c0_9 = arith.constant 0 : index
    %c0_10 = arith.constant 0 : index
    %c0_11 = arith.constant 0 : index
    %12 = vector.load %arg4[%c0_8, %c0_9, %c0_10, %c0_11] : memref<2x12x12x6xf32, #tpu.memory_space<vmem>>, vector<2x12x12x6xf32>
    tpu.vector_store %arg4[%c0_8, %c0_9, %c0_10, %c0_11], %11 {strides = array<i32>} : memref<2x12x12x6xf32, #tpu.memory_space<vmem>>, vector<2x12x12x6xf32>,
    return
  }
  func.func @transform_0(%arg0: i32) -> (i32, i32) {
    %c0_i32 = arith.constant 0 : i32
    %c0_i32_0 = arith.constant 0 : i32
    return %arg0, %c0_i32 : i32, i32
  }
  func.func @transform_1(%arg0: i32) -> (i32, i32) {
    %c0_i32 = arith.constant 0 : i32
    %c0_i32_0 = arith.constant 0 : i32
    %c0_i32_1 = arith.constant 0 : i32
    return %c0_i32, %c0_i32_0 : i32, i32
  }
  func.func @transform_2(%arg0: i32) -> (i32, i32) {
    %c0_i32 = arith.constant 0 : i32
    %c0_i32_0 = arith.constant 0 : i32
    %c0_i32_1 = arith.constant 0 : i32
    return %c0_i32, %c0_i32_0 : i32, i32
  }
  func.func @transform_3(%arg0: i32) -> (i32, i32, i32, i32) {
    %c0_i32 = arith.constant 0 : i32
    %c0_i32_0 = arith.constant 0 : i32
    %c0_i32_1 = arith.constant 0 : i32
    %c0_i32_2 = arith.constant 0 : i32
    return %arg0, %c0_i32, %c0_i32_0, %c0_i32_1 : i32, i32, i32, i32
  }
}

module attributes {stable_mosaic.version = 11 : i64} {
  func.func @_conv_relu_pool_kernel(%arg0: i32, %arg1: memref<128x150xf32, #tpu.memory_space<vmem>>, %arg2: memref<150x16xf32, #tpu.memory_space<vmem>>, %arg3: memref<1x16xf32, #tpu.memory_space<vmem>>, %arg4: memref<2x4x4x16xf32, #tpu.memory_space<vmem>>) attributes {dimension_semantics = [#tpu.dimension_semantics<parallel>], iteration_bounds = array<i64: 1>, scalar_prefetch = 0 : i64, scratch_operands = 0 : i64, tpu.core_type = #tpu.core_type<tc>, window_params = [{transform_indices = @transform_0, window_bounds = array<i64: 128, 150>}, {pipeline_mode = #tpu.pipeline_mode<synchronous>, transform_indices = @transform_1, window_bounds = array<i64: 150, 16>}, {pipeline_mode = #tpu.pipeline_mode<synchronous>, transform_indices = @transform_2, window_bounds = array<i64: 1, 16>}, {transform_indices = @transform_3, window_bounds = array<i64: 2, 4, 4, 16>}]} {
    %c0 = arith.constant 0 : index
    %c0_0 = arith.constant 0 : index
    %0 = vector.load %arg1[%c0, %c0_0] : memref<128x150xf32, #tpu.memory_space<vmem>>, vector<128x150xf32>
    %c0_1 = arith.constant 0 : index
    %c0_2 = arith.constant 0 : index
    %1 = vector.load %arg2[%c0_1, %c0_2] : memref<150x16xf32, #tpu.memory_space<vmem>>, vector<150x16xf32>
    %cst = arith.constant dense<0.000000e+00> : vector<128x16xf32>
    %2 = tpu.matmul %0, %1, %cst {dimension_numbers = #tpu.dot_dimension_numbers<[1], [0], [0], [1], [0, 0, 1, 1], [], []>} : vector<128x150xf32>, vector<150x16xf32>, vector<128x16xf32> -> vector<128x16xf32>
    %c0_3 = arith.constant 0 : index
    %c0_4 = arith.constant 0 : index
    %3 = vector.load %arg3[%c0_3, %c0_4] : memref<1x16xf32, #tpu.memory_space<vmem>>, vector<1x16xf32>
    %4 = vector.broadcast %3 : vector<1x16xf32> to vector<128x16xf32>
    %5 = arith.addf %2, %4 : vector<128x16xf32>
    %cst_5 = arith.constant 0.000000e+00 : f32
    %6 = vector.broadcast %cst_5 : f32 to vector<128x16xf32>
    %7 = arith.maximumf %5, %6 : vector<128x16xf32>
    %8 = vector.shape_cast %7 : vector<128x16xf32> to vector<2x4x2x8x16xf32>
    %cst_6 = arith.constant dense<0xFF800000> : vector<2x4x8x16xf32>
    %9 = vector.multi_reduction <maximumf>, %8, %cst_6 [2] : vector<2x4x2x8x16xf32> to vector<2x4x8x16xf32>
    %10 = vector.shape_cast %9 : vector<2x4x8x16xf32> to vector<2x4x4x2x16xf32>
    %cst_7 = arith.constant dense<0xFF800000> : vector<2x4x4x16xf32>
    %11 = vector.multi_reduction <maximumf>, %10, %cst_7 [3] : vector<2x4x4x2x16xf32> to vector<2x4x4x16xf32>
    %c0_8 = arith.constant 0 : index
    %c0_9 = arith.constant 0 : index
    %c0_10 = arith.constant 0 : index
    %c0_11 = arith.constant 0 : index
    %12 = vector.load %arg4[%c0_8, %c0_9, %c0_10, %c0_11] : memref<2x4x4x16xf32, #tpu.memory_space<vmem>>, vector<2x4x4x16xf32>
    tpu.vector_store %arg4[%c0_8, %c0_9, %c0_10, %c0_11], %11 {strides = array<i32>} : memref<2x4x4x16xf32, #tpu.memory_space<vmem>>, vector<2x4x4x16xf32>,
    return
  }
  func.func @transform_0(%arg0: i32) -> (i32, i32) {
    %c0_i32 = arith.constant 0 : i32
    %c0_i32_0 = arith.constant 0 : i32
    return %arg0, %c0_i32 : i32, i32
  }
  func.func @transform_1(%arg0: i32) -> (i32, i32) {
    %c0_i32 = arith.constant 0 : i32
    %c0_i32_0 = arith.constant 0 : i32
    %c0_i32_1 = arith.constant 0 : i32
    return %c0_i32, %c0_i32_0 : i32, i32
  }
  func.func @transform_2(%arg0: i32) -> (i32, i32) {
    %c0_i32 = arith.constant 0 : i32
    %c0_i32_0 = arith.constant 0 : i32
    %c0_i32_1 = arith.constant 0 : i32
    return %c0_i32, %c0_i32_0 : i32, i32
  }
  func.func @transform_3(%arg0: i32) -> (i32, i32, i32, i32) {
    %c0_i32 = arith.constant 0 : i32
    %c0_i32_0 = arith.constant 0 : i32
    %c0_i32_1 = arith.constant 0 : i32
    %c0_i32_2 = arith.constant 0 : i32
    return %arg0, %c0_i32, %c0_i32_0, %c0_i32_1 : i32, i32, i32, i32
  }
}

module attributes {stable_mosaic.version = 11 : i64} {
  func.func @_fc_fused_kernel(%arg0: i32, %arg1: memref<8x256xf32, #tpu.memory_space<vmem>>, %arg2: memref<256x128xf32, #tpu.memory_space<vmem>>, %arg3: memref<1x128xf32, #tpu.memory_space<vmem>>, %arg4: memref<128x128xf32, #tpu.memory_space<vmem>>, %arg5: memref<1x128xf32, #tpu.memory_space<vmem>>, %arg6: memref<128x128xf32, #tpu.memory_space<vmem>>, %arg7: memref<1x128xf32, #tpu.memory_space<vmem>>, %arg8: memref<8x128xf32, #tpu.memory_space<vmem>>) attributes {dimension_semantics = [#tpu.dimension_semantics<parallel>], iteration_bounds = array<i64: 1>, scalar_prefetch = 0 : i64, scratch_operands = 0 : i64, tpu.core_type = #tpu.core_type<tc>, window_params = [{transform_indices = @transform_0, window_bounds = array<i64: 8, 256>}, {pipeline_mode = #tpu.pipeline_mode<synchronous>, transform_indices = @transform_1, window_bounds = array<i64: 256, 128>}, {pipeline_mode = #tpu.pipeline_mode<synchronous>, transform_indices = @transform_2, window_bounds = array<i64: 1, 128>}, {pipeline_mode = #tpu.pipeline_mode<synchronous>, transform_indices = @transform_3, window_bounds = array<i64: 128, 128>}, {pipeline_mode = #tpu.pipeline_mode<synchronous>, transform_indices = @transform_4, window_bounds = array<i64: 1, 128>}, {pipeline_mode = #tpu.pipeline_mode<synchronous>, transform_indices = @transform_5, window_bounds = array<i64: 128, 128>}, {pipeline_mode = #tpu.pipeline_mode<synchronous>, transform_indices = @transform_6, window_bounds = array<i64: 1, 128>}, {transform_indices = @transform_7, window_bounds = array<i64: 8, 128>}]} {
    %c0 = arith.constant 0 : index
    %c0_0 = arith.constant 0 : index
    %0 = vector.load %arg1[%c0, %c0_0] : memref<8x256xf32, #tpu.memory_space<vmem>>, vector<8x256xf32>
    %c0_1 = arith.constant 0 : index
    %c0_2 = arith.constant 0 : index
    %1 = vector.load %arg2[%c0_1, %c0_2] : memref<256x128xf32, #tpu.memory_space<vmem>>, vector<256x128xf32>
    %cst = arith.constant dense<0.000000e+00> : vector<8x128xf32>
    %2 = tpu.matmul %0, %1, %cst {dimension_numbers = #tpu.dot_dimension_numbers<[1], [0], [0], [1], [0, 0, 1, 1], [], []>} : vector<8x256xf32>, vector<256x128xf32>, vector<8x128xf32> -> vector<8x128xf32>
    %c0_3 = arith.constant 0 : index
    %c0_4 = arith.constant 0 : index
    %3 = vector.load %arg3[%c0_3, %c0_4] : memref<1x128xf32, #tpu.memory_space<vmem>>, vector<1x128xf32>
    %4 = vector.broadcast %3 : vector<1x128xf32> to vector<8x128xf32>
    %5 = arith.addf %2, %4 : vector<8x128xf32>
    %cst_5 = arith.constant 0.000000e+00 : f32
    %6 = vector.broadcast %cst_5 : f32 to vector<8x128xf32>
    %7 = arith.maximumf %5, %6 : vector<8x128xf32>
    %c0_6 = arith.constant 0 : index
    %c0_7 = arith.constant 0 : index
    %8 = vector.load %arg4[%c0_6, %c0_7] : memref<128x128xf32, #tpu.memory_space<vmem>>, vector<128x128xf32>
    %cst_8 = arith.constant dense<0.000000e+00> : vector<8x128xf32>
    %9 = tpu.matmul %7, %8, %cst_8 {dimension_numbers = #tpu.dot_dimension_numbers<[1], [0], [0], [1], [0, 0, 1, 1], [], []>} : vector<8x128xf32>, vector<128x128xf32>, vector<8x128xf32> -> vector<8x128xf32>
    %c0_9 = arith.constant 0 : index
    %c0_10 = arith.constant 0 : index
    %10 = vector.load %arg5[%c0_9, %c0_10] : memref<1x128xf32, #tpu.memory_space<vmem>>, vector<1x128xf32>
    %11 = vector.broadcast %10 : vector<1x128xf32> to vector<8x128xf32>
    %12 = arith.addf %9, %11 : vector<8x128xf32>
    %cst_11 = arith.constant 0.000000e+00 : f32
    %13 = vector.broadcast %cst_11 : f32 to vector<8x128xf32>
    %14 = arith.maximumf %12, %13 : vector<8x128xf32>
    %c0_12 = arith.constant 0 : index
    %c0_13 = arith.constant 0 : index
    %15 = vector.load %arg6[%c0_12, %c0_13] : memref<128x128xf32, #tpu.memory_space<vmem>>, vector<128x128xf32>
    %cst_14 = arith.constant dense<0.000000e+00> : vector<8x128xf32>
    %16 = tpu.matmul %14, %15, %cst_14 {dimension_numbers = #tpu.dot_dimension_numbers<[1], [0], [0], [1], [0, 0, 1, 1], [], []>} : vector<8x128xf32>, vector<128x128xf32>, vector<8x128xf32> -> vector<8x128xf32>
    %c0_15 = arith.constant 0 : index
    %c0_16 = arith.constant 0 : index
    %17 = vector.load %arg7[%c0_15, %c0_16] : memref<1x128xf32, #tpu.memory_space<vmem>>, vector<1x128xf32>
    %18 = vector.broadcast %17 : vector<1x128xf32> to vector<8x128xf32>
    %19 = arith.addf %16, %18 : vector<8x128xf32>
    %c0_17 = arith.constant 0 : index
    %c0_18 = arith.constant 0 : index
    %20 = vector.load %arg8[%c0_17, %c0_18] : memref<8x128xf32, #tpu.memory_space<vmem>>, vector<8x128xf32>
    tpu.vector_store %arg8[%c0_17, %c0_18], %19 {strides = array<i32>} : memref<8x128xf32, #tpu.memory_space<vmem>>, vector<8x128xf32>,
    return
  }
  func.func @transform_0(%arg0: i32) -> (i32, i32) {
    %c0_i32 = arith.constant 0 : i32
    %c0_i32_0 = arith.constant 0 : i32
    return %arg0, %c0_i32 : i32, i32
  }
  func.func @transform_1(%arg0: i32) -> (i32, i32) {
    %c0_i32 = arith.constant 0 : i32
    %c0_i32_0 = arith.constant 0 : i32
    %c0_i32_1 = arith.constant 0 : i32
    return %c0_i32, %c0_i32_0 : i32, i32
  }
  func.func @transform_2(%arg0: i32) -> (i32, i32) {
    %c0_i32 = arith.constant 0 : i32
    %c0_i32_0 = arith.constant 0 : i32
    %c0_i32_1 = arith.constant 0 : i32
    return %c0_i32, %c0_i32_0 : i32, i32
  }
  func.func @transform_3(%arg0: i32) -> (i32, i32) {
    %c0_i32 = arith.constant 0 : i32
    %c0_i32_0 = arith.constant 0 : i32
    %c0_i32_1 = arith.constant 0 : i32
    return %c0_i32, %c0_i32_0 : i32, i32
  }
  func.func @transform_4(%arg0: i32) -> (i32, i32) {
    %c0_i32 = arith.constant 0 : i32
    %c0_i32_0 = arith.constant 0 : i32
    %c0_i32_1 = arith.constant 0 : i32
    return %c0_i32, %c0_i32_0 : i32, i32
  }
  func.func @transform_5(%arg0: i32) -> (i32, i32) {
    %c0_i32 = arith.constant 0 : i32
    %c0_i32_0 = arith.constant 0 : i32
    %c0_i32_1 = arith.constant 0 : i32
    return %c0_i32, %c0_i32_0 : i32, i32
  }
  func.func @transform_6(%arg0: i32) -> (i32, i32) {
    %c0_i32 = arith.constant 0 : i32
    %c0_i32_0 = arith.constant 0 : i32
    %c0_i32_1 = arith.constant 0 : i32
    return %c0_i32, %c0_i32_0 : i32, i32
  }
  func.func @transform_7(%arg0: i32) -> (i32, i32) {
    %c0_i32 = arith.constant 0 : i32
    %c0_i32_0 = arith.constant 0 : i32
    return %arg0, %c0_i32 : i32, i32
  }
}

</mosaic_0001>

<llo_original>
// kernel: cnn_forward.3
$region0: #{cnn_forward.3}
  #allocation0 [shape = 'u32[]', space=smem, size = 0x4, offset = 0x4, fixed_abs, tag = 'smem constant byte address 0x4 - core index']
  #allocation1 [shape = 'u32[144,128]{1,0:T(1,128)}', space=vmem, size = 0x12000, scoped, tag = 'internal scratch']
  %s0 = inlined_call_operand.vmem [shape: f32[1152,25], index: 0, kind: input, shape index: {}]
  %s1 = inlined_call_operand.vmem [shape: f32[25,6], index: 1, kind: input, shape index: {}]
  %s2 = inlined_call_operand.vmem [shape: f32[1,6], index: 2, kind: input, shape index: {}]
  %s3 = inlined_call_operand.vmem [shape: f32[2,12,12,6], index: 3, kind: output, shape index: {}]
  %s4 = sld [smem:[#allocation0]]
  $region22: #{cnn_forward.3} parent=0
    _
  %s6 = ssub.s32 1, %s4
  %s7 = scalar_select 0, %s6, %s4
  // Predicated region
  $region2: #{cnn_forward.3} parent=0 // pred_check
    _
  $region3: #{cnn_forward.3} parent=0 // pred_check_branch
    %9 = sbr.rel (0) target = $region5
  $region4: #{cnn_forward.3} parent=0 // pred_region
    _
  $region5: #{cnn_forward.3} parent=0 // pred_fallthru
    _
  // Predicated region
  $region6: #{cnn_forward.3} parent=0 // pred_check
    _
  $region7: #{cnn_forward.3} parent=0 // pred_check_branch
    %11 = sbr.rel (0) target = $region9
  $region8: #{cnn_forward.3} parent=0 // pred_region
    _
  $region9: #{cnn_forward.3} parent=0 // pred_fallthru
    _
  // Predicated region
  $region10: #{cnn_forward.3} parent=0 // pred_check
    _
  $region11: #{cnn_forward.3} parent=0 // pred_check_branch
    %13 = sbr.rel (0) target = $region13
  $region12: #{cnn_forward.3} parent=0 // pred_region
    _
  $region13: #{cnn_forward.3} parent=0 // pred_fallthru
    _
  %v14 = vld [vmem:[%s0] sm:$0xff]
  %v15 = vld [vmem:[%s0 + $0x8] sm:$0xff]
  %v16 = vld [vmem:[%s0 + $0x10] sm:$0xff]
  %v17 = vld [vmem:[%s0 + $0x18] sm:$0xff]
  %v18 = vld [vmem:[%s0 + $0x20] sm:$0xff]
  %v19 = vld [vmem:[%s0 + $0x28] sm:$0xff]
  %v20 = vld [vmem:[%s0 + $0x30] sm:$0xff]
  %v21 = vld [vmem:[%s0 + $0x38] sm:$0xff]
  %v22 = vld [vmem:[%s0 + $0x40] sm:$0xff]
  %v23 = vld [vmem:[%s0 + $0x48] sm:$0xff]
  %v24 = vld [vmem:[%s0 + $0x50] sm:$0xff]
  %v25 = vld [vmem:[%s0 + $0x58] sm:$0xff]
  %v26 = vld [vmem:[%s0 + $0x60] sm:$0xff]
  %v27 = vld [vmem:[%s0 + $0x68] sm:$0xff]
  %v28 = vld [vmem:[%s0 + $0x70] sm:$0xff]
  %v29 = vld [vmem:[%s0 + $0x78] sm:$0xff]
  %v30 = vld [vmem:[%s0 + $0x80] sm:$0xff]
  %v31 = vld [vmem:[%s0 + $0x88] sm:$0xff]
  %v32 = vld [vmem:[%s0 + $0x90] sm:$0xff]
  %v33 = vld [vmem:[%s0 + $0x98] sm:$0xff]
  %v34 = vld [vmem:[%s0 + $0xa0] sm:$0xff]
  %v35 = vld [vmem:[%s0 + $0xa8] sm:$0xff]
  %v36 = vld [vmem:[%s0 + $0xb0] sm:$0xff]
  %v37 = vld [vmem:[%s0 + $0xb8] sm:$0xff]
  %v38 = vld [vmem:[%s0 + $0xc0] sm:$0xff]
  %v39 = vld [vmem:[%s0 + $0xc8] sm:$0xff]
  %v40 = vld [vmem:[%s0 + $0xd0] sm:$0xff]
  %v41 = vld [vmem:[%s0 + $0xd8] sm:$0xff]
  %v42 = vld [vmem:[%s0 + $0xe0] sm:$0xff]
  %v43 = vld [vmem:[%s0 + $0xe8] sm:$0xff]
  %v44 = vld [vmem:[%s0 + $0xf0] sm:$0xff]
  %v45 = vld [vmem:[%s0 + $0xf8] sm:$0xff]
  %v46 = vld [vmem:[%s0 + $0x100] sm:$0xff]
  %v47 = vld [vmem:[%s0 + $0x108] sm:$0xff]
  %v48 = vld [vmem:[%s0 + $0x110] sm:$0xff]
  %v49 = vld [vmem:[%s0 + $0x118] sm:$0xff]
  %v50 = vld [vmem:[%s0 + $0x120] sm:$0xff]
  %v51 = vld [vmem:[%s0 + $0x128] sm:$0xff]
  %v52 = vld [vmem:[%s0 + $0x130] sm:$0xff]
  %v53 = vld [vmem:[%s0 + $0x138] sm:$0xff]
  %v54 = vld [vmem:[%s0 + $0x140] sm:$0xff]
  %v55 = vld [vmem:[%s0 + $0x148] sm:$0xff]
  %v56 = vld [vmem:[%s0 + $0x150] sm:$0xff]
  %v57 = vld [vmem:[%s0 + $0x158] sm:$0xff]
  %v58 = vld [vmem:[%s0 + $0x160] sm:$0xff]
  %v59 = vld [vmem:[%s0 + $0x168] sm:$0xff]
  %v60 = vld [vmem:[%s0 + $0x170] sm:$0xff]
  %v61 = vld [vmem:[%s0 + $0x178] sm:$0xff]
  %v62 = vld [vmem:[%s0 + $0x180] sm:$0xff]
  %v63 = vld [vmem:[%s0 + $0x188] sm:$0xff]
  %v64 = vld [vmem:[%s0 + $0x190] sm:$0xff]
  %v65 = vld [vmem:[%s0 + $0x198] sm:$0xff]
  %v66 = vld [vmem:[%s0 + $0x1a0] sm:$0xff]
  %v67 = vld [vmem:[%s0 + $0x1a8] sm:$0xff]
  %v68 = vld [vmem:[%s0 + $0x1b0] sm:$0xff]
  %v69 = vld [vmem:[%s0 + $0x1b8] sm:$0xff]
  %v70 = vld [vmem:[%s0 + $0x1c0] sm:$0xff]
  %v71 = vld [vmem:[%s0 + $0x1c8] sm:$0xff]
  %v72 = vld [vmem:[%s0 + $0x1d0] sm:$0xff]
  %v73 = vld [vmem:[%s0 + $0x1d8] sm:$0xff]
  %v74 = vld [vmem:[%s0 + $0x1e0] sm:$0xff]
  %v75 = vld [vmem:[%s0 + $0x1e8] sm:$0xff]
  %v76 = vld [vmem:[%s0 + $0x1f0] sm:$0xff]
  %v77 = vld [vmem:[%s0 + $0x1f8] sm:$0xff]
  %v78 = vld [vmem:[%s0 + $0x200] sm:$0xff]
  %v79 = vld [vmem:[%s0 + $0x208] sm:$0xff]
  %v80 = vld [vmem:[%s0 + $0x210] sm:$0xff]
  %v81 = vld [vmem:[%s0 + $0x218] sm:$0xff]
  %v82 = vld [vmem:[%s0 + $0x220] sm:$0xff]
  %v83 = vld [vmem:[%s0 + $0x228] sm:$0xff]
  %v84 = vld [vmem:[%s0 + $0x230] sm:$0xff]
  %v85 = vld [vmem:[%s0 + $0x238] sm:$0xff]
  %v86 = vld [vmem:[%s0 + $0x240] sm:$0xff]
  %v87 = vld [vmem:[%s0 + $0x248] sm:$0xff]
  %v88 = vld [vmem:[%s0 + $0x250] sm:$0xff]
  %v89 = vld [vmem:[%s0 + $0x258] sm:$0xff]
  %v90 = vld [vmem:[%s0 + $0x260] sm:$0xff]
  %v91 = vld [vmem:[%s0 + $0x268] sm:$0xff]
  %v92 = vld [vmem:[%s0 + $0x270] sm:$0xff]
  %v93 = vld [vmem:[%s0 + $0x278] sm:$0xff]
  %v94 = vld [vmem:[%s0 + $0x280] sm:$0xff]
  %v95 = vld [vmem:[%s0 + $0x288] sm:$0xff]
  %v96 = vld [vmem:[%s0 + $0x290] sm:$0xff]
  %v97 = vld [vmem:[%s0 + $0x298] sm:$0xff]
  %v98 = vld [vmem:[%s0 + $0x2a0] sm:$0xff]
  %v99 = vld [vmem:[%s0 + $0x2a8] sm:$0xff]
  %v100 = vld [vmem:[%s0 + $0x2b0] sm:$0xff]
  %v101 = vld [vmem:[%s0 + $0x2b8] sm:$0xff]
  %v102 = vld [vmem:[%s0 + $0x2c0] sm:$0xff]
  %v103 = vld [vmem:[%s0 + $0x2c8] sm:$0xff]
  %v104 = vld [vmem:[%s0 + $0x2d0] sm:$0xff]
  %v105 = vld [vmem:[%s0 + $0x2d8] sm:$0xff]
  %v106 = vld [vmem:[%s0 + $0x2e0] sm:$0xff]
  %v107 = vld [vmem:[%s0 + $0x2e8] sm:$0xff]
  %v108 = vld [vmem:[%s0 + $0x2f0] sm:$0xff]
  %v109 = vld [vmem:[%s0 + $0x2f8] sm:$0xff]
  %v110 = vld [vmem:[%s0 + $0x300] sm:$0xff]
  %v111 = vld [vmem:[%s0 + $0x308] sm:$0xff]
  %v112 = vld [vmem:[%s0 + $0x310] sm:$0xff]
  %v113 = vld [vmem:[%s0 + $0x318] sm:$0xff]
  %v114 = vld [vmem:[%s0 + $0x320] sm:$0xff]
  %v115 = vld [vmem:[%s0 + $0x328] sm:$0xff]
  %v116 = vld [vmem:[%s0 + $0x330] sm:$0xff]
  %v117 = vld [vmem:[%s0 + $0x338] sm:$0xff]
  %v118 = vld [vmem:[%s0 + $0x340] sm:$0xff]
  %v119 = vld [vmem:[%s0 + $0x348] sm:$0xff]
  %v120 = vld [vmem:[%s0 + $0x350] sm:$0xff]
  %v121 = vld [vmem:[%s0 + $0x358] sm:$0xff]
  %v122 = vld [vmem:[%s0 + $0x360] sm:$0xff]
  %v123 = vld [vmem:[%s0 + $0x368] sm:$0xff]
  %v124 = vld [vmem:[%s0 + $0x370] sm:$0xff]
  %v125 = vld [vmem:[%s0 + $0x378] sm:$0xff]
  %v126 = vld [vmem:[%s0 + $0x380] sm:$0xff]
  %v127 = vld [vmem:[%s0 + $0x388] sm:$0xff]
  %v128 = vld [vmem:[%s0 + $0x390] sm:$0xff]
  %v129 = vld [vmem:[%s0 + $0x398] sm:$0xff]
  %v130 = vld [vmem:[%s0 + $0x3a0] sm:$0xff]
  %v131 = vld [vmem:[%s0 + $0x3a8] sm:$0xff]
  %v132 = vld [vmem:[%s0 + $0x3b0] sm:$0xff]
  %v133 = vld [vmem:[%s0 + $0x3b8] sm:$0xff]
  %v134 = vld [vmem:[%s0 + $0x3c0] sm:$0xff]
  %v135 = vld [vmem:[%s0 + $0x3c8] sm:$0xff]
  %v136 = vld [vmem:[%s0 + $0x3d0] sm:$0xff]
  %v137 = vld [vmem:[%s0 + $0x3d8] sm:$0xff]
  %v138 = vld [vmem:[%s0 + $0x3e0] sm:$0xff]
  %v139 = vld [vmem:[%s0 + $0x3e8] sm:$0xff]
  %v140 = vld [vmem:[%s0 + $0x3f0] sm:$0xff]
  %v141 = vld [vmem:[%s0 + $0x3f8] sm:$0xff]
  %v142 = vld [vmem:[%s0 + $0x400] sm:$0xff]
  %v143 = vld [vmem:[%s0 + $0x408] sm:$0xff]
  %v144 = vld [vmem:[%s0 + $0x410] sm:$0xff]
  %v145 = vld [vmem:[%s0 + $0x418] sm:$0xff]
  %v146 = vld [vmem:[%s0 + $0x420] sm:$0xff]
  %v147 = vld [vmem:[%s0 + $0x428] sm:$0xff]
  %v148 = vld [vmem:[%s0 + $0x430] sm:$0xff]
  %v149 = vld [vmem:[%s0 + $0x438] sm:$0xff]
  %v150 = vld [vmem:[%s0 + $0x440] sm:$0xff]
  %v151 = vld [vmem:[%s0 + $0x448] sm:$0xff]
  %v152 = vld [vmem:[%s0 + $0x450] sm:$0xff]
  %v153 = vld [vmem:[%s0 + $0x458] sm:$0xff]
  %v154 = vld [vmem:[%s0 + $0x460] sm:$0xff]
  %v155 = vld [vmem:[%s0 + $0x468] sm:$0xff]
  %v156 = vld [vmem:[%s0 + $0x470] sm:$0xff]
  %v157 = vld [vmem:[%s0 + $0x478] sm:$0xff]
  %v158 = vld [vmem:[%s1] sm:$0xff]
  %v159 = vld [vmem:[%s1 + $0x8] sm:$0xff]
  %v160 = vld [vmem:[%s1 + $0x10] sm:$0xff]
  %v161 = vld [vmem:[%s1 + $0x18] sm:$0x1]
  %v162 = vld [vmem:[%s2] sm:$0x1]
  %v164 = vlaneseq
  %v165 = vshrl.u32 %v164, 7
  %v166 = vsub.s32 0, %v165
  %v167 = vrot.slane %v162, %v166
  %vm169 = vcmask 203776
  %v171 = vsel %vm169, %v14, 0
  %v174 = vsel %vm169, %v15, 0
  %v177 = vsel %vm169, %v16, 0
  %v180 = vsel %vm169, %v17, 0
  %v183 = vsel %vm169, %v18, 0
  %v186 = vsel %vm169, %v19, 0
  %v189 = vsel %vm169, %v20, 0
  %v192 = vsel %vm169, %v21, 0
  %v195 = vsel %vm169, %v22, 0
  %v198 = vsel %vm169, %v23, 0
  %v201 = vsel %vm169, %v24, 0
  %v204 = vsel %vm169, %v25, 0
  %v207 = vsel %vm169, %v26, 0
  %v210 = vsel %vm169, %v27, 0
  %v213 = vsel %vm169, %v28, 0
  %v216 = vsel %vm169, %v29, 0
  %v219 = vsel %vm169, %v30, 0
  %v222 = vsel %vm169, %v31, 0
  %v225 = vsel %vm169, %v32, 0
  %v228 = vsel %vm169, %v33, 0
  %v231 = vsel %vm169, %v34, 0
  %v234 = vsel %vm169, %v35, 0
  %v237 = vsel %vm169, %v36, 0
  %v240 = vsel %vm169, %v37, 0
  %v243 = vsel %vm169, %v38, 0
  %v246 = vsel %vm169, %v39, 0
  %v249 = vsel %vm169, %v40, 0
  %v252 = vsel %vm169, %v41, 0
  %v255 = vsel %vm169, %v42, 0
  %v258 = vsel %vm169, %v43, 0
  %v261 = vsel %vm169, %v44, 0
  %v264 = vsel %vm169, %v45, 0
  %v267 = vsel %vm169, %v46, 0
  %v270 = vsel %vm169, %v47, 0
  %v273 = vsel %vm169, %v48, 0
  %v276 = vsel %vm169, %v49, 0
  %v279 = vsel %vm169, %v50, 0
  %v282 = vsel %vm169, %v51, 0
  %v285 = vsel %vm169, %v52, 0
  %v288 = vsel %vm169, %v53, 0
  %v291 = vsel %vm169, %v54, 0
  %v294 = vsel %vm169, %v55, 0
  %v297 = vsel %vm169, %v56, 0
  %v300 = vsel %vm169, %v57, 0
  %v303 = vsel %vm169, %v58, 0
  %v306 = vsel %vm169, %v59, 0
  %v309 = vsel %vm169, %v60, 0
  %v312 = vsel %vm169, %v61, 0
  %v315 = vsel %vm169, %v62, 0
  %v318 = vsel %vm169, %v63, 0
  %v321 = vsel %vm169, %v64, 0
  %v324 = vsel %vm169, %v65, 0
  %v327 = vsel %vm169, %v66, 0
  %v330 = vsel %vm169, %v67, 0
  %v333 = vsel %vm169, %v68, 0
  %v336 = vsel %vm169, %v69, 0
  %v339 = vsel %vm169, %v70, 0
  %v342 = vsel %vm169, %v71, 0
  %v345 = vsel %vm169, %v72, 0
  %v348 = vsel %vm169, %v73, 0
  %v351 = vsel %vm169, %v74, 0
  %v354 = vsel %vm169, %v75, 0
  %v357 = vsel %vm169, %v76, 0
  %v360 = vsel %vm169, %v77, 0
  %v363 = vsel %vm169, %v78, 0
  %v366 = vsel %vm169, %v79, 0
  %v369 = vsel %vm169, %v80, 0
  %v372 = vsel %vm169, %v81, 0
  %v375 = vsel %vm169, %v82, 0
  %v378 = vsel %vm169, %v83, 0
  %v381 = vsel %vm169, %v84, 0
  %v384 = vsel %vm169, %v85, 0
  %v387 = vsel %vm169, %v86, 0
  %v390 = vsel %vm169, %v87, 0
  %v393 = vsel %vm169, %v88, 0
  %v396 = vsel %vm169, %v89, 0
  %v399 = vsel %vm169, %v90, 0
  %v402 = vsel %vm169, %v91, 0
  %v405 = vsel %vm169, %v92, 0
  %v408 = vsel %vm169, %v93, 0
  %v411 = vsel %vm169, %v94, 0
  %v414 = vsel %vm169, %v95, 0
  %v417 = vsel %vm169, %v96, 0
  %v420 = vsel %vm169, %v97, 0
  %v423 = vsel %vm169, %v98, 0
  %v426 = vsel %vm169, %v99, 0
  %v429 = vsel %vm169, %v100, 0
  %v432 = vsel %vm169, %v101, 0
  %v435 = vsel %vm169, %v102, 0
  %v438 = vsel %vm169, %v103, 0
  %v441 = vsel %vm169, %v104, 0
  %v444 = vsel %vm169, %v105, 0
  %v447 = vsel %vm169, %v106, 0
  %v450 = vsel %vm169, %v107, 0
  %v453 = vsel %vm169, %v108, 0
  %v456 = vsel %vm169, %v109, 0
  %v459 = vsel %vm169, %v110, 0
  %v462 = vsel %vm169, %v111, 0
  %v465 = vsel %vm169, %v112, 0
  %v468 = vsel %vm169, %v113, 0
  %v471 = vsel %vm169, %v114, 0
  %v474 = vsel %vm169, %v115, 0
  %v477 = vsel %vm169, %v116, 0
  %v480 = vsel %vm169, %v117, 0
  %v483 = vsel %vm169, %v118, 0
  %v486 = vsel %vm169, %v119, 0
  %v489 = vsel %vm169, %v120, 0
  %v492 = vsel %vm169, %v121, 0
  %v495 = vsel %vm169, %v122, 0
  %v498 = vsel %vm169, %v123, 0
  %v501 = vsel %vm169, %v124, 0
  %v504 = vsel %vm169, %v125, 0
  %v507 = vsel %vm169, %v126, 0
  %v510 = vsel %vm169, %v127, 0
  %v513 = vsel %vm169, %v128, 0
  %v516 = vsel %vm169, %v129, 0
  %v519 = vsel %vm169, %v130, 0
  %v522 = vsel %vm169, %v131, 0
  %v525 = vsel %vm169, %v132, 0
  %v528 = vsel %vm169, %v133, 0
  %v531 = vsel %vm169, %v134, 0
  %v534 = vsel %vm169, %v135, 0
  %v537 = vsel %vm169, %v136, 0
  %v540 = vsel %vm169, %v137, 0
  %v543 = vsel %vm169, %v138, 0
  %v546 = vsel %vm169, %v139, 0
  %v549 = vsel %vm169, %v140, 0
  %v552 = vsel %vm169, %v141, 0
  %v555 = vsel %vm169, %v142, 0
  %v558 = vsel %vm169, %v143, 0
  %v561 = vsel %vm169, %v144, 0
  %v564 = vsel %vm169, %v145, 0
  %v567 = vsel %vm169, %v146, 0
  %v570 = vsel %vm169, %v147, 0
  %v573 = vsel %vm169, %v148, 0
  %v576 = vsel %vm169, %v149, 0
  %v579 = vsel %vm169, %v150, 0
  %v582 = vsel %vm169, %v151, 0
  %v585 = vsel %vm169, %v152, 0
  %v588 = vsel %vm169, %v153, 0
  %v591 = vsel %vm169, %v154, 0
  %v594 = vsel %vm169, %v155, 0
  %v597 = vsel %vm169, %v156, 0
  %v600 = vsel %vm169, %v157, 0
  %vm602 = vcmask 1040384
  %v604 = vsel %vm602, %v161, 0
  %606 = vmatprep.subr.mxu0 0.0
  %607 = vmatpush1.msra.mxu0 %v158
  %608 = vmatprep.subr.mxu0 0.0
  %609 = vmatpush1.msra.mxu0 %v159
  %610 = vmatprep.subr.mxu0 0.0
  %611 = vmatpush1.msra.mxu0 %v160
  %612 = vmatprep.subr.mxu0 0.0
  %613 = vmatpush1.msra.mxu0 %v604
  %614 = vmatprep.subr.mxu0 0.0
  %615 = vmatpush1.msra.mxu0 0.0
  %616 = vmatprep.subr.mxu0 0.0
  %617 = vmatpush1.msra.mxu0 0.0
  %618 = vmatprep.subr.mxu0 0.0
  %619 = vmatpush1.msra.mxu0 0.0
  %620 = vmatprep.subr.mxu0 0.0
  %621 = vmatpush1.msra.mxu0 0.0
  %622 = vmatprep.subr.mxu0 0.0
  %623 = vmatpush1.msra.mxu0 0.0
  %624 = vmatprep.subr.mxu0 0.0
  %625 = vmatpush1.msra.mxu0 0.0
  %626 = vmatprep.subr.mxu0 0.0
  %627 = vmatpush1.msra.mxu0 0.0
  %628 = vmatprep.subr.mxu0 0.0
  %629 = vmatpush1.msra.mxu0 0.0
  %630 = vmatprep.subr.mxu0 0.0
  %631 = vmatpush1.msra.mxu0 0.0
  %632 = vmatprep.subr.mxu0 0.0
  %633 = vmatpush1.msra.mxu0 0.0
  %634 = vmatprep.subr.mxu0 0.0
  %635 = vmatpush1.msra.mxu0 0.0
  %636 = vmatprep.subr.mxu0 0.0
  %637 = vmatpush1.msra.mxu0 0.0
  %638 = vmatprep.subr.mxu0 0.0
  %639 = vmatpush1.msra.mxu0 0.0
  %640 = vmatprep.subr.mxu0 0.0
  %641 = vmatpush1.msra.mxu0 0.0
  %642 = vmatprep.subr.mxu0 0.0
  %643 = vmatpush1.msra.mxu0 0.0
  %644 = vmatprep.subr.mxu0 0.0
  %645 = vmatpush1.msra.mxu0 0.0
  %646 = vmatprep.subr.mxu0 0.0
  %647 = vmatpush1.msra.mxu0 0.0
  %648 = vmatprep.subr.mxu0 0.0
  %649 = vmatpush1.msra.mxu0 0.0
  %650 = vmatprep.subr.mxu0 0.0
  %651 = vmatpush1.msra.mxu0 0.0
  %652 = vmatprep.subr.mxu0 0.0
  %653 = vmatpush1.msra.mxu0 0.0
  %654 = vmatprep.subr.mxu0 0.0
  %655 = vmatpush1.msra.mxu0 0.0
  %656 = vmatprep.subr.mxu0 0.0
  %657 = vmatpush1.msra.mxu0 0.0
  %658 = vmatprep.subr.mxu0 0.0
  %659 = vmatpush1.msra.mxu0 0.0
  %660 = vmatprep.subr.mxu0 0.0
  %661 = vmatpush1.msra.mxu0 0.0
  %662 = vmatprep.subr.mxu0 0.0
  %663 = vmatpush1.msra.mxu0 0.0
  %664 = vmatprep.subr.mxu0 0.0
  %665 = vmatpush1.msra.mxu0 0.0
  %666 = vmatprep.subr.mxu0 0.0
  %667 = vmatpush1.msra.mxu0 0.0
  %668 = vmatprep.subr.mxu0 0.0
  %669 = vmatpush1.msra.mxu0 0.0
  %670 = vmatprep.mubr.f32.mxu0 0.0
  %671 = vmatmul.mubr.f32.gmra.mrb[0].mxu0 %v171
  %v672 = vpop.f32.mrb[0].mxu0
  %v673 = vadd.f32 %v167, %v672
  %v674 = vpop.f32.mrb[0].mxu0
  %675 = vmatprep.mubr.f32.mxu0 0.0
  %676 = vmatmul.mubr.f32.gmra.mrb[0].mxu0 %v174
  %v677 = vpop.f32.mrb[0].mxu0
  %v678 = vadd.f32 %v167, %v677
  %v679 = vpop.f32.mrb[0].mxu0
  %680 = vmatprep.mubr.f32.mxu0 0.0
  %681 = vmatmul.mubr.f32.gmra.mrb[0].mxu0 %v177
  %v682 = vpop.f32.mrb[0].mxu0
  %v683 = vadd.f32 %v167, %v682
  %v684 = vpop.f32.mrb[0].mxu0
  %685 = vmatprep.mubr.f32.mxu0 0.0
  %686 = vmatmul.mubr.f32.gmra.mrb[0].mxu0 %v180
  %v687 = vpop.f32.mrb[0].mxu0
  %v688 = vadd.f32 %v167, %v687
  %v689 = vpop.f32.mrb[0].mxu0
  %690 = vmatprep.mubr.f32.mxu0 0.0
  %691 = vmatmul.mubr.f32.gmra.mrb[0].mxu0 %v183
  %v692 = vpop.f32.mrb[0].mxu0
  %v693 = vadd.f32 %v167, %v692
  %v694 = vpop.f32.mrb[0].mxu0
  %695 = vmatprep.mubr.f32.mxu0 0.0
  %696 = vmatmul.mubr.f32.gmra.mrb[0].mxu0 %v186
  %v697 = vpop.f32.mrb[0].mxu0
  %v698 = vadd.f32 %v167, %v697
  %v699 = vpop.f32.mrb[0].mxu0
  %700 = vmatprep.mubr.f32.mxu0 0.0
  %701 = vmatmul.mubr.f32.gmra.mrb[0].mxu0 %v189
  %v702 = vpop.f32.mrb[0].mxu0
  %v703 = vadd.f32 %v167, %v702
  %v704 = vpop.f32.mrb[0].mxu0
  %705 = vmatprep.mubr.f32.mxu0 0.0
  %706 = vmatmul.mubr.f32.gmra.mrb[0].mxu0 %v192
  %v707 = vpop.f32.mrb[0].mxu0
  %v708 = vadd.f32 %v167, %v707
  %v709 = vpop.f32.mrb[0].mxu0
  %710 = vmatprep.mubr.f32.mxu0 0.0
  %711 = vmatmul.mubr.f32.gmra.mrb[0].mxu0 %v195
  %v712 = vpop.f32.mrb[0].mxu0
  %v713 = vadd.f32 %v167, %v712
  %v714 = vpop.f32.mrb[0].mxu0
  %715 = vmatprep.mubr.f32.mxu0 0.0
  %716 = vmatmul.mubr.f32.gmra.mrb[0].mxu0 %v198
  %v717 = vpop.f32.mrb[0].mxu0
  %v718 = vadd.f32 %v167, %v717
  %v719 = vpop.f32.mrb[0].mxu0
  %720 = vmatprep.mubr.f32.mxu0 0.0
  %721 = vmatmul.mubr.f32.gmra.mrb[0].mxu0 %v201
  %v722 = vpop.f32.mrb[0].mxu0
  %v723 = vadd.f32 %v167, %v722
  %v724 = vpop.f32.mrb[0].mxu0
  %725 = vmatprep.mubr.f32.mxu0 0.0
  %726 = vmatmul.mubr.f32.gmra.mrb[0].mxu0 %v204
  %v727 = vpop.f32.mrb[0].mxu0
  %v728 = vadd.f32 %v167, %v727
  %v729 = vpop.f32.mrb[0].mxu0
  %730 = vmatprep.mubr.f32.mxu0 0.0
  %731 = vmatmul.mubr.f32.gmra.mrb[0].mxu0 %v207
  %v732 = vpop.f32.mrb[0].mxu0
  %v733 = vadd.f32 %v167, %v732
  %v734 = vpop.f32.mrb[0].mxu0
  %735 = vmatprep.mubr.f32.mxu0 0.0
  %736 = vmatmul.mubr.f32.gmra.mrb[0].mxu0 %v210
  %v737 = vpop.f32.mrb[0].mxu0
  %v738 = vadd.f32 %v167, %v737
  %v739 = vpop.f32.mrb[0].mxu0
  %740 = vmatprep.mubr.f32.mxu0 0.0
  %741 = vmatmul.mubr.f32.gmra.mrb[0].mxu0 %v213
  %v742 = vpop.f32.mrb[0].mxu0
  %v743 = vadd.f32 %v167, %v742
  %v744 = vpop.f32.mrb[0].mxu0
  %745 = vmatprep.mubr.f32.mxu0 0.0
  %746 = vmatmul.mubr.f32.gmra.mrb[0].mxu0 %v216
  %v747 = vpop.f32.mrb[0].mxu0
  %v748 = vadd.f32 %v167, %v747
  %v749 = vpop.f32.mrb[0].mxu0
  %750 = vmatprep.mubr.f32.mxu0 0.0
  %751 = vmatmul.mubr.f32.gmra.mrb[0].mxu0 %v219
  %v752 = vpop.f32.mrb[0].mxu0
  %v753 = vadd.f32 %v167, %v752
  %v754 = vpop.f32.mrb[0].mxu0
  %755 = vmatprep.mubr.f32.mxu0 0.0
  %756 = vmatmul.mubr.f32.gmra.mrb[0].mxu0 %v222
  %v757 = vpop.f32.mrb[0].mxu0
  %v758 = vadd.f32 %v167, %v757
  %v759 = vpop.f32.mrb[0].mxu0
  %760 = vmatprep.mubr.f32.mxu0 0.0
  %761 = vmatmul.mubr.f32.gmra.mrb[0].mxu0 %v225
  %v762 = vpop.f32.mrb[0].mxu0
  %v763 = vadd.f32 %v167, %v762
  %v764 = vpop.f32.mrb[0].mxu0
  %765 = vmatprep.mubr.f32.mxu0 0.0
  %766 = vmatmul.mubr.f32.gmra.mrb[0].mxu0 %v228
  %v767 = vpop.f32.mrb[0].mxu0
  %v768 = vadd.f32 %v167, %v767
  %v769 = vpop.f32.mrb[0].mxu0
  %770 = vmatprep.mubr.f32.mxu0 0.0
  %771 = vmatmul.mubr.f32.gmra.mrb[0].mxu0 %v231
  %v772 = vpop.f32.mrb[0].mxu0
  %v773 = vadd.f32 %v167, %v772
  %v774 = vpop.f32.mrb[0].mxu0
  %775 = vmatprep.mubr.f32.mxu0 0.0
  %776 = vmatmul.mubr.f32.gmra.mrb[0].mxu0 %v234
  %v777 = vpop.f32.mrb[0].mxu0
  %v778 = vadd.f32 %v167, %v777
  %v779 = vpop.f32.mrb[0].mxu0
  %780 = vmatprep.mubr.f32.mxu0 0.0
  %781 = vmatmul.mubr.f32.gmra.mrb[0].mxu0 %v237
  %v782 = vpop.f32.mrb[0].mxu0
  %v783 = vadd.f32 %v167, %v782
  %v784 = vpop.f32.mrb[0].mxu0
  %785 = vmatprep.mubr.f32.mxu0 0.0
  %786 = vmatmul.mubr.f32.gmra.mrb[0].mxu0 %v240
  %v787 = vpop.f32.mrb[0].mxu0
  %v788 = vadd.f32 %v167, %v787
  %v789 = vpop.f32.mrb[0].mxu0
  %790 = vmatprep.mubr.f32.mxu0 0.0
  %791 = vmatmul.mubr.f32.gmra.mrb[0].mxu0 %v243
  %v792 = vpop.f32.mrb[0].mxu0
  %v793 = vadd.f32 %v167, %v792
  %v794 = vpop.f32.mrb[0].mxu0
  %795 = vmatprep.mubr.f32.mxu0 0.0
  %796 = vmatmul.mubr.f32.gmra.mrb[0].mxu0 %v246
  %v797 = vpop.f32.mrb[0].mxu0
  %v798 = vadd.f32 %v167, %v797
  %v799 = vpop.f32.mrb[0].mxu0
  %800 = vmatprep.mubr.f32.mxu0 0.0
  %801 = vmatmul.mubr.f32.gmra.mrb[0].mxu0 %v249
  %v802 = vpop.f32.mrb[0].mxu0
  %v803 = vadd.f32 %v167, %v802
  %v804 = vpop.f32.mrb[0].mxu0
  %805 = vmatprep.mubr.f32.mxu0 0.0
  %806 = vmatmul.mubr.f32.gmra.mrb[0].mxu0 %v252
  %v807 = vpop.f32.mrb[0].mxu0
  %v808 = vadd.f32 %v167, %v807
  %v809 = vpop.f32.mrb[0].mxu0
  %810 = vmatprep.mubr.f32.mxu0 0.0
  %811 = vmatmul.mubr.f32.gmra.mrb[0].mxu0 %v255
  %v812 = vpop.f32.mrb[0].mxu0
  %v813 = vadd.f32 %v167, %v812
  %v814 = vpop.f32.mrb[0].mxu0
  %815 = vmatprep.mubr.f32.mxu0 0.0
  %816 = vmatmul.mubr.f32.gmra.mrb[0].mxu0 %v258
  %v817 = vpop.f32.mrb[0].mxu0
  %v818 = vadd.f32 %v167, %v817
  %v819 = vpop.f32.mrb[0].mxu0
  %820 = vmatprep.mubr.f32.mxu0 0.0
  %821 = vmatmul.mubr.f32.gmra.mrb[0].mxu0 %v261
  %v822 = vpop.f32.mrb[0].mxu0
  %v823 = vadd.f32 %v167, %v822
  %v824 = vpop.f32.mrb[0].mxu0
  %825 = vmatprep.mubr.f32.mxu0 0.0
  %826 = vmatmul.mubr.f32.gmra.mrb[0].mxu0 %v264
  %v827 = vpop.f32.mrb[0].mxu0
  %v828 = vadd.f32 %v167, %v827
  %v829 = vpop.f32.mrb[0].mxu0
  %830 = vmatprep.mubr.f32.mxu0 0.0
  %831 = vmatmul.mubr.f32.gmra.mrb[0].mxu0 %v267
  %v832 = vpop.f32.mrb[0].mxu0
  %v833 = vadd.f32 %v167, %v832
  %v834 = vpop.f32.mrb[0].mxu0
  %835 = vmatprep.mubr.f32.mxu0 0.0
  %836 = vmatmul.mubr.f32.gmra.mrb[0].mxu0 %v270
  %v837 = vpop.f32.mrb[0].mxu0
  %v838 = vadd.f32 %v167, %v837
  %v839 = vpop.f32.mrb[0].mxu0
  %840 = vmatprep.mubr.f32.mxu0 0.0
  %841 = vmatmul.mubr.f32.gmra.mrb[0].mxu0 %v273
  %v842 = vpop.f32.mrb[0].mxu0
  %v843 = vadd.f32 %v167, %v842
  %v844 = vpop.f32.mrb[0].mxu0
  %845 = vmatprep.mubr.f32.mxu0 0.0
  %846 = vmatmul.mubr.f32.gmra.mrb[0].mxu0 %v276
  %v847 = vpop.f32.mrb[0].mxu0
  %v848 = vadd.f32 %v167, %v847
  %v849 = vpop.f32.mrb[0].mxu0
  %850 = vmatprep.mubr.f32.mxu0 0.0
  %851 = vmatmul.mubr.f32.gmra.mrb[0].mxu0 %v279
  %v852 = vpop.f32.mrb[0].mxu0
  %v853 = vadd.f32 %v167, %v852
  %v854 = vpop.f32.mrb[0].mxu0
  %855 = vmatprep.mubr.f32.mxu0 0.0
  %856 = vmatmul.mubr.f32.gmra.mrb[0].mxu0 %v282
  %v857 = vpop.f32.mrb[0].mxu0
  %v858 = vadd.f32 %v167, %v857
  %v859 = vpop.f32.mrb[0].mxu0
  %860 = vmatprep.mubr.f32.mxu0 0.0
  %861 = vmatmul.mubr.f32.gmra.mrb[0].mxu0 %v285
  %v862 = vpop.f32.mrb[0].mxu0
  %v863 = vadd.f32 %v167, %v862
  %v864 = vpop.f32.mrb[0].mxu0
  %865 = vmatprep.mubr.f32.mxu0 0.0
  %866 = vmatmul.mubr.f32.gmra.mrb[0].mxu0 %v288
  %v867 = vpop.f32.mrb[0].mxu0
  %v868 = vadd.f32 %v167, %v867
  %v869 = vpop.f32.mrb[0].mxu0
  %870 = vmatprep.mubr.f32.mxu0 0.0
  %871 = vmatmul.mubr.f32.gmra.mrb[0].mxu0 %v291
  %v872 = vpop.f32.mrb[0].mxu0
  %v873 = vadd.f32 %v167, %v872
  %v874 = vpop.f32.mrb[0].mxu0
  %875 = vmatprep.mubr.f32.mxu0 0.0
  %876 = vmatmul.mubr.f32.gmra.mrb[0].mxu0 %v294
  %v877 = vpop.f32.mrb[0].mxu0
  %v878 = vadd.f32 %v167, %v877
  %v879 = vpop.f32.mrb[0].mxu0
  %880 = vmatprep.mubr.f32.mxu0 0.0
  %881 = vmatmul.mubr.f32.gmra.mrb[0].mxu0 %v297
  %v882 = vpop.f32.mrb[0].mxu0
  %v883 = vadd.f32 %v167, %v882
  %v884 = vpop.f32.mrb[0].mxu0
  %885 = vmatprep.mubr.f32.mxu0 0.0
  %886 = vmatmul.mubr.f32.gmra.mrb[0].mxu0 %v300
  %v887 = vpop.f32.mrb[0].mxu0
  %v888 = vadd.f32 %v167, %v887
  %v889 = vpop.f32.mrb[0].mxu0
  %890 = vmatprep.mubr.f32.mxu0 0.0
  %891 = vmatmul.mubr.f32.gmra.mrb[0].mxu0 %v303
  %v892 = vpop.f32.mrb[0].mxu0
  %v893 = vadd.f32 %v167, %v892
  %v894 = vpop.f32.mrb[0].mxu0
  %895 = vmatprep.mubr.f32.mxu0 0.0
  %896 = vmatmul.mubr.f32.gmra.mrb[0].mxu0 %v306
  %v897 = vpop.f32.mrb[0].mxu0
  %v898 = vadd.f32 %v167, %v897
  %v899 = vpop.f32.mrb[0].mxu0
  %900 = vmatprep.mubr.f32.mxu0 0.0
  %901 = vmatmul.mubr.f32.gmra.mrb[0].mxu0 %v309
  %v902 = vpop.f32.mrb[0].mxu0
  %v903 = vadd.f32 %v167, %v902
  %v904 = vpop.f32.mrb[0].mxu0
  %905 = vmatprep.mubr.f32.mxu0 0.0
  %906 = vmatmul.mubr.f32.gmra.mrb[0].mxu0 %v312
  %v907 = vpop.f32.mrb[0].mxu0
  %v908 = vadd.f32 %v167, %v907
  %v909 = vpop.f32.mrb[0].mxu0
  %910 = vmatprep.mubr.f32.mxu0 0.0
  %911 = vmatmul.mubr.f32.gmra.mrb[0].mxu0 %v315
  %v912 = vpop.f32.mrb[0].mxu0
  %v913 = vadd.f32 %v167, %v912
  %v914 = vpop.f32.mrb[0].mxu0
  %915 = vmatprep.mubr.f32.mxu0 0.0
  %916 = vmatmul.mubr.f32.gmra.mrb[0].mxu0 %v318
  %v917 = vpop.f32.mrb[0].mxu0
  %v918 = vadd.f32 %v167, %v917
  %v919 = vpop.f32.mrb[0].mxu0
  %920 = vmatprep.mubr.f32.mxu0 0.0
  %921 = vmatmul.mubr.f32.gmra.mrb[0].mxu0 %v321
  %v922 = vpop.f32.mrb[0].mxu0
  %v923 = vadd.f32 %v167, %v922
  %v924 = vpop.f32.mrb[0].mxu0
  %925 = vmatprep.mubr.f32.mxu0 0.0
  %926 = vmatmul.mubr.f32.gmra.mrb[0].mxu0 %v324
  %v927 = vpop.f32.mrb[0].mxu0
  %v928 = vadd.f32 %v167, %v927
  %v929 = vpop.f32.mrb[0].mxu0
  %930 = vmatprep.mubr.f32.mxu0 0.0
  %931 = vmatmul.mubr.f32.gmra.mrb[0].mxu0 %v327
  %v932 = vpop.f32.mrb[0].mxu0
  %v933 = vadd.f32 %v167, %v932
  %v934 = vpop.f32.mrb[0].mxu0
  %935 = vmatprep.mubr.f32.mxu0 0.0
  %936 = vmatmul.mubr.f32.gmra.mrb[0].mxu0 %v330
  %v937 = vpop.f32.mrb[0].mxu0
  %v938 = vadd.f32 %v167, %v937
  %v939 = vpop.f32.mrb[0].mxu0
  %940 = vmatprep.mubr.f32.mxu0 0.0
  %941 = vmatmul.mubr.f32.gmra.mrb[0].mxu0 %v333
  %v942 = vpop.f32.mrb[0].mxu0
  %v943 = vadd.f32 %v167, %v942
  %v944 = vpop.f32.mrb[0].mxu0
  %945 = vmatprep.mubr.f32.mxu0 0.0
  %946 = vmatmul.mubr.f32.gmra.mrb[0].mxu0 %v336
  %v947 = vpop.f32.mrb[0].mxu0
  %v948 = vadd.f32 %v167, %v947
  %v949 = vpop.f32.mrb[0].mxu0
  %950 = vmatprep.mubr.f32.mxu0 0.0
  %951 = vmatmul.mubr.f32.gmra.mrb[0].mxu0 %v339
  %v952 = vpop.f32.mrb[0].mxu0
  %v953 = vadd.f32 %v167, %v952
  %v954 = vpop.f32.mrb[0].mxu0
  %955 = vmatprep.mubr.f32.mxu0 0.0
  %956 = vmatmul.mubr.f32.gmra.mrb[0].mxu0 %v342
  %v957 = vpop.f32.mrb[0].mxu0
  %v958 = vadd.f32 %v167, %v957
  %v959 = vpop.f32.mrb[0].mxu0
  %960 = vmatprep.mubr.f32.mxu0 0.0
  %961 = vmatmul.mubr.f32.gmra.mrb[0].mxu0 %v345
  %v962 = vpop.f32.mrb[0].mxu0
  %v963 = vadd.f32 %v167, %v962
  %v964 = vpop.f32.mrb[0].mxu0
  %965 = vmatprep.mubr.f32.mxu0 0.0
  %966 = vmatmul.mubr.f32.gmra.mrb[0].mxu0 %v348
  %v967 = vpop.f32.mrb[0].mxu0
  %v968 = vadd.f32 %v167, %v967
  %v969 = vpop.f32.mrb[0].mxu0
  %970 = vmatprep.mubr.f32.mxu0 0.0
  %971 = vmatmul.mubr.f32.gmra.mrb[0].mxu0 %v351
  %v972 = vpop.f32.mrb[0].mxu0
  %v973 = vadd.f32 %v167, %v972
  %v974 = vpop.f32.mrb[0].mxu0
  %975 = vmatprep.mubr.f32.mxu0 0.0
  %976 = vmatmul.mubr.f32.gmra.mrb[0].mxu0 %v354
  %v977 = vpop.f32.mrb[0].mxu0
  %v978 = vadd.f32 %v167, %v977
  %v979 = vpop.f32.mrb[0].mxu0
  %980 = vmatprep.mubr.f32.mxu0 0.0
  %981 = vmatmul.mubr.f32.gmra.mrb[0].mxu0 %v357
  %v982 = vpop.f32.mrb[0].mxu0
  %v983 = vadd.f32 %v167, %v982
  %v984 = vpop.f32.mrb[0].mxu0
  %985 = vmatprep.mubr.f32.mxu0 0.0
  %986 = vmatmul.mubr.f32.gmra.mrb[0].mxu0 %v360
  %v987 = vpop.f32.mrb[0].mxu0
  %v988 = vadd.f32 %v167, %v987
  %v989 = vpop.f32.mrb[0].mxu0
  %990 = vmatprep.mubr.f32.mxu0 0.0
  %991 = vmatmul.mubr.f32.gmra.mrb[0].mxu0 %v363
  %v992 = vpop.f32.mrb[0].mxu0
  %v993 = vadd.f32 %v167, %v992
  %v994 = vpop.f32.mrb[0].mxu0
  %995 = vmatprep.mubr.f32.mxu0 0.0
  %996 = vmatmul.mubr.f32.gmra.mrb[0].mxu0 %v366
  %v997 = vpop.f32.mrb[0].mxu0
  %v998 = vadd.f32 %v167, %v997
  %v999 = vpop.f32.mrb[0].mxu0
  %1000 = vmatprep.mubr.f32.mxu0 0.0
  %1001 = vmatmul.mubr.f32.gmra.mrb[0].mxu0 %v369
  %v1002 = vpop.f32.mrb[0].mxu0
  %v1003 = vadd.f32 %v167, %v1002
  %v1004 = vpop.f32.mrb[0].mxu0
  %1005 = vmatprep.mubr.f32.mxu0 0.0
  %1006 = vmatmul.mubr.f32.gmra.mrb[0].mxu0 %v372
  %v1007 = vpop.f32.mrb[0].mxu0
  %v1008 = vadd.f32 %v167, %v1007
  %v1009 = vpop.f32.mrb[0].mxu0
  %1010 = vmatprep.mubr.f32.mxu0 0.0
  %1011 = vmatmul.mubr.f32.gmra.mrb[0].mxu0 %v375
  %v1012 = vpop.f32.mrb[0].mxu0
  %v1013 = vadd.f32 %v167, %v1012
  %v1014 = vpop.f32.mrb[0].mxu0
  %1015 = vmatprep.mubr.f32.mxu0 0.0
  %1016 = vmatmul.mubr.f32.gmra.mrb[0].mxu0 %v378
  %v1017 = vpop.f32.mrb[0].mxu0
  %v1018 = vadd.f32 %v167, %v1017
  %v1019 = vpop.f32.mrb[0].mxu0
  %1020 = vmatprep.mubr.f32.mxu0 0.0
  %1021 = vmatmul.mubr.f32.gmra.mrb[0].mxu0 %v381
  %v1022 = vpop.f32.mrb[0].mxu0
  %v1023 = vadd.f32 %v167, %v1022
  %v1024 = vpop.f32.mrb[0].mxu0
  %1025 = vmatprep.mubr.f32.mxu0 0.0
  %1026 = vmatmul.mubr.f32.gmra.mrb[0].mxu0 %v384
  %v1027 = vpop.f32.mrb[0].mxu0
  %v1028 = vadd.f32 %v167, %v1027
  %v1029 = vpop.f32.mrb[0].mxu0
  %1030 = vmatprep.mubr.f32.mxu0 0.0
  %1031 = vmatmul.mubr.f32.gmra.mrb[0].mxu0 %v387
  %v1032 = vpop.f32.mrb[0].mxu0
  %v1033 = vadd.f32 %v167, %v1032
  %v1034 = vpop.f32.mrb[0].mxu0
  %1035 = vmatprep.mubr.f32.mxu0 0.0
  %1036 = vmatmul.mubr.f32.gmra.mrb[0].mxu0 %v390
  %v1037 = vpop.f32.mrb[0].mxu0
  %v1038 = vadd.f32 %v167, %v1037
  %v1039 = vpop.f32.mrb[0].mxu0
  %1040 = vmatprep.mubr.f32.mxu0 0.0
  %1041 = vmatmul.mubr.f32.gmra.mrb[0].mxu0 %v393
  %v1042 = vpop.f32.mrb[0].mxu0
  %v1043 = vadd.f32 %v167, %v1042
  %v1044 = vpop.f32.mrb[0].mxu0
  %1045 = vmatprep.mubr.f32.mxu0 0.0
  %1046 = vmatmul.mubr.f32.gmra.mrb[0].mxu0 %v396
  %v1047 = vpop.f32.mrb[0].mxu0
  %v1048 = vadd.f32 %v167, %v1047
  %v1049 = vpop.f32.mrb[0].mxu0
  %1050 = vmatprep.mubr.f32.mxu0 0.0
  %1051 = vmatmul.mubr.f32.gmra.mrb[0].mxu0 %v399
  %v1052 = vpop.f32.mrb[0].mxu0
  %v1053 = vadd.f32 %v167, %v1052
  %v1054 = vpop.f32.mrb[0].mxu0
  %1055 = vmatprep.mubr.f32.mxu0 0.0
  %1056 = vmatmul.mubr.f32.gmra.mrb[0].mxu0 %v402
  %v1057 = vpop.f32.mrb[0].mxu0
  %v1058 = vadd.f32 %v167, %v1057
  %v1059 = vpop.f32.mrb[0].mxu0
  %1060 = vmatprep.mubr.f32.mxu0 0.0
  %1061 = vmatmul.mubr.f32.gmra.mrb[0].mxu0 %v405
  %v1062 = vpop.f32.mrb[0].mxu0
  %v1063 = vadd.f32 %v167, %v1062
  %v1064 = vpop.f32.mrb[0].mxu0
  %1065 = vmatprep.mubr.f32.mxu0 0.0
  %1066 = vmatmul.mubr.f32.gmra.mrb[0].mxu0 %v408
  %v1067 = vpop.f32.mrb[0].mxu0
  %v1068 = vadd.f32 %v167, %v1067
  %v1069 = vpop.f32.mrb[0].mxu0
  %1070 = vmatprep.mubr.f32.mxu0 0.0
  %1071 = vmatmul.mubr.f32.gmra.mrb[0].mxu0 %v411
  %v1072 = vpop.f32.mrb[0].mxu0
  %v1073 = vadd.f32 %v167, %v1072
  %v1074 = vpop.f32.mrb[0].mxu0
  %1075 = vmatprep.mubr.f32.mxu0 0.0
  %1076 = vmatmul.mubr.f32.gmra.mrb[0].mxu0 %v414
  %v1077 = vpop.f32.mrb[0].mxu0
  %v1078 = vadd.f32 %v167, %v1077
  %v1079 = vpop.f32.mrb[0].mxu0
  %1080 = vmatprep.mubr.f32.mxu0 0.0
  %1081 = vmatmul.mubr.f32.gmra.mrb[0].mxu0 %v417
  %v1082 = vpop.f32.mrb[0].mxu0
  %v1083 = vadd.f32 %v167, %v1082
  %v1084 = vpop.f32.mrb[0].mxu0
  %1085 = vmatprep.mubr.f32.mxu0 0.0
  %1086 = vmatmul.mubr.f32.gmra.mrb[0].mxu0 %v420
  %v1087 = vpop.f32.mrb[0].mxu0
  %v1088 = vadd.f32 %v167, %v1087
  %v1089 = vpop.f32.mrb[0].mxu0
  %1090 = vmatprep.mubr.f32.mxu0 0.0
  %1091 = vmatmul.mubr.f32.gmra.mrb[0].mxu0 %v423
  %v1092 = vpop.f32.mrb[0].mxu0
  %v1093 = vadd.f32 %v167, %v1092
  %v1094 = vpop.f32.mrb[0].mxu0
  %1095 = vmatprep.mubr.f32.mxu0 0.0
  %1096 = vmatmul.mubr.f32.gmra.mrb[0].mxu0 %v426
  %v1097 = vpop.f32.mrb[0].mxu0
  %v1098 = vadd.f32 %v167, %v1097
  %v1099 = vpop.f32.mrb[0].mxu0
  %1100 = vmatprep.mubr.f32.mxu0 0.0
  %1101 = vmatmul.mubr.f32.gmra.mrb[0].mxu0 %v429
  %v1102 = vpop.f32.mrb[0].mxu0
  %v1103 = vadd.f32 %v167, %v1102
  %v1104 = vpop.f32.mrb[0].mxu0
  %1105 = vmatprep.mubr.f32.mxu0 0.0
  %1106 = vmatmul.mubr.f32.gmra.mrb[0].mxu0 %v432
  %v1107 = vpop.f32.mrb[0].mxu0
  %v1108 = vadd.f32 %v167, %v1107
  %v1109 = vpop.f32.mrb[0].mxu0
  %1110 = vmatprep.mubr.f32.mxu0 0.0
  %1111 = vmatmul.mubr.f32.gmra.mrb[0].mxu0 %v435
  %v1112 = vpop.f32.mrb[0].mxu0
  %v1113 = vadd.f32 %v167, %v1112
  %v1114 = vpop.f32.mrb[0].mxu0
  %1115 = vmatprep.mubr.f32.mxu0 0.0
  %1116 = vmatmul.mubr.f32.gmra.mrb[0].mxu0 %v438
  %v1117 = vpop.f32.mrb[0].mxu0
  %v1118 = vadd.f32 %v167, %v1117
  %v1119 = vpop.f32.mrb[0].mxu0
  %1120 = vmatprep.mubr.f32.mxu0 0.0
  %1121 = vmatmul.mubr.f32.gmra.mrb[0].mxu0 %v441
  %v1122 = vpop.f32.mrb[0].mxu0
  %v1123 = vadd.f32 %v167, %v1122
  %v1124 = vpop.f32.mrb[0].mxu0
  %1125 = vmatprep.mubr.f32.mxu0 0.0
  %1126 = vmatmul.mubr.f32.gmra.mrb[0].mxu0 %v444
  %v1127 = vpop.f32.mrb[0].mxu0
  %v1128 = vadd.f32 %v167, %v1127
  %v1129 = vpop.f32.mrb[0].mxu0
  %1130 = vmatprep.mubr.f32.mxu0 0.0
  %1131 = vmatmul.mubr.f32.gmra.mrb[0].mxu0 %v447
  %v1132 = vpop.f32.mrb[0].mxu0
  %v1133 = vadd.f32 %v167, %v1132
  %v1134 = vpop.f32.mrb[0].mxu0
  %1135 = vmatprep.mubr.f32.mxu0 0.0
  %1136 = vmatmul.mubr.f32.gmra.mrb[0].mxu0 %v450
  %v1137 = vpop.f32.mrb[0].mxu0
  %v1138 = vadd.f32 %v167, %v1137
  %v1139 = vpop.f32.mrb[0].mxu0
  %1140 = vmatprep.mubr.f32.mxu0 0.0
  %1141 = vmatmul.mubr.f32.gmra.mrb[0].mxu0 %v453
  %v1142 = vpop.f32.mrb[0].mxu0
  %v1143 = vadd.f32 %v167, %v1142
  %v1144 = vpop.f32.mrb[0].mxu0
  %1145 = vmatprep.mubr.f32.mxu0 0.0
  %1146 = vmatmul.mubr.f32.gmra.mrb[0].mxu0 %v456
  %v1147 = vpop.f32.mrb[0].mxu0
  %v1148 = vadd.f32 %v167, %v1147
  %v1149 = vpop.f32.mrb[0].mxu0
  %1150 = vmatprep.mubr.f32.mxu0 0.0
  %1151 = vmatmul.mubr.f32.gmra.mrb[0].mxu0 %v459
  %v1152 = vpop.f32.mrb[0].mxu0
  %v1153 = vadd.f32 %v167, %v1152
  %v1154 = vpop.f32.mrb[0].mxu0
  %1155 = vmatprep.mubr.f32.mxu0 0.0
  %1156 = vmatmul.mubr.f32.gmra.mrb[0].mxu0 %v462
  %v1157 = vpop.f32.mrb[0].mxu0
  %v1158 = vadd.f32 %v167, %v1157
  %v1159 = vpop.f32.mrb[0].mxu0
  %1160 = vmatprep.mubr.f32.mxu0 0.0
  %1161 = vmatmul.mubr.f32.gmra.mrb[0].mxu0 %v465
  %v1162 = vpop.f32.mrb[0].mxu0
  %v1163 = vadd.f32 %v167, %v1162
  %v1164 = vpop.f32.mrb[0].mxu0
  %1165 = vmatprep.mubr.f32.mxu0 0.0
  %1166 = vmatmul.mubr.f32.gmra.mrb[0].mxu0 %v468
  %v1167 = vpop.f32.mrb[0].mxu0
  %v1168 = vadd.f32 %v167, %v1167
  %v1169 = vpop.f32.mrb[0].mxu0
  %1170 = vmatprep.mubr.f32.mxu0 0.0
  %1171 = vmatmul.mubr.f32.gmra.mrb[0].mxu0 %v471
  %v1172 = vpop.f32.mrb[0].mxu0
  %v1173 = vadd.f32 %v167, %v1172
  %v1174 = vpop.f32.mrb[0].mxu0
  %1175 = vmatprep.mubr.f32.mxu0 0.0
  %1176 = vmatmul.mubr.f32.gmra.mrb[0].mxu0 %v474
  %v1177 = vpop.f32.mrb[0].mxu0
  %v1178 = vadd.f32 %v167, %v1177
  %v1179 = vpop.f32.mrb[0].mxu0
  %1180 = vmatprep.mubr.f32.mxu0 0.0
  %1181 = vmatmul.mubr.f32.gmra.mrb[0].mxu0 %v477
  %v1182 = vpop.f32.mrb[0].mxu0
  %v1183 = vadd.f32 %v167, %v1182
  %v1184 = vpop.f32.mrb[0].mxu0
  %1185 = vmatprep.mubr.f32.mxu0 0.0
  %1186 = vmatmul.mubr.f32.gmra.mrb[0].mxu0 %v480
  %v1187 = vpop.f32.mrb[0].mxu0
  %v1188 = vadd.f32 %v167, %v1187
  %v1189 = vpop.f32.mrb[0].mxu0
  %1190 = vmatprep.mubr.f32.mxu0 0.0
  %1191 = vmatmul.mubr.f32.gmra.mrb[0].mxu0 %v483
  %v1192 = vpop.f32.mrb[0].mxu0
  %v1193 = vadd.f32 %v167, %v1192
  %v1194 = vpop.f32.mrb[0].mxu0
  %1195 = vmatprep.mubr.f32.mxu0 0.0
  %1196 = vmatmul.mubr.f32.gmra.mrb[0].mxu0 %v486
  %v1197 = vpop.f32.mrb[0].mxu0
  %v1198 = vadd.f32 %v167, %v1197
  %v1199 = vpop.f32.mrb[0].mxu0
  %1200 = vmatprep.mubr.f32.mxu0 0.0
  %1201 = vmatmul.mubr.f32.gmra.mrb[0].mxu0 %v489
  %v1202 = vpop.f32.mrb[0].mxu0
  %v1203 = vadd.f32 %v167, %v1202
  %v1204 = vpop.f32.mrb[0].mxu0
  %1205 = vmatprep.mubr.f32.mxu0 0.0
  %1206 = vmatmul.mubr.f32.gmra.mrb[0].mxu0 %v492
  %v1207 = vpop.f32.mrb[0].mxu0
  %v1208 = vadd.f32 %v167, %v1207
  %v1209 = vpop.f32.mrb[0].mxu0
  %1210 = vmatprep.mubr.f32.mxu0 0.0
  %1211 = vmatmul.mubr.f32.gmra.mrb[0].mxu0 %v495
  %v1212 = vpop.f32.mrb[0].mxu0
  %v1213 = vadd.f32 %v167, %v1212
  %v1214 = vpop.f32.mrb[0].mxu0
  %1215 = vmatprep.mubr.f32.mxu0 0.0
  %1216 = vmatmul.mubr.f32.gmra.mrb[0].mxu0 %v498
  %v1217 = vpop.f32.mrb[0].mxu0
  %v1218 = vadd.f32 %v167, %v1217
  %v1219 = vpop.f32.mrb[0].mxu0
  %1220 = vmatprep.mubr.f32.mxu0 0.0
  %1221 = vmatmul.mubr.f32.gmra.mrb[0].mxu0 %v501
  %v1222 = vpop.f32.mrb[0].mxu0
  %v1223 = vadd.f32 %v167, %v1222
  %v1224 = vpop.f32.mrb[0].mxu0
  %1225 = vmatprep.mubr.f32.mxu0 0.0
  %1226 = vmatmul.mubr.f32.gmra.mrb[0].mxu0 %v504
  %v1227 = vpop.f32.mrb[0].mxu0
  %v1228 = vadd.f32 %v167, %v1227
  %v1229 = vpop.f32.mrb[0].mxu0
  %1230 = vmatprep.mubr.f32.mxu0 0.0
  %1231 = vmatmul.mubr.f32.gmra.mrb[0].mxu0 %v507
  %v1232 = vpop.f32.mrb[0].mxu0
  %v1233 = vadd.f32 %v167, %v1232
  %v1234 = vpop.f32.mrb[0].mxu0
  %1235 = vmatprep.mubr.f32.mxu0 0.0
  %1236 = vmatmul.mubr.f32.gmra.mrb[0].mxu0 %v510
  %v1237 = vpop.f32.mrb[0].mxu0
  %v1238 = vadd.f32 %v167, %v1237
  %v1239 = vpop.f32.mrb[0].mxu0
  %1240 = vmatprep.mubr.f32.mxu0 0.0
  %1241 = vmatmul.mubr.f32.gmra.mrb[0].mxu0 %v513
  %v1242 = vpop.f32.mrb[0].mxu0
  %v1243 = vadd.f32 %v167, %v1242
  %v1244 = vpop.f32.mrb[0].mxu0
  %1245 = vmatprep.mubr.f32.mxu0 0.0
  %1246 = vmatmul.mubr.f32.gmra.mrb[0].mxu0 %v516
  %v1247 = vpop.f32.mrb[0].mxu0
  %v1248 = vadd.f32 %v167, %v1247
  %v1249 = vpop.f32.mrb[0].mxu0
  %1250 = vmatprep.mubr.f32.mxu0 0.0
  %1251 = vmatmul.mubr.f32.gmra.mrb[0].mxu0 %v519
  %v1252 = vpop.f32.mrb[0].mxu0
  %v1253 = vadd.f32 %v167, %v1252
  %v1254 = vpop.f32.mrb[0].mxu0
  %1255 = vmatprep.mubr.f32.mxu0 0.0
  %1256 = vmatmul.mubr.f32.gmra.mrb[0].mxu0 %v522
  %v1257 = vpop.f32.mrb[0].mxu0
  %v1258 = vadd.f32 %v167, %v1257
  %v1259 = vpop.f32.mrb[0].mxu0
  %1260 = vmatprep.mubr.f32.mxu0 0.0
  %1261 = vmatmul.mubr.f32.gmra.mrb[0].mxu0 %v525
  %v1262 = vpop.f32.mrb[0].mxu0
  %v1263 = vadd.f32 %v167, %v1262
  %v1264 = vpop.f32.mrb[0].mxu0
  %1265 = vmatprep.mubr.f32.mxu0 0.0
  %1266 = vmatmul.mubr.f32.gmra.mrb[0].mxu0 %v528
  %v1267 = vpop.f32.mrb[0].mxu0
  %v1268 = vadd.f32 %v167, %v1267
  %v1269 = vpop.f32.mrb[0].mxu0
  %1270 = vmatprep.mubr.f32.mxu0 0.0
  %1271 = vmatmul.mubr.f32.gmra.mrb[0].mxu0 %v531
  %v1272 = vpop.f32.mrb[0].mxu0
  %v1273 = vadd.f32 %v167, %v1272
  %v1274 = vpop.f32.mrb[0].mxu0
  %1275 = vmatprep.mubr.f32.mxu0 0.0
  %1276 = vmatmul.mubr.f32.gmra.mrb[0].mxu0 %v534
  %v1277 = vpop.f32.mrb[0].mxu0
  %v1278 = vadd.f32 %v167, %v1277
  %v1279 = vpop.f32.mrb[0].mxu0
  %1280 = vmatprep.mubr.f32.mxu0 0.0
  %1281 = vmatmul.mubr.f32.gmra.mrb[0].mxu0 %v537
  %v1282 = vpop.f32.mrb[0].mxu0
  %v1283 = vadd.f32 %v167, %v1282
  %v1284 = vpop.f32.mrb[0].mxu0
  %1285 = vmatprep.mubr.f32.mxu0 0.0
  %1286 = vmatmul.mubr.f32.gmra.mrb[0].mxu0 %v540
  %v1287 = vpop.f32.mrb[0].mxu0
  %v1288 = vadd.f32 %v167, %v1287
  %v1289 = vpop.f32.mrb[0].mxu0
  %1290 = vmatprep.mubr.f32.mxu0 0.0
  %1291 = vmatmul.mubr.f32.gmra.mrb[0].mxu0 %v543
  %v1292 = vpop.f32.mrb[0].mxu0
  %v1293 = vadd.f32 %v167, %v1292
  %v1294 = vpop.f32.mrb[0].mxu0
  %1295 = vmatprep.mubr.f32.mxu0 0.0
  %1296 = vmatmul.mubr.f32.gmra.mrb[0].mxu0 %v546
  %v1297 = vpop.f32.mrb[0].mxu0
  %v1298 = vadd.f32 %v167, %v1297
  %v1299 = vpop.f32.mrb[0].mxu0
  %1300 = vmatprep.mubr.f32.mxu0 0.0
  %1301 = vmatmul.mubr.f32.gmra.mrb[0].mxu0 %v549
  %v1302 = vpop.f32.mrb[0].mxu0
  %v1303 = vadd.f32 %v167, %v1302
  %v1304 = vpop.f32.mrb[0].mxu0
  %1305 = vmatprep.mubr.f32.mxu0 0.0
  %1306 = vmatmul.mubr.f32.gmra.mrb[0].mxu0 %v552
  %v1307 = vpop.f32.mrb[0].mxu0
  %v1308 = vadd.f32 %v167, %v1307
  %v1309 = vpop.f32.mrb[0].mxu0
  %1310 = vmatprep.mubr.f32.mxu0 0.0
  %1311 = vmatmul.mubr.f32.gmra.mrb[0].mxu0 %v555
  %v1312 = vpop.f32.mrb[0].mxu0
  %v1313 = vadd.f32 %v167, %v1312
  %v1314 = vpop.f32.mrb[0].mxu0
  %1315 = vmatprep.mubr.f32.mxu0 0.0
  %1316 = vmatmul.mubr.f32.gmra.mrb[0].mxu0 %v558
  %v1317 = vpop.f32.mrb[0].mxu0
  %v1318 = vadd.f32 %v167, %v1317
  %v1319 = vpop.f32.mrb[0].mxu0
  %1320 = vmatprep.mubr.f32.mxu0 0.0
  %1321 = vmatmul.mubr.f32.gmra.mrb[0].mxu0 %v561
  %v1322 = vpop.f32.mrb[0].mxu0
  %v1323 = vadd.f32 %v167, %v1322
  %v1324 = vpop.f32.mrb[0].mxu0
  %1325 = vmatprep.mubr.f32.mxu0 0.0
  %1326 = vmatmul.mubr.f32.gmra.mrb[0].mxu0 %v564
  %v1327 = vpop.f32.mrb[0].mxu0
  %v1328 = vadd.f32 %v167, %v1327
  %v1329 = vpop.f32.mrb[0].mxu0
  %1330 = vmatprep.mubr.f32.mxu0 0.0
  %1331 = vmatmul.mubr.f32.gmra.mrb[0].mxu0 %v567
  %v1332 = vpop.f32.mrb[0].mxu0
  %v1333 = vadd.f32 %v167, %v1332
  %v1334 = vpop.f32.mrb[0].mxu0
  %1335 = vmatprep.mubr.f32.mxu0 0.0
  %1336 = vmatmul.mubr.f32.gmra.mrb[0].mxu0 %v570
  %v1337 = vpop.f32.mrb[0].mxu0
  %v1338 = vadd.f32 %v167, %v1337
  %v1339 = vpop.f32.mrb[0].mxu0
  %1340 = vmatprep.mubr.f32.mxu0 0.0
  %1341 = vmatmul.mubr.f32.gmra.mrb[0].mxu0 %v573
  %v1342 = vpop.f32.mrb[0].mxu0
  %v1343 = vadd.f32 %v167, %v1342
  %v1344 = vpop.f32.mrb[0].mxu0
  %1345 = vmatprep.mubr.f32.mxu0 0.0
  %1346 = vmatmul.mubr.f32.gmra.mrb[0].mxu0 %v576
  %v1347 = vpop.f32.mrb[0].mxu0
  %v1348 = vadd.f32 %v167, %v1347
  %v1349 = vpop.f32.mrb[0].mxu0
  %1350 = vmatprep.mubr.f32.mxu0 0.0
  %1351 = vmatmul.mubr.f32.gmra.mrb[0].mxu0 %v579
  %v1352 = vpop.f32.mrb[0].mxu0
  %v1353 = vadd.f32 %v167, %v1352
  %v1354 = vpop.f32.mrb[0].mxu0
  %1355 = vmatprep.mubr.f32.mxu0 0.0
  %1356 = vmatmul.mubr.f32.gmra.mrb[0].mxu0 %v582
  %v1357 = vpop.f32.mrb[0].mxu0
  %v1358 = vadd.f32 %v167, %v1357
  %v1359 = vpop.f32.mrb[0].mxu0
  %1360 = vmatprep.mubr.f32.mxu0 0.0
  %1361 = vmatmul.mubr.f32.gmra.mrb[0].mxu0 %v585
  %v1362 = vpop.f32.mrb[0].mxu0
  %v1363 = vadd.f32 %v167, %v1362
  %v1364 = vpop.f32.mrb[0].mxu0
  %1365 = vmatprep.mubr.f32.mxu0 0.0
  %1366 = vmatmul.mubr.f32.gmra.mrb[0].mxu0 %v588
  %v1367 = vpop.f32.mrb[0].mxu0
  %v1368 = vadd.f32 %v167, %v1367
  %v1369 = vpop.f32.mrb[0].mxu0
  %1370 = vmatprep.mubr.f32.mxu0 0.0
  %1371 = vmatmul.mubr.f32.gmra.mrb[0].mxu0 %v591
  %v1372 = vpop.f32.mrb[0].mxu0
  %v1373 = vadd.f32 %v167, %v1372
  %v1374 = vpop.f32.mrb[0].mxu0
  %1375 = vmatprep.mubr.f32.mxu0 0.0
  %1376 = vmatmul.mubr.f32.gmra.mrb[0].mxu0 %v594
  %v1377 = vpop.f32.mrb[0].mxu0
  %v1378 = vadd.f32 %v167, %v1377
  %v1379 = vpop.f32.mrb[0].mxu0
  %1380 = vmatprep.mubr.f32.mxu0 0.0
  %1381 = vmatmul.mubr.f32.gmra.mrb[0].mxu0 %v597
  %v1382 = vpop.f32.mrb[0].mxu0
  %v1383 = vadd.f32 %v167, %v1382
  %v1384 = vpop.f32.mrb[0].mxu0
  %1385 = vmatprep.mubr.f32.mxu0 0.0
  %1386 = vmatmul.mubr.f32.gmra.mrb[0].mxu0 %v600
  %v1387 = vpop.f32.mrb[0].mxu0
  %v1388 = vadd.f32 %v167, %v1387
  %v1389 = vpop.f32.mrb[0].mxu0
  %1390 = vdwg.mxu0
  %v1391 = vmax.f32 %v673, 0.0
  %v1392 = vmax.f32 %v678, 0.0
  %v1393 = vmax.f32 %v683, 0.0
  %v1394 = vmax.f32 %v688, 0.0
  %v1395 = vmax.f32 %v693, 0.0
  %v1396 = vmax.f32 %v698, 0.0
  %v1397 = vmax.f32 %v703, 0.0
  %v1398 = vmax.f32 %v708, 0.0
  %v1399 = vmax.f32 %v713, 0.0
  %v1400 = vmax.f32 %v718, 0.0
  %v1401 = vmax.f32 %v723, 0.0
  %v1402 = vmax.f32 %v728, 0.0
  %v1403 = vmax.f32 %v733, 0.0
  %v1404 = vmax.f32 %v738, 0.0
  %v1405 = vmax.f32 %v743, 0.0
  %v1406 = vmax.f32 %v748, 0.0
  %v1407 = vmax.f32 %v753, 0.0
  %v1408 = vmax.f32 %v758, 0.0
  %v1409 = vmax.f32 %v763, 0.0
  %v1410 = vmax.f32 %v768, 0.0
  %v1411 = vmax.f32 %v773, 0.0
  %v1412 = vmax.f32 %v778, 0.0
  %v1413 = vmax.f32 %v783, 0.0
  %v1414 = vmax.f32 %v788, 0.0
  %v1415 = vmax.f32 %v793, 0.0
  %v1416 = vmax.f32 %v798, 0.0
  %v1417 = vmax.f32 %v803, 0.0
  %v1418 = vmax.f32 %v808, 0.0
  %v1419 = vmax.f32 %v813, 0.0
  %v1420 = vmax.f32 %v818, 0.0
  %v1421 = vmax.f32 %v823, 0.0
  %v1422 = vmax.f32 %v828, 0.0
  %v1423 = vmax.f32 %v833, 0.0
  %v1424 = vmax.f32 %v838, 0.0
  %v1425 = vmax.f32 %v843, 0.0
  %v1426 = vmax.f32 %v848, 0.0
  %v1427 = vmax.f32 %v853, 0.0
  %v1428 = vmax.f32 %v858, 0.0
  %v1429 = vmax.f32 %v863, 0.0
  %v1430 = vmax.f32 %v868, 0.0
  %v1431 = vmax.f32 %v873, 0.0
  %v1432 = vmax.f32 %v878, 0.0
  %v1433 = vmax.f32 %v883, 0.0
  %v1434 = vmax.f32 %v888, 0.0
  %v1435 = vmax.f32 %v893, 0.0
  %v1436 = vmax.f32 %v898, 0.0
  %v1437 = vmax.f32 %v903, 0.0
  %v1438 = vmax.f32 %v908, 0.0
  %v1439 = vmax.f32 %v913, 0.0
  %v1440 = vmax.f32 %v918, 0.0
  %v1441 = vmax.f32 %v923, 0.0
  %v1442 = vmax.f32 %v928, 0.0
  %v1443 = vmax.f32 %v933, 0.0
  %v1444 = vmax.f32 %v938, 0.0
  %v1445 = vmax.f32 %v943, 0.0
  %v1446 = vmax.f32 %v948, 0.0
  %v1447 = vmax.f32 %v953, 0.0
  %v1448 = vmax.f32 %v958, 0.0
  %v1449 = vmax.f32 %v963, 0.0
  %v1450 = vmax.f32 %v968, 0.0
  %v1451 = vmax.f32 %v973, 0.0
  %v1452 = vmax.f32 %v978, 0.0
  %v1453 = vmax.f32 %v983, 0.0
  %v1454 = vmax.f32 %v988, 0.0
  %v1455 = vmax.f32 %v993, 0.0
  %v1456 = vmax.f32 %v998, 0.0
  %v1457 = vmax.f32 %v1003, 0.0
  %v1458 = vmax.f32 %v1008, 0.0
  %v1459 = vmax.f32 %v1013, 0.0
  %v1460 = vmax.f32 %v1018, 0.0
  %v1461 = vmax.f32 %v1023, 0.0
  %v1462 = vmax.f32 %v1028, 0.0
  %v1463 = vmax.f32 %v1033, 0.0
  %v1464 = vmax.f32 %v1038, 0.0
  %v1465 = vmax.f32 %v1043, 0.0
  %v1466 = vmax.f32 %v1048, 0.0
  %v1467 = vmax.f32 %v1053, 0.0
  %v1468 = vmax.f32 %v1058, 0.0
  %v1469 = vmax.f32 %v1063, 0.0
  %v1470 = vmax.f32 %v1068, 0.0
  %v1471 = vmax.f32 %v1073, 0.0
  %v1472 = vmax.f32 %v1078, 0.0
  %v1473 = vmax.f32 %v1083, 0.0
  %v1474 = vmax.f32 %v1088, 0.0
  %v1475 = vmax.f32 %v1093, 0.0
  %v1476 = vmax.f32 %v1098, 0.0
  %v1477 = vmax.f32 %v1103, 0.0
  %v1478 = vmax.f32 %v1108, 0.0
  %v1479 = vmax.f32 %v1113, 0.0
  %v1480 = vmax.f32 %v1118, 0.0
  %v1481 = vmax.f32 %v1123, 0.0
  %v1482 = vmax.f32 %v1128, 0.0
  %v1483 = vmax.f32 %v1133, 0.0
  %v1484 = vmax.f32 %v1138, 0.0
  %v1485 = vmax.f32 %v1143, 0.0
  %v1486 = vmax.f32 %v1148, 0.0
  %v1487 = vmax.f32 %v1153, 0.0
  %v1488 = vmax.f32 %v1158, 0.0
  %v1489 = vmax.f32 %v1163, 0.0
  %v1490 = vmax.f32 %v1168, 0.0
  %v1491 = vmax.f32 %v1173, 0.0
  %v1492 = vmax.f32 %v1178, 0.0
  %v1493 = vmax.f32 %v1183, 0.0
  %v1494 = vmax.f32 %v1188, 0.0
  %v1495 = vmax.f32 %v1193, 0.0
  %v1496 = vmax.f32 %v1198, 0.0
  %v1497 = vmax.f32 %v1203, 0.0
  %v1498 = vmax.f32 %v1208, 0.0
  %v1499 = vmax.f32 %v1213, 0.0
  %v1500 = vmax.f32 %v1218, 0.0
  %v1501 = vmax.f32 %v1223, 0.0
  %v1502 = vmax.f32 %v1228, 0.0
  %v1503 = vmax.f32 %v1233, 0.0
  %v1504 = vmax.f32 %v1238, 0.0
  %v1505 = vmax.f32 %v1243, 0.0
  %v1506 = vmax.f32 %v1248, 0.0
  %v1507 = vmax.f32 %v1253, 0.0
  %v1508 = vmax.f32 %v1258, 0.0
  %v1509 = vmax.f32 %v1263, 0.0
  %v1510 = vmax.f32 %v1268, 0.0
  %v1511 = vmax.f32 %v1273, 0.0
  %v1512 = vmax.f32 %v1278, 0.0
  %v1513 = vmax.f32 %v1283, 0.0
  %v1514 = vmax.f32 %v1288, 0.0
  %v1515 = vmax.f32 %v1293, 0.0
  %v1516 = vmax.f32 %v1298, 0.0
  %v1517 = vmax.f32 %v1303, 0.0
  %v1518 = vmax.f32 %v1308, 0.0
  %v1519 = vmax.f32 %v1313, 0.0
  %v1520 = vmax.f32 %v1318, 0.0
  %v1521 = vmax.f32 %v1323, 0.0
  %v1522 = vmax.f32 %v1328, 0.0
  %v1523 = vmax.f32 %v1333, 0.0
  %v1524 = vmax.f32 %v1338, 0.0
  %v1525 = vmax.f32 %v1343, 0.0
  %v1526 = vmax.f32 %v1348, 0.0
  %v1527 = vmax.f32 %v1353, 0.0
  %v1528 = vmax.f32 %v1358, 0.0
  %v1529 = vmax.f32 %v1363, 0.0
  %v1530 = vmax.f32 %v1368, 0.0
  %v1531 = vmax.f32 %v1373, 0.0
  %v1532 = vmax.f32 %v1378, 0.0
  %v1533 = vmax.f32 %v1383, 0.0
  %v1534 = vmax.f32 %v1388, 0.0
  %vm1535 = vcmask 48128
  %v1536 = vsel %vm1535, %v1391, -inf
  %v1537 = vsel %vm1535, %v1394, -inf
  %v1538 = vmax.f32 %v1536, %v1537
  %v1539 = vsel %vm1535, %v1392, -inf
  %v1540 = vsel %vm1535, %v1395, -inf
  %v1541 = vmax.f32 %v1539, %v1540
  %v1542 = vsel %vm1535, %v1393, -inf
  %v1543 = vsel %vm1535, %v1396, -inf
  %v1544 = vmax.f32 %v1542, %v1543
  %v1545 = vsel %vm1535, %v1397, -inf
  %v1546 = vsel %vm1535, %v1400, -inf
  %v1547 = vmax.f32 %v1545, %v1546
  %v1548 = vsel %vm1535, %v1398, -inf
  %v1549 = vsel %vm1535, %v1401, -inf
  %v1550 = vmax.f32 %v1548, %v1549
  %v1551 = vsel %vm1535, %v1399, -inf
  %v1552 = vsel %vm1535, %v1402, -inf
  %v1553 = vmax.f32 %v1551, %v1552
  %v1554 = vsel %vm1535, %v1403, -inf
  %v1555 = vsel %vm1535, %v1406, -inf
  %v1556 = vmax.f32 %v1554, %v1555
  %v1557 = vsel %vm1535, %v1404, -inf
  %v1558 = vsel %vm1535, %v1407, -inf
  %v1559 = vmax.f32 %v1557, %v1558
  %v1560 = vsel %vm1535, %v1405, -inf
  %v1561 = vsel %vm1535, %v1408, -inf
  %v1562 = vmax.f32 %v1560, %v1561
  %v1563 = vsel %vm1535, %v1409, -inf
  %v1564 = vsel %vm1535, %v1412, -inf
  %v1565 = vmax.f32 %v1563, %v1564
  %v1566 = vsel %vm1535, %v1410, -inf
  %v1567 = vsel %vm1535, %v1413, -inf
  %v1568 = vmax.f32 %v1566, %v1567
  %v1569 = vsel %vm1535, %v1411, -inf
  %v1570 = vsel %vm1535, %v1414, -inf
  %v1571 = vmax.f32 %v1569, %v1570
  %v1572 = vsel %vm1535, %v1415, -inf
  %v1573 = vsel %vm1535, %v1418, -inf
  %v1574 = vmax.f32 %v1572, %v1573
  %v1575 = vsel %vm1535, %v1416, -inf
  %v1576 = vsel %vm1535, %v1419, -inf
  %v1577 = vmax.f32 %v1575, %v1576
  %v1578 = vsel %vm1535, %v1417, -inf
  %v1579 = vsel %vm1535, %v1420, -inf
  %v1580 = vmax.f32 %v1578, %v1579
  %v1581 = vsel %vm1535, %v1421, -inf
  %v1582 = vsel %vm1535, %v1424, -inf
  %v1583 = vmax.f32 %v1581, %v1582
  %v1584 = vsel %vm1535, %v1422, -inf
  %v1585 = vsel %vm1535, %v1425, -inf
  %v1586 = vmax.f32 %v1584, %v1585
  %v1587 = vsel %vm1535, %v1423, -inf
  %v1588 = vsel %vm1535, %v1426, -inf
  %v1589 = vmax.f32 %v1587, %v1588
  %v1590 = vsel %vm1535, %v1427, -inf
  %v1591 = vsel %vm1535, %v1430, -inf
  %v1592 = vmax.f32 %v1590, %v1591
  %v1593 = vsel %vm1535, %v1428, -inf
  %v1594 = vsel %vm1535, %v1431, -inf
  %v1595 = vmax.f32 %v1593, %v1594
  %v1596 = vsel %vm1535, %v1429, -inf
  %v1597 = vsel %vm1535, %v1432, -inf
  %v1598 = vmax.f32 %v1596, %v1597
  %v1599 = vsel %vm1535, %v1433, -inf
  %v1600 = vsel %vm1535, %v1436, -inf
  %v1601 = vmax.f32 %v1599, %v1600
  %v1602 = vsel %vm1535, %v1434, -inf
  %v1603 = vsel %vm1535, %v1437, -inf
  %v1604 = vmax.f32 %v1602, %v1603
  %v1605 = vsel %vm1535, %v1435, -inf
  %v1606 = vsel %vm1535, %v1438, -inf
  %v1607 = vmax.f32 %v1605, %v1606
  %v1608 = vsel %vm1535, %v1439, -inf
  %v1609 = vsel %vm1535, %v1442, -inf
  %v1610 = vmax.f32 %v1608, %v1609
  %v1611 = vsel %vm1535, %v1440, -inf
  %v1612 = vsel %vm1535, %v1443, -inf
  %v1613 = vmax.f32 %v1611, %v1612
  %v1614 = vsel %vm1535, %v1441, -inf
  %v1615 = vsel %vm1535, %v1444, -inf
  %v1616 = vmax.f32 %v1614, %v1615
  %v1617 = vsel %vm1535, %v1445, -inf
  %v1618 = vsel %vm1535, %v1448, -inf
  %v1619 = vmax.f32 %v1617, %v1618
  %v1620 = vsel %vm1535, %v1446, -inf
  %v1621 = vsel %vm1535, %v1449, -inf
  %v1622 = vmax.f32 %v1620, %v1621
  %v1623 = vsel %vm1535, %v1447, -inf
  %v1624 = vsel %vm1535, %v1450, -inf
  %v1625 = vmax.f32 %v1623, %v1624
  %v1626 = vsel %vm1535, %v1451, -inf
  %v1627 = vsel %vm1535, %v1454, -inf
  %v1628 = vmax.f32 %v1626, %v1627
  %v1629 = vsel %vm1535, %v1452, -inf
  %v1630 = vsel %vm1535, %v1455, -inf
  %v1631 = vmax.f32 %v1629, %v1630
  %v1632 = vsel %vm1535, %v1453, -inf
  %v1633 = vsel %vm1535, %v1456, -inf
  %v1634 = vmax.f32 %v1632, %v1633
  %v1635 = vsel %vm1535, %v1457, -inf
  %v1636 = vsel %vm1535, %v1460, -inf
  %v1637 = vmax.f32 %v1635, %v1636
  %v1638 = vsel %vm1535, %v1458, -inf
  %v1639 = vsel %vm1535, %v1461, -inf
  %v1640 = vmax.f32 %v1638, %v1639
  %v1641 = vsel %vm1535, %v1459, -inf
  %v1642 = vsel %vm1535, %v1462, -inf
  %v1643 = vmax.f32 %v1641, %v1642
  %v1644 = vsel %vm1535, %v1463, -inf
  %v1645 = vsel %vm1535, %v1466, -inf
  %v1646 = vmax.f32 %v1644, %v1645
  %v1647 = vsel %vm1535, %v1464, -inf
  %v1648 = vsel %vm1535, %v1467, -inf
  %v1649 = vmax.f32 %v1647, %v1648
  %v1650 = vsel %vm1535, %v1465, -inf
  %v1651 = vsel %vm1535, %v1468, -inf
  %v1652 = vmax.f32 %v1650, %v1651
  %v1653 = vsel %vm1535, %v1469, -inf
  %v1654 = vsel %vm1535, %v1472, -inf
  %v1655 = vmax.f32 %v1653, %v1654
  %v1656 = vsel %vm1535, %v1470, -inf
  %v1657 = vsel %vm1535, %v1473, -inf
  %v1658 = vmax.f32 %v1656, %v1657
  %v1659 = vsel %vm1535, %v1471, -inf
  %v1660 = vsel %vm1535, %v1474, -inf
  %v1661 = vmax.f32 %v1659, %v1660
  %v1662 = vsel %vm1535, %v1475, -inf
  %v1663 = vsel %vm1535, %v1478, -inf
  %v1664 = vmax.f32 %v1662, %v1663
  %v1665 = vsel %vm1535, %v1476, -inf
  %v1666 = vsel %vm1535, %v1479, -inf
  %v1667 = vmax.f32 %v1665, %v1666
  %v1668 = vsel %vm1535, %v1477, -inf
  %v1669 = vsel %vm1535, %v1480, -inf
  %v1670 = vmax.f32 %v1668, %v1669
  %v1671 = vsel %vm1535, %v1481, -inf
  %v1672 = vsel %vm1535, %v1484, -inf
  %v1673 = vmax.f32 %v1671, %v1672
  %v1674 = vsel %vm1535, %v1482, -inf
  %v1675 = vsel %vm1535, %v1485, -inf
  %v1676 = vmax.f32 %v1674, %v1675
  %v1677 = vsel %vm1535, %v1483, -inf
  %v1678 = vsel %vm1535, %v1486, -inf
  %v1679 = vmax.f32 %v1677, %v1678
  %v1680 = vsel %vm1535, %v1487, -inf
  %v1681 = vsel %vm1535, %v1490, -inf
  %v1682 = vmax.f32 %v1680, %v1681
  %v1683 = vsel %vm1535, %v1488, -inf
  %v1684 = vsel %vm1535, %v1491, -inf
  %v1685 = vmax.f32 %v1683, %v1684
  %v1686 = vsel %vm1535, %v1489, -inf
  %v1687 = vsel %vm1535, %v1492, -inf
  %v1688 = vmax.f32 %v1686, %v1687
  %v1689 = vsel %vm1535, %v1493, -inf
  %v1690 = vsel %vm1535, %v1496, -inf
  %v1691 = vmax.f32 %v1689, %v1690
  %v1692 = vsel %vm1535, %v1494, -inf
  %v1693 = vsel %vm1535, %v1497, -inf
  %v1694 = vmax.f32 %v1692, %v1693
  %v1695 = vsel %vm1535, %v1495, -inf
  %v1696 = vsel %vm1535, %v1498, -inf
  %v1697 = vmax.f32 %v1695, %v1696
  %v1698 = vsel %vm1535, %v1499, -inf
  %v1699 = vsel %vm1535, %v1502, -inf
  %v1700 = vmax.f32 %v1698, %v1699
  %v1701 = vsel %vm1535, %v1500, -inf
  %v1702 = vsel %vm1535, %v1503, -inf
  %v1703 = vmax.f32 %v1701, %v1702
  %v1704 = vsel %vm1535, %v1501, -inf
  %v1705 = vsel %vm1535, %v1504, -inf
  %v1706 = vmax.f32 %v1704, %v1705
  %v1707 = vsel %vm1535, %v1505, -inf
  %v1708 = vsel %vm1535, %v1508, -inf
  %v1709 = vmax.f32 %v1707, %v1708
  %v1710 = vsel %vm1535, %v1506, -inf
  %v1711 = vsel %vm1535, %v1509, -inf
  %v1712 = vmax.f32 %v1710, %v1711
  %v1713 = vsel %vm1535, %v1507, -inf
  %v1714 = vsel %vm1535, %v1510, -inf
  %v1715 = vmax.f32 %v1713, %v1714
  %v1716 = vsel %vm1535, %v1511, -inf
  %v1717 = vsel %vm1535, %v1514, -inf
  %v1718 = vmax.f32 %v1716, %v1717
  %v1719 = vsel %vm1535, %v1512, -inf
  %v1720 = vsel %vm1535, %v1515, -inf
  %v1721 = vmax.f32 %v1719, %v1720
  %v1722 = vsel %vm1535, %v1513, -inf
  %v1723 = vsel %vm1535, %v1516, -inf
  %v1724 = vmax.f32 %v1722, %v1723
  %v1725 = vsel %vm1535, %v1517, -inf
  %v1726 = vsel %vm1535, %v1520, -inf
  %v1727 = vmax.f32 %v1725, %v1726
  %v1728 = vsel %vm1535, %v1518, -inf
  %v1729 = vsel %vm1535, %v1521, -inf
  %v1730 = vmax.f32 %v1728, %v1729
  %v1731 = vsel %vm1535, %v1519, -inf
  %v1732 = vsel %vm1535, %v1522, -inf
  %v1733 = vmax.f32 %v1731, %v1732
  %v1734 = vsel %vm1535, %v1523, -inf
  %v1735 = vsel %vm1535, %v1526, -inf
  %v1736 = vmax.f32 %v1734, %v1735
  %v1737 = vsel %vm1535, %v1524, -inf
  %v1738 = vsel %vm1535, %v1527, -inf
  %v1739 = vmax.f32 %v1737, %v1738
  %v1740 = vsel %vm1535, %v1525, -inf
  %v1741 = vsel %vm1535, %v1528, -inf
  %v1742 = vmax.f32 %v1740, %v1741
  %v1743 = vsel %vm1535, %v1529, -inf
  %v1744 = vsel %vm1535, %v1532, -inf
  %v1745 = vmax.f32 %v1743, %v1744
  %v1746 = vsel %vm1535, %v1530, -inf
  %v1747 = vsel %vm1535, %v1533, -inf
  %v1748 = vmax.f32 %v1746, %v1747
  %v1749 = vsel %vm1535, %v1531, -inf
  %v1750 = vsel %vm1535, %v1534, -inf
  %v1751 = vmax.f32 %v1749, %v1750
  %v1824 = vcombine.high %v1538, %v1538
  %v1826 = vunpack.c.l.s4 1983009808
  %v1827 = vunpack.c.0.s8 %v1826
  %v1828 = vlaneseq
  %v1829 = vshrl.u32 %v1828, 7
  %v1830 = vsub.s32 %v1827, %v1829
  %v1831 = vrot.slane %v1538, %v1830
  %v1833 = vunpack.c.l.s4 1983009808
  %v1834 = vunpack.c.0.s8 %v1833
  %v1835 = vlaneseq
  %v1836 = vshrl.u32 %v1835, 7
  %v1837 = vsub.s32 %v1834, %v1836
  %v1838 = vrot.slane %v1824, %v1837
  %v1839 = vcombine.high %v1831, %v1831
  %v1840 = vcombine.high %v1838, %v1838
  %v1841 = vcombine.high %v1541, %v1541
  %v1843 = vunpack.c.l.s4 1983009808
  %v1844 = vunpack.c.0.s8 %v1843
  %v1845 = vlaneseq
  %v1846 = vshrl.u32 %v1845, 7
  %v1847 = vsub.s32 %v1844, %v1846
  %v1848 = vrot.slane %v1541, %v1847
  %v1850 = vunpack.c.l.s4 1983009808
  %v1851 = vunpack.c.0.s8 %v1850
  %v1852 = vlaneseq
  %v1853 = vshrl.u32 %v1852, 7
  %v1854 = vsub.s32 %v1851, %v1853
  %v1855 = vrot.slane %v1841, %v1854
  %v1856 = vcombine.high %v1848, %v1848
  %v1857 = vcombine.high %v1855, %v1855
  %v1858 = vcombine.high %v1544, %v1544
  %v1860 = vunpack.c.l.s4 1983009808
  %v1861 = vunpack.c.0.s8 %v1860
  %v1862 = vlaneseq
  %v1863 = vshrl.u32 %v1862, 7
  %v1864 = vsub.s32 %v1861, %v1863
  %v1865 = vrot.slane %v1544, %v1864
  %v1867 = vunpack.c.l.s4 1983009808
  %v1868 = vunpack.c.0.s8 %v1867
  %v1869 = vlaneseq
  %v1870 = vshrl.u32 %v1869, 7
  %v1871 = vsub.s32 %v1868, %v1870
  %v1872 = vrot.slane %v1858, %v1871
  %v1873 = vcombine.high %v1865, %v1865
  %v1874 = vcombine.high %v1872, %v1872
  %v1875 = vcombine.high %v1547, %v1547
  %v1877 = vunpack.c.l.s4 1983009808
  %v1878 = vunpack.c.0.s8 %v1877
  %v1879 = vlaneseq
  %v1880 = vshrl.u32 %v1879, 7
  %v1881 = vsub.s32 %v1878, %v1880
  %v1882 = vrot.slane %v1547, %v1881
  %v1884 = vunpack.c.l.s4 1983009808
  %v1885 = vunpack.c.0.s8 %v1884
  %v1886 = vlaneseq
  %v1887 = vshrl.u32 %v1886, 7
  %v1888 = vsub.s32 %v1885, %v1887
  %v1889 = vrot.slane %v1875, %v1888
  %v1890 = vcombine.high %v1882, %v1882
  %v1891 = vcombine.high %v1889, %v1889
  %v1892 = vcombine.high %v1550, %v1550
  %v1894 = vunpack.c.l.s4 1983009808
  %v1895 = vunpack.c.0.s8 %v1894
  %v1896 = vlaneseq
  %v1897 = vshrl.u32 %v1896, 7
  %v1898 = vsub.s32 %v1895, %v1897
  %v1899 = vrot.slane %v1550, %v1898
  %v1901 = vunpack.c.l.s4 1983009808
  %v1902 = vunpack.c.0.s8 %v1901
  %v1903 = vlaneseq
  %v1904 = vshrl.u32 %v1903, 7
  %v1905 = vsub.s32 %v1902, %v1904
  %v1906 = vrot.slane %v1892, %v1905
  %v1907 = vcombine.high %v1899, %v1899
  %v1908 = vcombine.high %v1906, %v1906
  %v1909 = vcombine.high %v1553, %v1553
  %v1911 = vunpack.c.l.s4 1983009808
  %v1912 = vunpack.c.0.s8 %v1911
  %v1913 = vlaneseq
  %v1914 = vshrl.u32 %v1913, 7
  %v1915 = vsub.s32 %v1912, %v1914
  %v1916 = vrot.slane %v1553, %v1915
  %v1918 = vunpack.c.l.s4 1983009808
  %v1919 = vunpack.c.0.s8 %v1918
  %v1920 = vlaneseq
  %v1921 = vshrl.u32 %v1920, 7
  %v1922 = vsub.s32 %v1919, %v1921
  %v1923 = vrot.slane %v1909, %v1922
  %v1924 = vcombine.high %v1916, %v1916
  %v1925 = vcombine.high %v1923, %v1923
  %v1926 = vcombine.high %v1556, %v1556
  %v1928 = vunpack.c.l.s4 1983009808
  %v1929 = vunpack.c.0.s8 %v1928
  %v1930 = vlaneseq
  %v1931 = vshrl.u32 %v1930, 7
  %v1932 = vsub.s32 %v1929, %v1931
  %v1933 = vrot.slane %v1556, %v1932
  %v1935 = vunpack.c.l.s4 1983009808
  %v1936 = vunpack.c.0.s8 %v1935
  %v1937 = vlaneseq
  %v1938 = vshrl.u32 %v1937, 7
  %v1939 = vsub.s32 %v1936, %v1938
  %v1940 = vrot.slane %v1926, %v1939
  %v1941 = vcombine.high %v1933, %v1933
  %v1942 = vcombine.high %v1940, %v1940
  %v1943 = vcombine.high %v1559, %v1559
  %v1945 = vunpack.c.l.s4 1983009808
  %v1946 = vunpack.c.0.s8 %v1945
  %v1947 = vlaneseq
  %v1948 = vshrl.u32 %v1947, 7
  %v1949 = vsub.s32 %v1946, %v1948
  %v1950 = vrot.slane %v1559, %v1949
  %v1952 = vunpack.c.l.s4 1983009808
  %v1953 = vunpack.c.0.s8 %v1952
  %v1954 = vlaneseq
  %v1955 = vshrl.u32 %v1954, 7
  %v1956 = vsub.s32 %v1953, %v1955
  %v1957 = vrot.slane %v1943, %v1956
  %v1958 = vcombine.high %v1950, %v1950
  %v1959 = vcombine.high %v1957, %v1957
  %v1960 = vcombine.high %v1562, %v1562
  %v1962 = vunpack.c.l.s4 1983009808
  %v1963 = vunpack.c.0.s8 %v1962
  %v1964 = vlaneseq
  %v1965 = vshrl.u32 %v1964, 7
  %v1966 = vsub.s32 %v1963, %v1965
  %v1967 = vrot.slane %v1562, %v1966
  %v1969 = vunpack.c.l.s4 1983009808
  %v1970 = vunpack.c.0.s8 %v1969
  %v1971 = vlaneseq
  %v1972 = vshrl.u32 %v1971, 7
  %v1973 = vsub.s32 %v1970, %v1972
  %v1974 = vrot.slane %v1960, %v1973
  %v1975 = vcombine.high %v1967, %v1967
  %v1976 = vcombine.high %v1974, %v1974
  %v1977 = vcombine.high %v1565, %v1565
  %v1979 = vunpack.c.l.s4 1983009808
  %v1980 = vunpack.c.0.s8 %v1979
  %v1981 = vlaneseq
  %v1982 = vshrl.u32 %v1981, 7
  %v1983 = vsub.s32 %v1980, %v1982
  %v1984 = vrot.slane %v1565, %v1983
  %v1986 = vunpack.c.l.s4 1983009808
  %v1987 = vunpack.c.0.s8 %v1986
  %v1988 = vlaneseq
  %v1989 = vshrl.u32 %v1988, 7
  %v1990 = vsub.s32 %v1987, %v1989
  %v1991 = vrot.slane %v1977, %v1990
  %v1992 = vcombine.high %v1984, %v1984
  %v1993 = vcombine.high %v1991, %v1991
  %v1994 = vcombine.high %v1568, %v1568
  %v1996 = vunpack.c.l.s4 1983009808
  %v1997 = vunpack.c.0.s8 %v1996
  %v1998 = vlaneseq
  %v1999 = vshrl.u32 %v1998, 7
  %v2000 = vsub.s32 %v1997, %v1999
  %v2001 = vrot.slane %v1568, %v2000
  %v2003 = vunpack.c.l.s4 1983009808
  %v2004 = vunpack.c.0.s8 %v2003
  %v2005 = vlaneseq
  %v2006 = vshrl.u32 %v2005, 7
  %v2007 = vsub.s32 %v2004, %v2006
  %v2008 = vrot.slane %v1994, %v2007
  %v2009 = vcombine.high %v2001, %v2001
  %v2010 = vcombine.high %v2008, %v2008
  %v2011 = vcombine.high %v1571, %v1571
  %v2013 = vunpack.c.l.s4 1983009808
  %v2014 = vunpack.c.0.s8 %v2013
  %v2015 = vlaneseq
  %v2016 = vshrl.u32 %v2015, 7
  %v2017 = vsub.s32 %v2014, %v2016
  %v2018 = vrot.slane %v1571, %v2017
  %v2020 = vunpack.c.l.s4 1983009808
  %v2021 = vunpack.c.0.s8 %v2020
  %v2022 = vlaneseq
  %v2023 = vshrl.u32 %v2022, 7
  %v2024 = vsub.s32 %v2021, %v2023
  %v2025 = vrot.slane %v2011, %v2024
  %v2026 = vcombine.high %v2018, %v2018
  %v2027 = vcombine.high %v2025, %v2025
  %v2028 = vcombine.high %v1574, %v1574
  %v2030 = vunpack.c.l.s4 1983009808
  %v2031 = vunpack.c.0.s8 %v2030
  %v2032 = vlaneseq
  %v2033 = vshrl.u32 %v2032, 7
  %v2034 = vsub.s32 %v2031, %v2033
  %v2035 = vrot.slane %v1574, %v2034
  %v2037 = vunpack.c.l.s4 1983009808
  %v2038 = vunpack.c.0.s8 %v2037
  %v2039 = vlaneseq
  %v2040 = vshrl.u32 %v2039, 7
  %v2041 = vsub.s32 %v2038, %v2040
  %v2042 = vrot.slane %v2028, %v2041
  %v2043 = vcombine.high %v2035, %v2035
  %v2044 = vcombine.high %v2042, %v2042
  %v2045 = vcombine.high %v1577, %v1577
  %v2047 = vunpack.c.l.s4 1983009808
  %v2048 = vunpack.c.0.s8 %v2047
  %v2049 = vlaneseq
  %v2050 = vshrl.u32 %v2049, 7
  %v2051 = vsub.s32 %v2048, %v2050
  %v2052 = vrot.slane %v1577, %v2051
  %v2054 = vunpack.c.l.s4 1983009808
  %v2055 = vunpack.c.0.s8 %v2054
  %v2056 = vlaneseq
  %v2057 = vshrl.u32 %v2056, 7
  %v2058 = vsub.s32 %v2055, %v2057
  %v2059 = vrot.slane %v2045, %v2058
  %v2060 = vcombine.high %v2052, %v2052
  %v2061 = vcombine.high %v2059, %v2059
  %v2062 = vcombine.high %v1580, %v1580
  %v2064 = vunpack.c.l.s4 1983009808
  %v2065 = vunpack.c.0.s8 %v2064
  %v2066 = vlaneseq
  %v2067 = vshrl.u32 %v2066, 7
  %v2068 = vsub.s32 %v2065, %v2067
  %v2069 = vrot.slane %v1580, %v2068
  %v2071 = vunpack.c.l.s4 1983009808
  %v2072 = vunpack.c.0.s8 %v2071
  %v2073 = vlaneseq
  %v2074 = vshrl.u32 %v2073, 7
  %v2075 = vsub.s32 %v2072, %v2074
  %v2076 = vrot.slane %v2062, %v2075
  %v2077 = vcombine.high %v2069, %v2069
  %v2078 = vcombine.high %v2076, %v2076
  %v2079 = vcombine.high %v1583, %v1583
  %v2081 = vunpack.c.l.s4 1983009808
  %v2082 = vunpack.c.0.s8 %v2081
  %v2083 = vlaneseq
  %v2084 = vshrl.u32 %v2083, 7
  %v2085 = vsub.s32 %v2082, %v2084
  %v2086 = vrot.slane %v1583, %v2085
  %v2088 = vunpack.c.l.s4 1983009808
  %v2089 = vunpack.c.0.s8 %v2088
  %v2090 = vlaneseq
  %v2091 = vshrl.u32 %v2090, 7
  %v2092 = vsub.s32 %v2089, %v2091
  %v2093 = vrot.slane %v2079, %v2092
  %v2094 = vcombine.high %v2086, %v2086
  %v2095 = vcombine.high %v2093, %v2093
  %v2096 = vcombine.high %v1586, %v1586
  %v2098 = vunpack.c.l.s4 1983009808
  %v2099 = vunpack.c.0.s8 %v2098
  %v2100 = vlaneseq
  %v2101 = vshrl.u32 %v2100, 7
  %v2102 = vsub.s32 %v2099, %v2101
  %v2103 = vrot.slane %v1586, %v2102
  %v2105 = vunpack.c.l.s4 1983009808
  %v2106 = vunpack.c.0.s8 %v2105
  %v2107 = vlaneseq
  %v2108 = vshrl.u32 %v2107, 7
  %v2109 = vsub.s32 %v2106, %v2108
  %v2110 = vrot.slane %v2096, %v2109
  %v2111 = vcombine.high %v2103, %v2103
  %v2112 = vcombine.high %v2110, %v2110
  %v2113 = vcombine.high %v1589, %v1589
  %v2115 = vunpack.c.l.s4 1983009808
  %v2116 = vunpack.c.0.s8 %v2115
  %v2117 = vlaneseq
  %v2118 = vshrl.u32 %v2117, 7
  %v2119 = vsub.s32 %v2116, %v2118
  %v2120 = vrot.slane %v1589, %v2119
  %v2122 = vunpack.c.l.s4 1983009808
  %v2123 = vunpack.c.0.s8 %v2122
  %v2124 = vlaneseq
  %v2125 = vshrl.u32 %v2124, 7
  %v2126 = vsub.s32 %v2123, %v2125
  %v2127 = vrot.slane %v2113, %v2126
  %v2128 = vcombine.high %v2120, %v2120
  %v2129 = vcombine.high %v2127, %v2127
  %v2130 = vcombine.high %v1592, %v1592
  %v2132 = vunpack.c.l.s4 1983009808
  %v2133 = vunpack.c.0.s8 %v2132
  %v2134 = vlaneseq
  %v2135 = vshrl.u32 %v2134, 7
  %v2136 = vsub.s32 %v2133, %v2135
  %v2137 = vrot.slane %v1592, %v2136
  %v2139 = vunpack.c.l.s4 1983009808
  %v2140 = vunpack.c.0.s8 %v2139
  %v2141 = vlaneseq
  %v2142 = vshrl.u32 %v2141, 7
  %v2143 = vsub.s32 %v2140, %v2142
  %v2144 = vrot.slane %v2130, %v2143
  %v2145 = vcombine.high %v2137, %v2137
  %v2146 = vcombine.high %v2144, %v2144
  %v2147 = vcombine.high %v1595, %v1595
  %v2149 = vunpack.c.l.s4 1983009808
  %v2150 = vunpack.c.0.s8 %v2149
  %v2151 = vlaneseq
  %v2152 = vshrl.u32 %v2151, 7
  %v2153 = vsub.s32 %v2150, %v2152
  %v2154 = vrot.slane %v1595, %v2153
  %v2156 = vunpack.c.l.s4 1983009808
  %v2157 = vunpack.c.0.s8 %v2156
  %v2158 = vlaneseq
  %v2159 = vshrl.u32 %v2158, 7
  %v2160 = vsub.s32 %v2157, %v2159
  %v2161 = vrot.slane %v2147, %v2160
  %v2162 = vcombine.high %v2154, %v2154
  %v2163 = vcombine.high %v2161, %v2161
  %v2164 = vcombine.high %v1598, %v1598
  %v2166 = vunpack.c.l.s4 1983009808
  %v2167 = vunpack.c.0.s8 %v2166
  %v2168 = vlaneseq
  %v2169 = vshrl.u32 %v2168, 7
  %v2170 = vsub.s32 %v2167, %v2169
  %v2171 = vrot.slane %v1598, %v2170
  %v2173 = vunpack.c.l.s4 1983009808
  %v2174 = vunpack.c.0.s8 %v2173
  %v2175 = vlaneseq
  %v2176 = vshrl.u32 %v2175, 7
  %v2177 = vsub.s32 %v2174, %v2176
  %v2178 = vrot.slane %v2164, %v2177
  %v2179 = vcombine.high %v2171, %v2171
  %v2180 = vcombine.high %v2178, %v2178
  %v2181 = vcombine.high %v1601, %v1601
  %v2183 = vunpack.c.l.s4 1983009808
  %v2184 = vunpack.c.0.s8 %v2183
  %v2185 = vlaneseq
  %v2186 = vshrl.u32 %v2185, 7
  %v2187 = vsub.s32 %v2184, %v2186
  %v2188 = vrot.slane %v1601, %v2187
  %v2190 = vunpack.c.l.s4 1983009808
  %v2191 = vunpack.c.0.s8 %v2190
  %v2192 = vlaneseq
  %v2193 = vshrl.u32 %v2192, 7
  %v2194 = vsub.s32 %v2191, %v2193
  %v2195 = vrot.slane %v2181, %v2194
  %v2196 = vcombine.high %v2188, %v2188
  %v2197 = vcombine.high %v2195, %v2195
  %v2198 = vcombine.high %v1604, %v1604
  %v2200 = vunpack.c.l.s4 1983009808
  %v2201 = vunpack.c.0.s8 %v2200
  %v2202 = vlaneseq
  %v2203 = vshrl.u32 %v2202, 7
  %v2204 = vsub.s32 %v2201, %v2203
  %v2205 = vrot.slane %v1604, %v2204
  %v2207 = vunpack.c.l.s4 1983009808
  %v2208 = vunpack.c.0.s8 %v2207
  %v2209 = vlaneseq
  %v2210 = vshrl.u32 %v2209, 7
  %v2211 = vsub.s32 %v2208, %v2210
  %v2212 = vrot.slane %v2198, %v2211
  %v2213 = vcombine.high %v2205, %v2205
  %v2214 = vcombine.high %v2212, %v2212
  %v2215 = vcombine.high %v1607, %v1607
  %v2217 = vunpack.c.l.s4 1983009808
  %v2218 = vunpack.c.0.s8 %v2217
  %v2219 = vlaneseq
  %v2220 = vshrl.u32 %v2219, 7
  %v2221 = vsub.s32 %v2218, %v2220
  %v2222 = vrot.slane %v1607, %v2221
  %v2224 = vunpack.c.l.s4 1983009808
  %v2225 = vunpack.c.0.s8 %v2224
  %v2226 = vlaneseq
  %v2227 = vshrl.u32 %v2226, 7
  %v2228 = vsub.s32 %v2225, %v2227
  %v2229 = vrot.slane %v2215, %v2228
  %v2230 = vcombine.high %v2222, %v2222
  %v2231 = vcombine.high %v2229, %v2229
  %v2232 = vcombine.high %v1610, %v1610
  %v2234 = vunpack.c.l.s4 1983009808
  %v2235 = vunpack.c.0.s8 %v2234
  %v2236 = vlaneseq
  %v2237 = vshrl.u32 %v2236, 7
  %v2238 = vsub.s32 %v2235, %v2237
  %v2239 = vrot.slane %v1610, %v2238
  %v2241 = vunpack.c.l.s4 1983009808
  %v2242 = vunpack.c.0.s8 %v2241
  %v2243 = vlaneseq
  %v2244 = vshrl.u32 %v2243, 7
  %v2245 = vsub.s32 %v2242, %v2244
  %v2246 = vrot.slane %v2232, %v2245
  %v2247 = vcombine.high %v2239, %v2239
  %v2248 = vcombine.high %v2246, %v2246
  %v2249 = vcombine.high %v1613, %v1613
  %v2251 = vunpack.c.l.s4 1983009808
  %v2252 = vunpack.c.0.s8 %v2251
  %v2253 = vlaneseq
  %v2254 = vshrl.u32 %v2253, 7
  %v2255 = vsub.s32 %v2252, %v2254
  %v2256 = vrot.slane %v1613, %v2255
  %v2258 = vunpack.c.l.s4 1983009808
  %v2259 = vunpack.c.0.s8 %v2258
  %v2260 = vlaneseq
  %v2261 = vshrl.u32 %v2260, 7
  %v2262 = vsub.s32 %v2259, %v2261
  %v2263 = vrot.slane %v2249, %v2262
  %v2264 = vcombine.high %v2256, %v2256
  %v2265 = vcombine.high %v2263, %v2263
  %v2266 = vcombine.high %v1616, %v1616
  %v2268 = vunpack.c.l.s4 1983009808
  %v2269 = vunpack.c.0.s8 %v2268
  %v2270 = vlaneseq
  %v2271 = vshrl.u32 %v2270, 7
  %v2272 = vsub.s32 %v2269, %v2271
  %v2273 = vrot.slane %v1616, %v2272
  %v2275 = vunpack.c.l.s4 1983009808
  %v2276 = vunpack.c.0.s8 %v2275
  %v2277 = vlaneseq
  %v2278 = vshrl.u32 %v2277, 7
  %v2279 = vsub.s32 %v2276, %v2278
  %v2280 = vrot.slane %v2266, %v2279
  %v2281 = vcombine.high %v2273, %v2273
  %v2282 = vcombine.high %v2280, %v2280
  %v2283 = vcombine.high %v1619, %v1619
  %v2285 = vunpack.c.l.s4 1983009808
  %v2286 = vunpack.c.0.s8 %v2285
  %v2287 = vlaneseq
  %v2288 = vshrl.u32 %v2287, 7
  %v2289 = vsub.s32 %v2286, %v2288
  %v2290 = vrot.slane %v1619, %v2289
  %v2292 = vunpack.c.l.s4 1983009808
  %v2293 = vunpack.c.0.s8 %v2292
  %v2294 = vlaneseq
  %v2295 = vshrl.u32 %v2294, 7
  %v2296 = vsub.s32 %v2293, %v2295
  %v2297 = vrot.slane %v2283, %v2296
  %v2298 = vcombine.high %v2290, %v2290
  %v2299 = vcombine.high %v2297, %v2297
  %v2300 = vcombine.high %v1622, %v1622
  %v2302 = vunpack.c.l.s4 1983009808
  %v2303 = vunpack.c.0.s8 %v2302
  %v2304 = vlaneseq
  %v2305 = vshrl.u32 %v2304, 7
  %v2306 = vsub.s32 %v2303, %v2305
  %v2307 = vrot.slane %v1622, %v2306
  %v2309 = vunpack.c.l.s4 1983009808
  %v2310 = vunpack.c.0.s8 %v2309
  %v2311 = vlaneseq
  %v2312 = vshrl.u32 %v2311, 7
  %v2313 = vsub.s32 %v2310, %v2312
  %v2314 = vrot.slane %v2300, %v2313
  %v2315 = vcombine.high %v2307, %v2307
  %v2316 = vcombine.high %v2314, %v2314
  %v2317 = vcombine.high %v1625, %v1625
  %v2319 = vunpack.c.l.s4 1983009808
  %v2320 = vunpack.c.0.s8 %v2319
  %v2321 = vlaneseq
  %v2322 = vshrl.u32 %v2321, 7
  %v2323 = vsub.s32 %v2320, %v2322
  %v2324 = vrot.slane %v1625, %v2323
  %v2326 = vunpack.c.l.s4 1983009808
  %v2327 = vunpack.c.0.s8 %v2326
  %v2328 = vlaneseq
  %v2329 = vshrl.u32 %v2328, 7
  %v2330 = vsub.s32 %v2327, %v2329
  %v2331 = vrot.slane %v2317, %v2330
  %v2332 = vcombine.high %v2324, %v2324
  %v2333 = vcombine.high %v2331, %v2331
  %v2334 = vcombine.high %v1628, %v1628
  %v2336 = vunpack.c.l.s4 1983009808
  %v2337 = vunpack.c.0.s8 %v2336
  %v2338 = vlaneseq
  %v2339 = vshrl.u32 %v2338, 7
  %v2340 = vsub.s32 %v2337, %v2339
  %v2341 = vrot.slane %v1628, %v2340
  %v2343 = vunpack.c.l.s4 1983009808
  %v2344 = vunpack.c.0.s8 %v2343
  %v2345 = vlaneseq
  %v2346 = vshrl.u32 %v2345, 7
  %v2347 = vsub.s32 %v2344, %v2346
  %v2348 = vrot.slane %v2334, %v2347
  %v2349 = vcombine.high %v2341, %v2341
  %v2350 = vcombine.high %v2348, %v2348
  %v2351 = vcombine.high %v1631, %v1631
  %v2353 = vunpack.c.l.s4 1983009808
  %v2354 = vunpack.c.0.s8 %v2353
  %v2355 = vlaneseq
  %v2356 = vshrl.u32 %v2355, 7
  %v2357 = vsub.s32 %v2354, %v2356
  %v2358 = vrot.slane %v1631, %v2357
  %v2360 = vunpack.c.l.s4 1983009808
  %v2361 = vunpack.c.0.s8 %v2360
  %v2362 = vlaneseq
  %v2363 = vshrl.u32 %v2362, 7
  %v2364 = vsub.s32 %v2361, %v2363
  %v2365 = vrot.slane %v2351, %v2364
  %v2366 = vcombine.high %v2358, %v2358
  %v2367 = vcombine.high %v2365, %v2365
  %v2368 = vcombine.high %v1634, %v1634
  %v2370 = vunpack.c.l.s4 1983009808
  %v2371 = vunpack.c.0.s8 %v2370
  %v2372 = vlaneseq
  %v2373 = vshrl.u32 %v2372, 7
  %v2374 = vsub.s32 %v2371, %v2373
  %v2375 = vrot.slane %v1634, %v2374
  %v2377 = vunpack.c.l.s4 1983009808
  %v2378 = vunpack.c.0.s8 %v2377
  %v2379 = vlaneseq
  %v2380 = vshrl.u32 %v2379, 7
  %v2381 = vsub.s32 %v2378, %v2380
  %v2382 = vrot.slane %v2368, %v2381
  %v2383 = vcombine.high %v2375, %v2375
  %v2384 = vcombine.high %v2382, %v2382
  %v2385 = vcombine.high %v1637, %v1637
  %v2387 = vunpack.c.l.s4 1983009808
  %v2388 = vunpack.c.0.s8 %v2387
  %v2389 = vlaneseq
  %v2390 = vshrl.u32 %v2389, 7
  %v2391 = vsub.s32 %v2388, %v2390
  %v2392 = vrot.slane %v1637, %v2391
  %v2394 = vunpack.c.l.s4 1983009808
  %v2395 = vunpack.c.0.s8 %v2394
  %v2396 = vlaneseq
  %v2397 = vshrl.u32 %v2396, 7
  %v2398 = vsub.s32 %v2395, %v2397
  %v2399 = vrot.slane %v2385, %v2398
  %v2400 = vcombine.high %v2392, %v2392
  %v2401 = vcombine.high %v2399, %v2399
  %v2402 = vcombine.high %v1640, %v1640
  %v2404 = vunpack.c.l.s4 1983009808
  %v2405 = vunpack.c.0.s8 %v2404
  %v2406 = vlaneseq
  %v2407 = vshrl.u32 %v2406, 7
  %v2408 = vsub.s32 %v2405, %v2407
  %v2409 = vrot.slane %v1640, %v2408
  %v2411 = vunpack.c.l.s4 1983009808
  %v2412 = vunpack.c.0.s8 %v2411
  %v2413 = vlaneseq
  %v2414 = vshrl.u32 %v2413, 7
  %v2415 = vsub.s32 %v2412, %v2414
  %v2416 = vrot.slane %v2402, %v2415
  %v2417 = vcombine.high %v2409, %v2409
  %v2418 = vcombine.high %v2416, %v2416
  %v2419 = vcombine.high %v1643, %v1643
  %v2421 = vunpack.c.l.s4 1983009808
  %v2422 = vunpack.c.0.s8 %v2421
  %v2423 = vlaneseq
  %v2424 = vshrl.u32 %v2423, 7
  %v2425 = vsub.s32 %v2422, %v2424
  %v2426 = vrot.slane %v1643, %v2425
  %v2428 = vunpack.c.l.s4 1983009808
  %v2429 = vunpack.c.0.s8 %v2428
  %v2430 = vlaneseq
  %v2431 = vshrl.u32 %v2430, 7
  %v2432 = vsub.s32 %v2429, %v2431
  %v2433 = vrot.slane %v2419, %v2432
  %v2434 = vcombine.high %v2426, %v2426
  %v2435 = vcombine.high %v2433, %v2433
  %v2436 = vcombine.high %v1646, %v1646
  %v2438 = vunpack.c.l.s4 1983009808
  %v2439 = vunpack.c.0.s8 %v2438
  %v2440 = vlaneseq
  %v2441 = vshrl.u32 %v2440, 7
  %v2442 = vsub.s32 %v2439, %v2441
  %v2443 = vrot.slane %v1646, %v2442
  %v2445 = vunpack.c.l.s4 1983009808
  %v2446 = vunpack.c.0.s8 %v2445
  %v2447 = vlaneseq
  %v2448 = vshrl.u32 %v2447, 7
  %v2449 = vsub.s32 %v2446, %v2448
  %v2450 = vrot.slane %v2436, %v2449
  %v2451 = vcombine.high %v2443, %v2443
  %v2452 = vcombine.high %v2450, %v2450
  %v2453 = vcombine.high %v1649, %v1649
  %v2455 = vunpack.c.l.s4 1983009808
  %v2456 = vunpack.c.0.s8 %v2455
  %v2457 = vlaneseq
  %v2458 = vshrl.u32 %v2457, 7
  %v2459 = vsub.s32 %v2456, %v2458
  %v2460 = vrot.slane %v1649, %v2459
  %v2462 = vunpack.c.l.s4 1983009808
  %v2463 = vunpack.c.0.s8 %v2462
  %v2464 = vlaneseq
  %v2465 = vshrl.u32 %v2464, 7
  %v2466 = vsub.s32 %v2463, %v2465
  %v2467 = vrot.slane %v2453, %v2466
  %v2468 = vcombine.high %v2460, %v2460
  %v2469 = vcombine.high %v2467, %v2467
  %v2470 = vcombine.high %v1652, %v1652
  %v2472 = vunpack.c.l.s4 1983009808
  %v2473 = vunpack.c.0.s8 %v2472
  %v2474 = vlaneseq
  %v2475 = vshrl.u32 %v2474, 7
  %v2476 = vsub.s32 %v2473, %v2475
  %v2477 = vrot.slane %v1652, %v2476
  %v2479 = vunpack.c.l.s4 1983009808
  %v2480 = vunpack.c.0.s8 %v2479
  %v2481 = vlaneseq
  %v2482 = vshrl.u32 %v2481, 7
  %v2483 = vsub.s32 %v2480, %v2482
  %v2484 = vrot.slane %v2470, %v2483
  %v2485 = vcombine.high %v2477, %v2477
  %v2486 = vcombine.high %v2484, %v2484
  %v2487 = vcombine.high %v1655, %v1655
  %v2489 = vunpack.c.l.s4 1983009808
  %v2490 = vunpack.c.0.s8 %v2489
  %v2491 = vlaneseq
  %v2492 = vshrl.u32 %v2491, 7
  %v2493 = vsub.s32 %v2490, %v2492
  %v2494 = vrot.slane %v1655, %v2493
  %v2496 = vunpack.c.l.s4 1983009808
  %v2497 = vunpack.c.0.s8 %v2496
  %v2498 = vlaneseq
  %v2499 = vshrl.u32 %v2498, 7
  %v2500 = vsub.s32 %v2497, %v2499
  %v2501 = vrot.slane %v2487, %v2500
  %v2502 = vcombine.high %v2494, %v2494
  %v2503 = vcombine.high %v2501, %v2501
  %v2504 = vcombine.high %v1658, %v1658
  %v2506 = vunpack.c.l.s4 1983009808
  %v2507 = vunpack.c.0.s8 %v2506
  %v2508 = vlaneseq
  %v2509 = vshrl.u32 %v2508, 7
  %v2510 = vsub.s32 %v2507, %v2509
  %v2511 = vrot.slane %v1658, %v2510
  %v2513 = vunpack.c.l.s4 1983009808
  %v2514 = vunpack.c.0.s8 %v2513
  %v2515 = vlaneseq
  %v2516 = vshrl.u32 %v2515, 7
  %v2517 = vsub.s32 %v2514, %v2516
  %v2518 = vrot.slane %v2504, %v2517
  %v2519 = vcombine.high %v2511, %v2511
  %v2520 = vcombine.high %v2518, %v2518
  %v2521 = vcombine.high %v1661, %v1661
  %v2523 = vunpack.c.l.s4 1983009808
  %v2524 = vunpack.c.0.s8 %v2523
  %v2525 = vlaneseq
  %v2526 = vshrl.u32 %v2525, 7
  %v2527 = vsub.s32 %v2524, %v2526
  %v2528 = vrot.slane %v1661, %v2527
  %v2530 = vunpack.c.l.s4 1983009808
  %v2531 = vunpack.c.0.s8 %v2530
  %v2532 = vlaneseq
  %v2533 = vshrl.u32 %v2532, 7
  %v2534 = vsub.s32 %v2531, %v2533
  %v2535 = vrot.slane %v2521, %v2534
  %v2536 = vcombine.high %v2528, %v2528
  %v2537 = vcombine.high %v2535, %v2535
  %v2538 = vcombine.high %v1664, %v1664
  %v2540 = vunpack.c.l.s4 1983009808
  %v2541 = vunpack.c.0.s8 %v2540
  %v2542 = vlaneseq
  %v2543 = vshrl.u32 %v2542, 7
  %v2544 = vsub.s32 %v2541, %v2543
  %v2545 = vrot.slane %v1664, %v2544
  %v2547 = vunpack.c.l.s4 1983009808
  %v2548 = vunpack.c.0.s8 %v2547
  %v2549 = vlaneseq
  %v2550 = vshrl.u32 %v2549, 7
  %v2551 = vsub.s32 %v2548, %v2550
  %v2552 = vrot.slane %v2538, %v2551
  %v2553 = vcombine.high %v2545, %v2545
  %v2554 = vcombine.high %v2552, %v2552
  %v2555 = vcombine.high %v1667, %v1667
  %v2557 = vunpack.c.l.s4 1983009808
  %v2558 = vunpack.c.0.s8 %v2557
  %v2559 = vlaneseq
  %v2560 = vshrl.u32 %v2559, 7
  %v2561 = vsub.s32 %v2558, %v2560
  %v2562 = vrot.slane %v1667, %v2561
  %v2564 = vunpack.c.l.s4 1983009808
  %v2565 = vunpack.c.0.s8 %v2564
  %v2566 = vlaneseq
  %v2567 = vshrl.u32 %v2566, 7
  %v2568 = vsub.s32 %v2565, %v2567
  %v2569 = vrot.slane %v2555, %v2568
  %v2570 = vcombine.high %v2562, %v2562
  %v2571 = vcombine.high %v2569, %v2569
  %v2572 = vcombine.high %v1670, %v1670
  %v2574 = vunpack.c.l.s4 1983009808
  %v2575 = vunpack.c.0.s8 %v2574
  %v2576 = vlaneseq
  %v2577 = vshrl.u32 %v2576, 7
  %v2578 = vsub.s32 %v2575, %v2577
  %v2579 = vrot.slane %v1670, %v2578
  %v2581 = vunpack.c.l.s4 1983009808
  %v2582 = vunpack.c.0.s8 %v2581
  %v2583 = vlaneseq
  %v2584 = vshrl.u32 %v2583, 7
  %v2585 = vsub.s32 %v2582, %v2584
  %v2586 = vrot.slane %v2572, %v2585
  %v2587 = vcombine.high %v2579, %v2579
  %v2588 = vcombine.high %v2586, %v2586
  %v2589 = vcombine.high %v1673, %v1673
  %v2591 = vunpack.c.l.s4 1983009808
  %v2592 = vunpack.c.0.s8 %v2591
  %v2593 = vlaneseq
  %v2594 = vshrl.u32 %v2593, 7
  %v2595 = vsub.s32 %v2592, %v2594
  %v2596 = vrot.slane %v1673, %v2595
  %v2598 = vunpack.c.l.s4 1983009808
  %v2599 = vunpack.c.0.s8 %v2598
  %v2600 = vlaneseq
  %v2601 = vshrl.u32 %v2600, 7
  %v2602 = vsub.s32 %v2599, %v2601
  %v2603 = vrot.slane %v2589, %v2602
  %v2604 = vcombine.high %v2596, %v2596
  %v2605 = vcombine.high %v2603, %v2603
  %v2606 = vcombine.high %v1676, %v1676
  %v2608 = vunpack.c.l.s4 1983009808
  %v2609 = vunpack.c.0.s8 %v2608
  %v2610 = vlaneseq
  %v2611 = vshrl.u32 %v2610, 7
  %v2612 = vsub.s32 %v2609, %v2611
  %v2613 = vrot.slane %v1676, %v2612
  %v2615 = vunpack.c.l.s4 1983009808
  %v2616 = vunpack.c.0.s8 %v2615
  %v2617 = vlaneseq
  %v2618 = vshrl.u32 %v2617, 7
  %v2619 = vsub.s32 %v2616, %v2618
  %v2620 = vrot.slane %v2606, %v2619
  %v2621 = vcombine.high %v2613, %v2613
  %v2622 = vcombine.high %v2620, %v2620
  %v2623 = vcombine.high %v1679, %v1679
  %v2625 = vunpack.c.l.s4 1983009808
  %v2626 = vunpack.c.0.s8 %v2625
  %v2627 = vlaneseq
  %v2628 = vshrl.u32 %v2627, 7
  %v2629 = vsub.s32 %v2626, %v2628
  %v2630 = vrot.slane %v1679, %v2629
  %v2632 = vunpack.c.l.s4 1983009808
  %v2633 = vunpack.c.0.s8 %v2632
  %v2634 = vlaneseq
  %v2635 = vshrl.u32 %v2634, 7
  %v2636 = vsub.s32 %v2633, %v2635
  %v2637 = vrot.slane %v2623, %v2636
  %v2638 = vcombine.high %v2630, %v2630
  %v2639 = vcombine.high %v2637, %v2637
  %v2640 = vcombine.high %v1682, %v1682
  %v2642 = vunpack.c.l.s4 1983009808
  %v2643 = vunpack.c.0.s8 %v2642
  %v2644 = vlaneseq
  %v2645 = vshrl.u32 %v2644, 7
  %v2646 = vsub.s32 %v2643, %v2645
  %v2647 = vrot.slane %v1682, %v2646
  %v2649 = vunpack.c.l.s4 1983009808
  %v2650 = vunpack.c.0.s8 %v2649
  %v2651 = vlaneseq
  %v2652 = vshrl.u32 %v2651, 7
  %v2653 = vsub.s32 %v2650, %v2652
  %v2654 = vrot.slane %v2640, %v2653
  %v2655 = vcombine.high %v2647, %v2647
  %v2656 = vcombine.high %v2654, %v2654
  %v2657 = vcombine.high %v1685, %v1685
  %v2659 = vunpack.c.l.s4 1983009808
  %v2660 = vunpack.c.0.s8 %v2659
  %v2661 = vlaneseq
  %v2662 = vshrl.u32 %v2661, 7
  %v2663 = vsub.s32 %v2660, %v2662
  %v2664 = vrot.slane %v1685, %v2663
  %v2666 = vunpack.c.l.s4 1983009808
  %v2667 = vunpack.c.0.s8 %v2666
  %v2668 = vlaneseq
  %v2669 = vshrl.u32 %v2668, 7
  %v2670 = vsub.s32 %v2667, %v2669
  %v2671 = vrot.slane %v2657, %v2670
  %v2672 = vcombine.high %v2664, %v2664
  %v2673 = vcombine.high %v2671, %v2671
  %v2674 = vcombine.high %v1688, %v1688
  %v2676 = vunpack.c.l.s4 1983009808
  %v2677 = vunpack.c.0.s8 %v2676
  %v2678 = vlaneseq
  %v2679 = vshrl.u32 %v2678, 7
  %v2680 = vsub.s32 %v2677, %v2679
  %v2681 = vrot.slane %v1688, %v2680
  %v2683 = vunpack.c.l.s4 1983009808
  %v2684 = vunpack.c.0.s8 %v2683
  %v2685 = vlaneseq
  %v2686 = vshrl.u32 %v2685, 7
  %v2687 = vsub.s32 %v2684, %v2686
  %v2688 = vrot.slane %v2674, %v2687
  %v2689 = vcombine.high %v2681, %v2681
  %v2690 = vcombine.high %v2688, %v2688
  %v2691 = vcombine.high %v1691, %v1691
  %v2693 = vunpack.c.l.s4 1983009808
  %v2694 = vunpack.c.0.s8 %v2693
  %v2695 = vlaneseq
  %v2696 = vshrl.u32 %v2695, 7
  %v2697 = vsub.s32 %v2694, %v2696
  %v2698 = vrot.slane %v1691, %v2697
  %v2700 = vunpack.c.l.s4 1983009808
  %v2701 = vunpack.c.0.s8 %v2700
  %v2702 = vlaneseq
  %v2703 = vshrl.u32 %v2702, 7
  %v2704 = vsub.s32 %v2701, %v2703
  %v2705 = vrot.slane %v2691, %v2704
  %v2706 = vcombine.high %v2698, %v2698
  %v2707 = vcombine.high %v2705, %v2705
  %v2708 = vcombine.high %v1694, %v1694
  %v2710 = vunpack.c.l.s4 1983009808
  %v2711 = vunpack.c.0.s8 %v2710
  %v2712 = vlaneseq
  %v2713 = vshrl.u32 %v2712, 7
  %v2714 = vsub.s32 %v2711, %v2713
  %v2715 = vrot.slane %v1694, %v2714
  %v2717 = vunpack.c.l.s4 1983009808
  %v2718 = vunpack.c.0.s8 %v2717
  %v2719 = vlaneseq
  %v2720 = vshrl.u32 %v2719, 7
  %v2721 = vsub.s32 %v2718, %v2720
  %v2722 = vrot.slane %v2708, %v2721
  %v2723 = vcombine.high %v2715, %v2715
  %v2724 = vcombine.high %v2722, %v2722
  %v2725 = vcombine.high %v1697, %v1697
  %v2727 = vunpack.c.l.s4 1983009808
  %v2728 = vunpack.c.0.s8 %v2727
  %v2729 = vlaneseq
  %v2730 = vshrl.u32 %v2729, 7
  %v2731 = vsub.s32 %v2728, %v2730
  %v2732 = vrot.slane %v1697, %v2731
  %v2734 = vunpack.c.l.s4 1983009808
  %v2735 = vunpack.c.0.s8 %v2734
  %v2736 = vlaneseq
  %v2737 = vshrl.u32 %v2736, 7
  %v2738 = vsub.s32 %v2735, %v2737
  %v2739 = vrot.slane %v2725, %v2738
  %v2740 = vcombine.high %v2732, %v2732
  %v2741 = vcombine.high %v2739, %v2739
  %v2742 = vcombine.high %v1700, %v1700
  %v2744 = vunpack.c.l.s4 1983009808
  %v2745 = vunpack.c.0.s8 %v2744
  %v2746 = vlaneseq
  %v2747 = vshrl.u32 %v2746, 7
  %v2748 = vsub.s32 %v2745, %v2747
  %v2749 = vrot.slane %v1700, %v2748
  %v2751 = vunpack.c.l.s4 1983009808
  %v2752 = vunpack.c.0.s8 %v2751
  %v2753 = vlaneseq
  %v2754 = vshrl.u32 %v2753, 7
  %v2755 = vsub.s32 %v2752, %v2754
  %v2756 = vrot.slane %v2742, %v2755
  %v2757 = vcombine.high %v2749, %v2749
  %v2758 = vcombine.high %v2756, %v2756
  %v2759 = vcombine.high %v1703, %v1703
  %v2761 = vunpack.c.l.s4 1983009808
  %v2762 = vunpack.c.0.s8 %v2761
  %v2763 = vlaneseq
  %v2764 = vshrl.u32 %v2763, 7
  %v2765 = vsub.s32 %v2762, %v2764
  %v2766 = vrot.slane %v1703, %v2765
  %v2768 = vunpack.c.l.s4 1983009808
  %v2769 = vunpack.c.0.s8 %v2768
  %v2770 = vlaneseq
  %v2771 = vshrl.u32 %v2770, 7
  %v2772 = vsub.s32 %v2769, %v2771
  %v2773 = vrot.slane %v2759, %v2772
  %v2774 = vcombine.high %v2766, %v2766
  %v2775 = vcombine.high %v2773, %v2773
  %v2776 = vcombine.high %v1706, %v1706
  %v2778 = vunpack.c.l.s4 1983009808
  %v2779 = vunpack.c.0.s8 %v2778
  %v2780 = vlaneseq
  %v2781 = vshrl.u32 %v2780, 7
  %v2782 = vsub.s32 %v2779, %v2781
  %v2783 = vrot.slane %v1706, %v2782
  %v2785 = vunpack.c.l.s4 1983009808
  %v2786 = vunpack.c.0.s8 %v2785
  %v2787 = vlaneseq
  %v2788 = vshrl.u32 %v2787, 7
  %v2789 = vsub.s32 %v2786, %v2788
  %v2790 = vrot.slane %v2776, %v2789
  %v2791 = vcombine.high %v2783, %v2783
  %v2792 = vcombine.high %v2790, %v2790
  %v2793 = vcombine.high %v1709, %v1709
  %v2795 = vunpack.c.l.s4 1983009808
  %v2796 = vunpack.c.0.s8 %v2795
  %v2797 = vlaneseq
  %v2798 = vshrl.u32 %v2797, 7
  %v2799 = vsub.s32 %v2796, %v2798
  %v2800 = vrot.slane %v1709, %v2799
  %v2802 = vunpack.c.l.s4 1983009808
  %v2803 = vunpack.c.0.s8 %v2802
  %v2804 = vlaneseq
  %v2805 = vshrl.u32 %v2804, 7
  %v2806 = vsub.s32 %v2803, %v2805
  %v2807 = vrot.slane %v2793, %v2806
  %v2808 = vcombine.high %v2800, %v2800
  %v2809 = vcombine.high %v2807, %v2807
  %v2810 = vcombine.high %v1712, %v1712
  %v2812 = vunpack.c.l.s4 1983009808
  %v2813 = vunpack.c.0.s8 %v2812
  %v2814 = vlaneseq
  %v2815 = vshrl.u32 %v2814, 7
  %v2816 = vsub.s32 %v2813, %v2815
  %v2817 = vrot.slane %v1712, %v2816
  %v2819 = vunpack.c.l.s4 1983009808
  %v2820 = vunpack.c.0.s8 %v2819
  %v2821 = vlaneseq
  %v2822 = vshrl.u32 %v2821, 7
  %v2823 = vsub.s32 %v2820, %v2822
  %v2824 = vrot.slane %v2810, %v2823
  %v2825 = vcombine.high %v2817, %v2817
  %v2826 = vcombine.high %v2824, %v2824
  %v2827 = vcombine.high %v1715, %v1715
  %v2829 = vunpack.c.l.s4 1983009808
  %v2830 = vunpack.c.0.s8 %v2829
  %v2831 = vlaneseq
  %v2832 = vshrl.u32 %v2831, 7
  %v2833 = vsub.s32 %v2830, %v2832
  %v2834 = vrot.slane %v1715, %v2833
  %v2836 = vunpack.c.l.s4 1983009808
  %v2837 = vunpack.c.0.s8 %v2836
  %v2838 = vlaneseq
  %v2839 = vshrl.u32 %v2838, 7
  %v2840 = vsub.s32 %v2837, %v2839
  %v2841 = vrot.slane %v2827, %v2840
  %v2842 = vcombine.high %v2834, %v2834
  %v2843 = vcombine.high %v2841, %v2841
  %v2844 = vcombine.high %v1718, %v1718
  %v2846 = vunpack.c.l.s4 1983009808
  %v2847 = vunpack.c.0.s8 %v2846
  %v2848 = vlaneseq
  %v2849 = vshrl.u32 %v2848, 7
  %v2850 = vsub.s32 %v2847, %v2849
  %v2851 = vrot.slane %v1718, %v2850
  %v2853 = vunpack.c.l.s4 1983009808
  %v2854 = vunpack.c.0.s8 %v2853
  %v2855 = vlaneseq
  %v2856 = vshrl.u32 %v2855, 7
  %v2857 = vsub.s32 %v2854, %v2856
  %v2858 = vrot.slane %v2844, %v2857
  %v2859 = vcombine.high %v2851, %v2851
  %v2860 = vcombine.high %v2858, %v2858
  %v2861 = vcombine.high %v1721, %v1721
  %v2863 = vunpack.c.l.s4 1983009808
  %v2864 = vunpack.c.0.s8 %v2863
  %v2865 = vlaneseq
  %v2866 = vshrl.u32 %v2865, 7
  %v2867 = vsub.s32 %v2864, %v2866
  %v2868 = vrot.slane %v1721, %v2867
  %v2870 = vunpack.c.l.s4 1983009808
  %v2871 = vunpack.c.0.s8 %v2870
  %v2872 = vlaneseq
  %v2873 = vshrl.u32 %v2872, 7
  %v2874 = vsub.s32 %v2871, %v2873
  %v2875 = vrot.slane %v2861, %v2874
  %v2876 = vcombine.high %v2868, %v2868
  %v2877 = vcombine.high %v2875, %v2875
  %v2878 = vcombine.high %v1724, %v1724
  %v2880 = vunpack.c.l.s4 1983009808
  %v2881 = vunpack.c.0.s8 %v2880
  %v2882 = vlaneseq
  %v2883 = vshrl.u32 %v2882, 7
  %v2884 = vsub.s32 %v2881, %v2883
  %v2885 = vrot.slane %v1724, %v2884
  %v2887 = vunpack.c.l.s4 1983009808
  %v2888 = vunpack.c.0.s8 %v2887
  %v2889 = vlaneseq
  %v2890 = vshrl.u32 %v2889, 7
  %v2891 = vsub.s32 %v2888, %v2890
  %v2892 = vrot.slane %v2878, %v2891
  %v2893 = vcombine.high %v2885, %v2885
  %v2894 = vcombine.high %v2892, %v2892
  %v2895 = vcombine.high %v1727, %v1727
  %v2897 = vunpack.c.l.s4 1983009808
  %v2898 = vunpack.c.0.s8 %v2897
  %v2899 = vlaneseq
  %v2900 = vshrl.u32 %v2899, 7
  %v2901 = vsub.s32 %v2898, %v2900
  %v2902 = vrot.slane %v1727, %v2901
  %v2904 = vunpack.c.l.s4 1983009808
  %v2905 = vunpack.c.0.s8 %v2904
  %v2906 = vlaneseq
  %v2907 = vshrl.u32 %v2906, 7
  %v2908 = vsub.s32 %v2905, %v2907
  %v2909 = vrot.slane %v2895, %v2908
  %v2910 = vcombine.high %v2902, %v2902
  %v2911 = vcombine.high %v2909, %v2909
  %v2912 = vcombine.high %v1730, %v1730
  %v2914 = vunpack.c.l.s4 1983009808
  %v2915 = vunpack.c.0.s8 %v2914
  %v2916 = vlaneseq
  %v2917 = vshrl.u32 %v2916, 7
  %v2918 = vsub.s32 %v2915, %v2917
  %v2919 = vrot.slane %v1730, %v2918
  %v2921 = vunpack.c.l.s4 1983009808
  %v2922 = vunpack.c.0.s8 %v2921
  %v2923 = vlaneseq
  %v2924 = vshrl.u32 %v2923, 7
  %v2925 = vsub.s32 %v2922, %v2924
  %v2926 = vrot.slane %v2912, %v2925
  %v2927 = vcombine.high %v2919, %v2919
  %v2928 = vcombine.high %v2926, %v2926
  %v2929 = vcombine.high %v1733, %v1733
  %v2931 = vunpack.c.l.s4 1983009808
  %v2932 = vunpack.c.0.s8 %v2931
  %v2933 = vlaneseq
  %v2934 = vshrl.u32 %v2933, 7
  %v2935 = vsub.s32 %v2932, %v2934
  %v2936 = vrot.slane %v1733, %v2935
  %v2938 = vunpack.c.l.s4 1983009808
  %v2939 = vunpack.c.0.s8 %v2938
  %v2940 = vlaneseq
  %v2941 = vshrl.u32 %v2940, 7
  %v2942 = vsub.s32 %v2939, %v2941
  %v2943 = vrot.slane %v2929, %v2942
  %v2944 = vcombine.high %v2936, %v2936
  %v2945 = vcombine.high %v2943, %v2943
  %v2946 = vcombine.high %v1736, %v1736
  %v2948 = vunpack.c.l.s4 1983009808
  %v2949 = vunpack.c.0.s8 %v2948
  %v2950 = vlaneseq
  %v2951 = vshrl.u32 %v2950, 7
  %v2952 = vsub.s32 %v2949, %v2951
  %v2953 = vrot.slane %v1736, %v2952
  %v2955 = vunpack.c.l.s4 1983009808
  %v2956 = vunpack.c.0.s8 %v2955
  %v2957 = vlaneseq
  %v2958 = vshrl.u32 %v2957, 7
  %v2959 = vsub.s32 %v2956, %v2958
  %v2960 = vrot.slane %v2946, %v2959
  %v2961 = vcombine.high %v2953, %v2953
  %v2962 = vcombine.high %v2960, %v2960
  %v2963 = vcombine.high %v1739, %v1739
  %v2965 = vunpack.c.l.s4 1983009808
  %v2966 = vunpack.c.0.s8 %v2965
  %v2967 = vlaneseq
  %v2968 = vshrl.u32 %v2967, 7
  %v2969 = vsub.s32 %v2966, %v2968
  %v2970 = vrot.slane %v1739, %v2969
  %v2972 = vunpack.c.l.s4 1983009808
  %v2973 = vunpack.c.0.s8 %v2972
  %v2974 = vlaneseq
  %v2975 = vshrl.u32 %v2974, 7
  %v2976 = vsub.s32 %v2973, %v2975
  %v2977 = vrot.slane %v2963, %v2976
  %v2978 = vcombine.high %v2970, %v2970
  %v2979 = vcombine.high %v2977, %v2977
  %v2980 = vcombine.high %v1742, %v1742
  %v2982 = vunpack.c.l.s4 1983009808
  %v2983 = vunpack.c.0.s8 %v2982
  %v2984 = vlaneseq
  %v2985 = vshrl.u32 %v2984, 7
  %v2986 = vsub.s32 %v2983, %v2985
  %v2987 = vrot.slane %v1742, %v2986
  %v2989 = vunpack.c.l.s4 1983009808
  %v2990 = vunpack.c.0.s8 %v2989
  %v2991 = vlaneseq
  %v2992 = vshrl.u32 %v2991, 7
  %v2993 = vsub.s32 %v2990, %v2992
  %v2994 = vrot.slane %v2980, %v2993
  %v2995 = vcombine.high %v2987, %v2987
  %v2996 = vcombine.high %v2994, %v2994
  %v2997 = vcombine.high %v1745, %v1745
  %v2999 = vunpack.c.l.s4 1983009808
  %v3000 = vunpack.c.0.s8 %v2999
  %v3001 = vlaneseq
  %v3002 = vshrl.u32 %v3001, 7
  %v3003 = vsub.s32 %v3000, %v3002
  %v3004 = vrot.slane %v1745, %v3003
  %v3006 = vunpack.c.l.s4 1983009808
  %v3007 = vunpack.c.0.s8 %v3006
  %v3008 = vlaneseq
  %v3009 = vshrl.u32 %v3008, 7
  %v3010 = vsub.s32 %v3007, %v3009
  %v3011 = vrot.slane %v2997, %v3010
  %v3012 = vcombine.high %v3004, %v3004
  %v3013 = vcombine.high %v3011, %v3011
  %v3014 = vcombine.high %v1748, %v1748
  %v3016 = vunpack.c.l.s4 1983009808
  %v3017 = vunpack.c.0.s8 %v3016
  %v3018 = vlaneseq
  %v3019 = vshrl.u32 %v3018, 7
  %v3020 = vsub.s32 %v3017, %v3019
  %v3021 = vrot.slane %v1748, %v3020
  %v3023 = vunpack.c.l.s4 1983009808
  %v3024 = vunpack.c.0.s8 %v3023
  %v3025 = vlaneseq
  %v3026 = vshrl.u32 %v3025, 7
  %v3027 = vsub.s32 %v3024, %v3026
  %v3028 = vrot.slane %v3014, %v3027
  %v3029 = vcombine.high %v3021, %v3021
  %v3030 = vcombine.high %v3028, %v3028
  %v3031 = vcombine.high %v1751, %v1751
  %v3033 = vunpack.c.l.s4 1983009808
  %v3034 = vunpack.c.0.s8 %v3033
  %v3035 = vlaneseq
  %v3036 = vshrl.u32 %v3035, 7
  %v3037 = vsub.s32 %v3034, %v3036
  %v3038 = vrot.slane %v1751, %v3037
  %v3040 = vunpack.c.l.s4 1983009808
  %v3041 = vunpack.c.0.s8 %v3040
  %v3042 = vlaneseq
  %v3043 = vshrl.u32 %v3042, 7
  %v3044 = vsub.s32 %v3041, %v3043
  %v3045 = vrot.slane %v3031, %v3044
  %v3046 = vcombine.high %v3038, %v3038
  %v3047 = vcombine.high %v3045, %v3045
  %vm3336 = vcmask 41984
  %v3337 = vsel %vm3336, %v1831, -inf
  %v3338 = vrot.slane %v3337, 4
  %v3339 = vmax.f32 %v3337, %v3338
  %v3340 = vrot.slane %v3339, 2
  %v3341 = vmax.f32 %v3339, %v3340
  %v3342 = vrot.slane %v3341, 1
  %v3343 = vmax.f32 %v3341, %v3342
  %v3344 = vsel %vm3336, %v1839, -inf
  %v3345 = vrot.slane %v3344, 4
  %v3346 = vmax.f32 %v3344, %v3345
  %v3347 = vrot.slane %v3346, 2
  %v3348 = vmax.f32 %v3346, %v3347
  %v3349 = vrot.slane %v3348, 1
  %v3350 = vmax.f32 %v3348, %v3349
  %v3351 = vsel %vm3336, %v1838, -inf
  %v3352 = vrot.slane %v3351, 4
  %v3353 = vmax.f32 %v3351, %v3352
  %v3354 = vrot.slane %v3353, 2
  %v3355 = vmax.f32 %v3353, %v3354
  %v3356 = vrot.slane %v3355, 1
  %v3357 = vmax.f32 %v3355, %v3356
  %v3358 = vsel %vm3336, %v1840, -inf
  %v3359 = vrot.slane %v3358, 4
  %v3360 = vmax.f32 %v3358, %v3359
  %v3361 = vrot.slane %v3360, 2
  %v3362 = vmax.f32 %v3360, %v3361
  %v3363 = vrot.slane %v3362, 1
  %v3364 = vmax.f32 %v3362, %v3363
  %v3365 = vsel %vm3336, %v1848, -inf
  %v3366 = vrot.slane %v3365, 4
  %v3367 = vmax.f32 %v3365, %v3366
  %v3368 = vrot.slane %v3367, 2
  %v3369 = vmax.f32 %v3367, %v3368
  %v3370 = vrot.slane %v3369, 1
  %v3371 = vmax.f32 %v3369, %v3370
  %v3372 = vsel %vm3336, %v1856, -inf
  %v3373 = vrot.slane %v3372, 4
  %v3374 = vmax.f32 %v3372, %v3373
  %v3375 = vrot.slane %v3374, 2
  %v3376 = vmax.f32 %v3374, %v3375
  %v3377 = vrot.slane %v3376, 1
  %v3378 = vmax.f32 %v3376, %v3377
  %v3379 = vsel %vm3336, %v1855, -inf
  %v3380 = vrot.slane %v3379, 4
  %v3381 = vmax.f32 %v3379, %v3380
  %v3382 = vrot.slane %v3381, 2
  %v3383 = vmax.f32 %v3381, %v3382
  %v3384 = vrot.slane %v3383, 1
  %v3385 = vmax.f32 %v3383, %v3384
  %v3386 = vsel %vm3336, %v1857, -inf
  %v3387 = vrot.slane %v3386, 4
  %v3388 = vmax.f32 %v3386, %v3387
  %v3389 = vrot.slane %v3388, 2
  %v3390 = vmax.f32 %v3388, %v3389
  %v3391 = vrot.slane %v3390, 1
  %v3392 = vmax.f32 %v3390, %v3391
  %v3393 = vsel %vm3336, %v1865, -inf
  %v3394 = vrot.slane %v3393, 4
  %v3395 = vmax.f32 %v3393, %v3394
  %v3396 = vrot.slane %v3395, 2
  %v3397 = vmax.f32 %v3395, %v3396
  %v3398 = vrot.slane %v3397, 1
  %v3399 = vmax.f32 %v3397, %v3398
  %v3400 = vsel %vm3336, %v1873, -inf
  %v3401 = vrot.slane %v3400, 4
  %v3402 = vmax.f32 %v3400, %v3401
  %v3403 = vrot.slane %v3402, 2
  %v3404 = vmax.f32 %v3402, %v3403
  %v3405 = vrot.slane %v3404, 1
  %v3406 = vmax.f32 %v3404, %v3405
  %v3407 = vsel %vm3336, %v1872, -inf
  %v3408 = vrot.slane %v3407, 4
  %v3409 = vmax.f32 %v3407, %v3408
  %v3410 = vrot.slane %v3409, 2
  %v3411 = vmax.f32 %v3409, %v3410
  %v3412 = vrot.slane %v3411, 1
  %v3413 = vmax.f32 %v3411, %v3412
  %v3414 = vsel %vm3336, %v1874, -inf
  %v3415 = vrot.slane %v3414, 4
  %v3416 = vmax.f32 %v3414, %v3415
  %v3417 = vrot.slane %v3416, 2
  %v3418 = vmax.f32 %v3416, %v3417
  %v3419 = vrot.slane %v3418, 1
  %v3420 = vmax.f32 %v3418, %v3419
  %v3421 = vsel %vm3336, %v1882, -inf
  %v3422 = vrot.slane %v3421, 4
  %v3423 = vmax.f32 %v3421, %v3422
  %v3424 = vrot.slane %v3423, 2
  %v3425 = vmax.f32 %v3423, %v3424
  %v3426 = vrot.slane %v3425, 1
  %v3427 = vmax.f32 %v3425, %v3426
  %v3428 = vsel %vm3336, %v1890, -inf
  %v3429 = vrot.slane %v3428, 4
  %v3430 = vmax.f32 %v3428, %v3429
  %v3431 = vrot.slane %v3430, 2
  %v3432 = vmax.f32 %v3430, %v3431
  %v3433 = vrot.slane %v3432, 1
  %v3434 = vmax.f32 %v3432, %v3433
  %v3435 = vsel %vm3336, %v1889, -inf
  %v3436 = vrot.slane %v3435, 4
  %v3437 = vmax.f32 %v3435, %v3436
  %v3438 = vrot.slane %v3437, 2
  %v3439 = vmax.f32 %v3437, %v3438
  %v3440 = vrot.slane %v3439, 1
  %v3441 = vmax.f32 %v3439, %v3440
  %v3442 = vsel %vm3336, %v1891, -inf
  %v3443 = vrot.slane %v3442, 4
  %v3444 = vmax.f32 %v3442, %v3443
  %v3445 = vrot.slane %v3444, 2
  %v3446 = vmax.f32 %v3444, %v3445
  %v3447 = vrot.slane %v3446, 1
  %v3448 = vmax.f32 %v3446, %v3447
  %v3449 = vsel %vm3336, %v1899, -inf
  %v3450 = vrot.slane %v3449, 4
  %v3451 = vmax.f32 %v3449, %v3450
  %v3452 = vrot.slane %v3451, 2
  %v3453 = vmax.f32 %v3451, %v3452
  %v3454 = vrot.slane %v3453, 1
  %v3455 = vmax.f32 %v3453, %v3454
  %v3456 = vsel %vm3336, %v1907, -inf
  %v3457 = vrot.slane %v3456, 4
  %v3458 = vmax.f32 %v3456, %v3457
  %v3459 = vrot.slane %v3458, 2
  %v3460 = vmax.f32 %v3458, %v3459
  %v3461 = vrot.slane %v3460, 1
  %v3462 = vmax.f32 %v3460, %v3461
  %v3463 = vsel %vm3336, %v1906, -inf
  %v3464 = vrot.slane %v3463, 4
  %v3465 = vmax.f32 %v3463, %v3464
  %v3466 = vrot.slane %v3465, 2
  %v3467 = vmax.f32 %v3465, %v3466
  %v3468 = vrot.slane %v3467, 1
  %v3469 = vmax.f32 %v3467, %v3468
  %v3470 = vsel %vm3336, %v1908, -inf
  %v3471 = vrot.slane %v3470, 4
  %v3472 = vmax.f32 %v3470, %v3471
  %v3473 = vrot.slane %v3472, 2
  %v3474 = vmax.f32 %v3472, %v3473
  %v3475 = vrot.slane %v3474, 1
  %v3476 = vmax.f32 %v3474, %v3475
  %v3477 = vsel %vm3336, %v1916, -inf
  %v3478 = vrot.slane %v3477, 4
  %v3479 = vmax.f32 %v3477, %v3478
  %v3480 = vrot.slane %v3479, 2
  %v3481 = vmax.f32 %v3479, %v3480
  %v3482 = vrot.slane %v3481, 1
  %v3483 = vmax.f32 %v3481, %v3482
  %v3484 = vsel %vm3336, %v1924, -inf
  %v3485 = vrot.slane %v3484, 4
  %v3486 = vmax.f32 %v3484, %v3485
  %v3487 = vrot.slane %v3486, 2
  %v3488 = vmax.f32 %v3486, %v3487
  %v3489 = vrot.slane %v3488, 1
  %v3490 = vmax.f32 %v3488, %v3489
  %v3491 = vsel %vm3336, %v1923, -inf
  %v3492 = vrot.slane %v3491, 4
  %v3493 = vmax.f32 %v3491, %v3492
  %v3494 = vrot.slane %v3493, 2
  %v3495 = vmax.f32 %v3493, %v3494
  %v3496 = vrot.slane %v3495, 1
  %v3497 = vmax.f32 %v3495, %v3496
  %v3498 = vsel %vm3336, %v1925, -inf
  %v3499 = vrot.slane %v3498, 4
  %v3500 = vmax.f32 %v3498, %v3499
  %v3501 = vrot.slane %v3500, 2
  %v3502 = vmax.f32 %v3500, %v3501
  %v3503 = vrot.slane %v3502, 1
  %v3504 = vmax.f32 %v3502, %v3503
  %v3505 = vsel %vm3336, %v1933, -inf
  %v3506 = vrot.slane %v3505, 4
  %v3507 = vmax.f32 %v3505, %v3506
  %v3508 = vrot.slane %v3507, 2
  %v3509 = vmax.f32 %v3507, %v3508
  %v3510 = vrot.slane %v3509, 1
  %v3511 = vmax.f32 %v3509, %v3510
  %v3512 = vsel %vm3336, %v1941, -inf
  %v3513 = vrot.slane %v3512, 4
  %v3514 = vmax.f32 %v3512, %v3513
  %v3515 = vrot.slane %v3514, 2
  %v3516 = vmax.f32 %v3514, %v3515
  %v3517 = vrot.slane %v3516, 1
  %v3518 = vmax.f32 %v3516, %v3517
  %v3519 = vsel %vm3336, %v1940, -inf
  %v3520 = vrot.slane %v3519, 4
  %v3521 = vmax.f32 %v3519, %v3520
  %v3522 = vrot.slane %v3521, 2
  %v3523 = vmax.f32 %v3521, %v3522
  %v3524 = vrot.slane %v3523, 1
  %v3525 = vmax.f32 %v3523, %v3524
  %v3526 = vsel %vm3336, %v1942, -inf
  %v3527 = vrot.slane %v3526, 4
  %v3528 = vmax.f32 %v3526, %v3527
  %v3529 = vrot.slane %v3528, 2
  %v3530 = vmax.f32 %v3528, %v3529
  %v3531 = vrot.slane %v3530, 1
  %v3532 = vmax.f32 %v3530, %v3531
  %v3533 = vsel %vm3336, %v1950, -inf
  %v3534 = vrot.slane %v3533, 4
  %v3535 = vmax.f32 %v3533, %v3534
  %v3536 = vrot.slane %v3535, 2
  %v3537 = vmax.f32 %v3535, %v3536
  %v3538 = vrot.slane %v3537, 1
  %v3539 = vmax.f32 %v3537, %v3538
  %v3540 = vsel %vm3336, %v1958, -inf
  %v3541 = vrot.slane %v3540, 4
  %v3542 = vmax.f32 %v3540, %v3541
  %v3543 = vrot.slane %v3542, 2
  %v3544 = vmax.f32 %v3542, %v3543
  %v3545 = vrot.slane %v3544, 1
  %v3546 = vmax.f32 %v3544, %v3545
  %v3547 = vsel %vm3336, %v1957, -inf
  %v3548 = vrot.slane %v3547, 4
  %v3549 = vmax.f32 %v3547, %v3548
  %v3550 = vrot.slane %v3549, 2
  %v3551 = vmax.f32 %v3549, %v3550
  %v3552 = vrot.slane %v3551, 1
  %v3553 = vmax.f32 %v3551, %v3552
  %v3554 = vsel %vm3336, %v1959, -inf
  %v3555 = vrot.slane %v3554, 4
  %v3556 = vmax.f32 %v3554, %v3555
  %v3557 = vrot.slane %v3556, 2
  %v3558 = vmax.f32 %v3556, %v3557
  %v3559 = vrot.slane %v3558, 1
  %v3560 = vmax.f32 %v3558, %v3559
  %v3561 = vsel %vm3336, %v1967, -inf
  %v3562 = vrot.slane %v3561, 4
  %v3563 = vmax.f32 %v3561, %v3562
  %v3564 = vrot.slane %v3563, 2
  %v3565 = vmax.f32 %v3563, %v3564
  %v3566 = vrot.slane %v3565, 1
  %v3567 = vmax.f32 %v3565, %v3566
  %v3568 = vsel %vm3336, %v1975, -inf
  %v3569 = vrot.slane %v3568, 4
  %v3570 = vmax.f32 %v3568, %v3569
  %v3571 = vrot.slane %v3570, 2
  %v3572 = vmax.f32 %v3570, %v3571
  %v3573 = vrot.slane %v3572, 1
  %v3574 = vmax.f32 %v3572, %v3573
  %v3575 = vsel %vm3336, %v1974, -inf
  %v3576 = vrot.slane %v3575, 4
  %v3577 = vmax.f32 %v3575, %v3576
  %v3578 = vrot.slane %v3577, 2
  %v3579 = vmax.f32 %v3577, %v3578
  %v3580 = vrot.slane %v3579, 1
  %v3581 = vmax.f32 %v3579, %v3580
  %v3582 = vsel %vm3336, %v1976, -inf
  %v3583 = vrot.slane %v3582, 4
  %v3584 = vmax.f32 %v3582, %v3583
  %v3585 = vrot.slane %v3584, 2
  %v3586 = vmax.f32 %v3584, %v3585
  %v3587 = vrot.slane %v3586, 1
  %v3588 = vmax.f32 %v3586, %v3587
  %v3589 = vsel %vm3336, %v1984, -inf
  %v3590 = vrot.slane %v3589, 4
  %v3591 = vmax.f32 %v3589, %v3590
  %v3592 = vrot.slane %v3591, 2
  %v3593 = vmax.f32 %v3591, %v3592
  %v3594 = vrot.slane %v3593, 1
  %v3595 = vmax.f32 %v3593, %v3594
  %v3596 = vsel %vm3336, %v1992, -inf
  %v3597 = vrot.slane %v3596, 4
  %v3598 = vmax.f32 %v3596, %v3597
  %v3599 = vrot.slane %v3598, 2
  %v3600 = vmax.f32 %v3598, %v3599
  %v3601 = vrot.slane %v3600, 1
  %v3602 = vmax.f32 %v3600, %v3601
  %v3603 = vsel %vm3336, %v1991, -inf
  %v3604 = vrot.slane %v3603, 4
  %v3605 = vmax.f32 %v3603, %v3604
  %v3606 = vrot.slane %v3605, 2
  %v3607 = vmax.f32 %v3605, %v3606
  %v3608 = vrot.slane %v3607, 1
  %v3609 = vmax.f32 %v3607, %v3608
  %v3610 = vsel %vm3336, %v1993, -inf
  %v3611 = vrot.slane %v3610, 4
  %v3612 = vmax.f32 %v3610, %v3611
  %v3613 = vrot.slane %v3612, 2
  %v3614 = vmax.f32 %v3612, %v3613
  %v3615 = vrot.slane %v3614, 1
  %v3616 = vmax.f32 %v3614, %v3615
  %v3617 = vsel %vm3336, %v2001, -inf
  %v3618 = vrot.slane %v3617, 4
  %v3619 = vmax.f32 %v3617, %v3618
  %v3620 = vrot.slane %v3619, 2
  %v3621 = vmax.f32 %v3619, %v3620
  %v3622 = vrot.slane %v3621, 1
  %v3623 = vmax.f32 %v3621, %v3622
  %v3624 = vsel %vm3336, %v2009, -inf
  %v3625 = vrot.slane %v3624, 4
  %v3626 = vmax.f32 %v3624, %v3625
  %v3627 = vrot.slane %v3626, 2
  %v3628 = vmax.f32 %v3626, %v3627
  %v3629 = vrot.slane %v3628, 1
  %v3630 = vmax.f32 %v3628, %v3629
  %v3631 = vsel %vm3336, %v2008, -inf
  %v3632 = vrot.slane %v3631, 4
  %v3633 = vmax.f32 %v3631, %v3632
  %v3634 = vrot.slane %v3633, 2
  %v3635 = vmax.f32 %v3633, %v3634
  %v3636 = vrot.slane %v3635, 1
  %v3637 = vmax.f32 %v3635, %v3636
  %v3638 = vsel %vm3336, %v2010, -inf
  %v3639 = vrot.slane %v3638, 4
  %v3640 = vmax.f32 %v3638, %v3639
  %v3641 = vrot.slane %v3640, 2
  %v3642 = vmax.f32 %v3640, %v3641
  %v3643 = vrot.slane %v3642, 1
  %v3644 = vmax.f32 %v3642, %v3643
  %v3645 = vsel %vm3336, %v2018, -inf
  %v3646 = vrot.slane %v3645, 4
  %v3647 = vmax.f32 %v3645, %v3646
  %v3648 = vrot.slane %v3647, 2
  %v3649 = vmax.f32 %v3647, %v3648
  %v3650 = vrot.slane %v3649, 1
  %v3651 = vmax.f32 %v3649, %v3650
  %v3652 = vsel %vm3336, %v2026, -inf
  %v3653 = vrot.slane %v3652, 4
  %v3654 = vmax.f32 %v3652, %v3653
  %v3655 = vrot.slane %v3654, 2
  %v3656 = vmax.f32 %v3654, %v3655
  %v3657 = vrot.slane %v3656, 1
  %v3658 = vmax.f32 %v3656, %v3657
  %v3659 = vsel %vm3336, %v2025, -inf
  %v3660 = vrot.slane %v3659, 4
  %v3661 = vmax.f32 %v3659, %v3660
  %v3662 = vrot.slane %v3661, 2
  %v3663 = vmax.f32 %v3661, %v3662
  %v3664 = vrot.slane %v3663, 1
  %v3665 = vmax.f32 %v3663, %v3664
  %v3666 = vsel %vm3336, %v2027, -inf
  %v3667 = vrot.slane %v3666, 4
  %v3668 = vmax.f32 %v3666, %v3667
  %v3669 = vrot.slane %v3668, 2
  %v3670 = vmax.f32 %v3668, %v3669
  %v3671 = vrot.slane %v3670, 1
  %v3672 = vmax.f32 %v3670, %v3671
  %v3673 = vsel %vm3336, %v2035, -inf
  %v3674 = vrot.slane %v3673, 4
  %v3675 = vmax.f32 %v3673, %v3674
  %v3676 = vrot.slane %v3675, 2
  %v3677 = vmax.f32 %v3675, %v3676
  %v3678 = vrot.slane %v3677, 1
  %v3679 = vmax.f32 %v3677, %v3678
  %v3680 = vsel %vm3336, %v2043, -inf
  %v3681 = vrot.slane %v3680, 4
  %v3682 = vmax.f32 %v3680, %v3681
  %v3683 = vrot.slane %v3682, 2
  %v3684 = vmax.f32 %v3682, %v3683
  %v3685 = vrot.slane %v3684, 1
  %v3686 = vmax.f32 %v3684, %v3685
  %v3687 = vsel %vm3336, %v2042, -inf
  %v3688 = vrot.slane %v3687, 4
  %v3689 = vmax.f32 %v3687, %v3688
  %v3690 = vrot.slane %v3689, 2
  %v3691 = vmax.f32 %v3689, %v3690
  %v3692 = vrot.slane %v3691, 1
  %v3693 = vmax.f32 %v3691, %v3692
  %v3694 = vsel %vm3336, %v2044, -inf
  %v3695 = vrot.slane %v3694, 4
  %v3696 = vmax.f32 %v3694, %v3695
  %v3697 = vrot.slane %v3696, 2
  %v3698 = vmax.f32 %v3696, %v3697
  %v3699 = vrot.slane %v3698, 1
  %v3700 = vmax.f32 %v3698, %v3699
  %v3701 = vsel %vm3336, %v2052, -inf
  %v3702 = vrot.slane %v3701, 4
  %v3703 = vmax.f32 %v3701, %v3702
  %v3704 = vrot.slane %v3703, 2
  %v3705 = vmax.f32 %v3703, %v3704
  %v3706 = vrot.slane %v3705, 1
  %v3707 = vmax.f32 %v3705, %v3706
  %v3708 = vsel %vm3336, %v2060, -inf
  %v3709 = vrot.slane %v3708, 4
  %v3710 = vmax.f32 %v3708, %v3709
  %v3711 = vrot.slane %v3710, 2
  %v3712 = vmax.f32 %v3710, %v3711
  %v3713 = vrot.slane %v3712, 1
  %v3714 = vmax.f32 %v3712, %v3713
  %v3715 = vsel %vm3336, %v2059, -inf
  %v3716 = vrot.slane %v3715, 4
  %v3717 = vmax.f32 %v3715, %v3716
  %v3718 = vrot.slane %v3717, 2
  %v3719 = vmax.f32 %v3717, %v3718
  %v3720 = vrot.slane %v3719, 1
  %v3721 = vmax.f32 %v3719, %v3720
  %v3722 = vsel %vm3336, %v2061, -inf
  %v3723 = vrot.slane %v3722, 4
  %v3724 = vmax.f32 %v3722, %v3723
  %v3725 = vrot.slane %v3724, 2
  %v3726 = vmax.f32 %v3724, %v3725
  %v3727 = vrot.slane %v3726, 1
  %v3728 = vmax.f32 %v3726, %v3727
  %v3729 = vsel %vm3336, %v2069, -inf
  %v3730 = vrot.slane %v3729, 4
  %v3731 = vmax.f32 %v3729, %v3730
  %v3732 = vrot.slane %v3731, 2
  %v3733 = vmax.f32 %v3731, %v3732
  %v3734 = vrot.slane %v3733, 1
  %v3735 = vmax.f32 %v3733, %v3734
  %v3736 = vsel %vm3336, %v2077, -inf
  %v3737 = vrot.slane %v3736, 4
  %v3738 = vmax.f32 %v3736, %v3737
  %v3739 = vrot.slane %v3738, 2
  %v3740 = vmax.f32 %v3738, %v3739
  %v3741 = vrot.slane %v3740, 1
  %v3742 = vmax.f32 %v3740, %v3741
  %v3743 = vsel %vm3336, %v2076, -inf
  %v3744 = vrot.slane %v3743, 4
  %v3745 = vmax.f32 %v3743, %v3744
  %v3746 = vrot.slane %v3745, 2
  %v3747 = vmax.f32 %v3745, %v3746
  %v3748 = vrot.slane %v3747, 1
  %v3749 = vmax.f32 %v3747, %v3748
  %v3750 = vsel %vm3336, %v2078, -inf
  %v3751 = vrot.slane %v3750, 4
  %v3752 = vmax.f32 %v3750, %v3751
  %v3753 = vrot.slane %v3752, 2
  %v3754 = vmax.f32 %v3752, %v3753
  %v3755 = vrot.slane %v3754, 1
  %v3756 = vmax.f32 %v3754, %v3755
  %v3757 = vsel %vm3336, %v2086, -inf
  %v3758 = vrot.slane %v3757, 4
  %v3759 = vmax.f32 %v3757, %v3758
  %v3760 = vrot.slane %v3759, 2
  %v3761 = vmax.f32 %v3759, %v3760
  %v3762 = vrot.slane %v3761, 1
  %v3763 = vmax.f32 %v3761, %v3762
  %v3764 = vsel %vm3336, %v2094, -inf
  %v3765 = vrot.slane %v3764, 4
  %v3766 = vmax.f32 %v3764, %v3765
  %v3767 = vrot.slane %v3766, 2
  %v3768 = vmax.f32 %v3766, %v3767
  %v3769 = vrot.slane %v3768, 1
  %v3770 = vmax.f32 %v3768, %v3769
  %v3771 = vsel %vm3336, %v2093, -inf
  %v3772 = vrot.slane %v3771, 4
  %v3773 = vmax.f32 %v3771, %v3772
  %v3774 = vrot.slane %v3773, 2
  %v3775 = vmax.f32 %v3773, %v3774
  %v3776 = vrot.slane %v3775, 1
  %v3777 = vmax.f32 %v3775, %v3776
  %v3778 = vsel %vm3336, %v2095, -inf
  %v3779 = vrot.slane %v3778, 4
  %v3780 = vmax.f32 %v3778, %v3779
  %v3781 = vrot.slane %v3780, 2
  %v3782 = vmax.f32 %v3780, %v3781
  %v3783 = vrot.slane %v3782, 1
  %v3784 = vmax.f32 %v3782, %v3783
  %v3785 = vsel %vm3336, %v2103, -inf
  %v3786 = vrot.slane %v3785, 4
  %v3787 = vmax.f32 %v3785, %v3786
  %v3788 = vrot.slane %v3787, 2
  %v3789 = vmax.f32 %v3787, %v3788
  %v3790 = vrot.slane %v3789, 1
  %v3791 = vmax.f32 %v3789, %v3790
  %v3792 = vsel %vm3336, %v2111, -inf
  %v3793 = vrot.slane %v3792, 4
  %v3794 = vmax.f32 %v3792, %v3793
  %v3795 = vrot.slane %v3794, 2
  %v3796 = vmax.f32 %v3794, %v3795
  %v3797 = vrot.slane %v3796, 1
  %v3798 = vmax.f32 %v3796, %v3797
  %v3799 = vsel %vm3336, %v2110, -inf
  %v3800 = vrot.slane %v3799, 4
  %v3801 = vmax.f32 %v3799, %v3800
  %v3802 = vrot.slane %v3801, 2
  %v3803 = vmax.f32 %v3801, %v3802
  %v3804 = vrot.slane %v3803, 1
  %v3805 = vmax.f32 %v3803, %v3804
  %v3806 = vsel %vm3336, %v2112, -inf
  %v3807 = vrot.slane %v3806, 4
  %v3808 = vmax.f32 %v3806, %v3807
  %v3809 = vrot.slane %v3808, 2
  %v3810 = vmax.f32 %v3808, %v3809
  %v3811 = vrot.slane %v3810, 1
  %v3812 = vmax.f32 %v3810, %v3811
  %v3813 = vsel %vm3336, %v2120, -inf
  %v3814 = vrot.slane %v3813, 4
  %v3815 = vmax.f32 %v3813, %v3814
  %v3816 = vrot.slane %v3815, 2
  %v3817 = vmax.f32 %v3815, %v3816
  %v3818 = vrot.slane %v3817, 1
  %v3819 = vmax.f32 %v3817, %v3818
  %v3820 = vsel %vm3336, %v2128, -inf
  %v3821 = vrot.slane %v3820, 4
  %v3822 = vmax.f32 %v3820, %v3821
  %v3823 = vrot.slane %v3822, 2
  %v3824 = vmax.f32 %v3822, %v3823
  %v3825 = vrot.slane %v3824, 1
  %v3826 = vmax.f32 %v3824, %v3825
  %v3827 = vsel %vm3336, %v2127, -inf
  %v3828 = vrot.slane %v3827, 4
  %v3829 = vmax.f32 %v3827, %v3828
  %v3830 = vrot.slane %v3829, 2
  %v3831 = vmax.f32 %v3829, %v3830
  %v3832 = vrot.slane %v3831, 1
  %v3833 = vmax.f32 %v3831, %v3832
  %v3834 = vsel %vm3336, %v2129, -inf
  %v3835 = vrot.slane %v3834, 4
  %v3836 = vmax.f32 %v3834, %v3835
  %v3837 = vrot.slane %v3836, 2
  %v3838 = vmax.f32 %v3836, %v3837
  %v3839 = vrot.slane %v3838, 1
  %v3840 = vmax.f32 %v3838, %v3839
  %v3841 = vsel %vm3336, %v2137, -inf
  %v3842 = vrot.slane %v3841, 4
  %v3843 = vmax.f32 %v3841, %v3842
  %v3844 = vrot.slane %v3843, 2
  %v3845 = vmax.f32 %v3843, %v3844
  %v3846 = vrot.slane %v3845, 1
  %v3847 = vmax.f32 %v3845, %v3846
  %v3848 = vsel %vm3336, %v2145, -inf
  %v3849 = vrot.slane %v3848, 4
  %v3850 = vmax.f32 %v3848, %v3849
  %v3851 = vrot.slane %v3850, 2
  %v3852 = vmax.f32 %v3850, %v3851
  %v3853 = vrot.slane %v3852, 1
  %v3854 = vmax.f32 %v3852, %v3853
  %v3855 = vsel %vm3336, %v2144, -inf
  %v3856 = vrot.slane %v3855, 4
  %v3857 = vmax.f32 %v3855, %v3856
  %v3858 = vrot.slane %v3857, 2
  %v3859 = vmax.f32 %v3857, %v3858
  %v3860 = vrot.slane %v3859, 1
  %v3861 = vmax.f32 %v3859, %v3860
  %v3862 = vsel %vm3336, %v2146, -inf
  %v3863 = vrot.slane %v3862, 4
  %v3864 = vmax.f32 %v3862, %v3863
  %v3865 = vrot.slane %v3864, 2
  %v3866 = vmax.f32 %v3864, %v3865
  %v3867 = vrot.slane %v3866, 1
  %v3868 = vmax.f32 %v3866, %v3867
  %v3869 = vsel %vm3336, %v2154, -inf
  %v3870 = vrot.slane %v3869, 4
  %v3871 = vmax.f32 %v3869, %v3870
  %v3872 = vrot.slane %v3871, 2
  %v3873 = vmax.f32 %v3871, %v3872
  %v3874 = vrot.slane %v3873, 1
  %v3875 = vmax.f32 %v3873, %v3874
  %v3876 = vsel %vm3336, %v2162, -inf
  %v3877 = vrot.slane %v3876, 4
  %v3878 = vmax.f32 %v3876, %v3877
  %v3879 = vrot.slane %v3878, 2
  %v3880 = vmax.f32 %v3878, %v3879
  %v3881 = vrot.slane %v3880, 1
  %v3882 = vmax.f32 %v3880, %v3881
  %v3883 = vsel %vm3336, %v2161, -inf
  %v3884 = vrot.slane %v3883, 4
  %v3885 = vmax.f32 %v3883, %v3884
  %v3886 = vrot.slane %v3885, 2
  %v3887 = vmax.f32 %v3885, %v3886
  %v3888 = vrot.slane %v3887, 1
  %v3889 = vmax.f32 %v3887, %v3888
  %v3890 = vsel %vm3336, %v2163, -inf
  %v3891 = vrot.slane %v3890, 4
  %v3892 = vmax.f32 %v3890, %v3891
  %v3893 = vrot.slane %v3892, 2
  %v3894 = vmax.f32 %v3892, %v3893
  %v3895 = vrot.slane %v3894, 1
  %v3896 = vmax.f32 %v3894, %v3895
  %v3897 = vsel %vm3336, %v2171, -inf
  %v3898 = vrot.slane %v3897, 4
  %v3899 = vmax.f32 %v3897, %v3898
  %v3900 = vrot.slane %v3899, 2
  %v3901 = vmax.f32 %v3899, %v3900
  %v3902 = vrot.slane %v3901, 1
  %v3903 = vmax.f32 %v3901, %v3902
  %v3904 = vsel %vm3336, %v2179, -inf
  %v3905 = vrot.slane %v3904, 4
  %v3906 = vmax.f32 %v3904, %v3905
  %v3907 = vrot.slane %v3906, 2
  %v3908 = vmax.f32 %v3906, %v3907
  %v3909 = vrot.slane %v3908, 1
  %v3910 = vmax.f32 %v3908, %v3909
  %v3911 = vsel %vm3336, %v2178, -inf
  %v3912 = vrot.slane %v3911, 4
  %v3913 = vmax.f32 %v3911, %v3912
  %v3914 = vrot.slane %v3913, 2
  %v3915 = vmax.f32 %v3913, %v3914
  %v3916 = vrot.slane %v3915, 1
  %v3917 = vmax.f32 %v3915, %v3916
  %v3918 = vsel %vm3336, %v2180, -inf
  %v3919 = vrot.slane %v3918, 4
  %v3920 = vmax.f32 %v3918, %v3919
  %v3921 = vrot.slane %v3920, 2
  %v3922 = vmax.f32 %v3920, %v3921
  %v3923 = vrot.slane %v3922, 1
  %v3924 = vmax.f32 %v3922, %v3923
  %v3925 = vsel %vm3336, %v2188, -inf
  %v3926 = vrot.slane %v3925, 4
  %v3927 = vmax.f32 %v3925, %v3926
  %v3928 = vrot.slane %v3927, 2
  %v3929 = vmax.f32 %v3927, %v3928
  %v3930 = vrot.slane %v3929, 1
  %v3931 = vmax.f32 %v3929, %v3930
  %v3932 = vsel %vm3336, %v2196, -inf
  %v3933 = vrot.slane %v3932, 4
  %v3934 = vmax.f32 %v3932, %v3933
  %v3935 = vrot.slane %v3934, 2
  %v3936 = vmax.f32 %v3934, %v3935
  %v3937 = vrot.slane %v3936, 1
  %v3938 = vmax.f32 %v3936, %v3937
  %v3939 = vsel %vm3336, %v2195, -inf
  %v3940 = vrot.slane %v3939, 4
  %v3941 = vmax.f32 %v3939, %v3940
  %v3942 = vrot.slane %v3941, 2
  %v3943 = vmax.f32 %v3941, %v3942
  %v3944 = vrot.slane %v3943, 1
  %v3945 = vmax.f32 %v3943, %v3944
  %v3946 = vsel %vm3336, %v2197, -inf
  %v3947 = vrot.slane %v3946, 4
  %v3948 = vmax.f32 %v3946, %v3947
  %v3949 = vrot.slane %v3948, 2
  %v3950 = vmax.f32 %v3948, %v3949
  %v3951 = vrot.slane %v3950, 1
  %v3952 = vmax.f32 %v3950, %v3951
  %v3953 = vsel %vm3336, %v2205, -inf
  %v3954 = vrot.slane %v3953, 4
  %v3955 = vmax.f32 %v3953, %v3954
  %v3956 = vrot.slane %v3955, 2
  %v3957 = vmax.f32 %v3955, %v3956
  %v3958 = vrot.slane %v3957, 1
  %v3959 = vmax.f32 %v3957, %v3958
  %v3960 = vsel %vm3336, %v2213, -inf
  %v3961 = vrot.slane %v3960, 4
  %v3962 = vmax.f32 %v3960, %v3961
  %v3963 = vrot.slane %v3962, 2
  %v3964 = vmax.f32 %v3962, %v3963
  %v3965 = vrot.slane %v3964, 1
  %v3966 = vmax.f32 %v3964, %v3965
  %v3967 = vsel %vm3336, %v2212, -inf
  %v3968 = vrot.slane %v3967, 4
  %v3969 = vmax.f32 %v3967, %v3968
  %v3970 = vrot.slane %v3969, 2
  %v3971 = vmax.f32 %v3969, %v3970
  %v3972 = vrot.slane %v3971, 1
  %v3973 = vmax.f32 %v3971, %v3972
  %v3974 = vsel %vm3336, %v2214, -inf
  %v3975 = vrot.slane %v3974, 4
  %v3976 = vmax.f32 %v3974, %v3975
  %v3977 = vrot.slane %v3976, 2
  %v3978 = vmax.f32 %v3976, %v3977
  %v3979 = vrot.slane %v3978, 1
  %v3980 = vmax.f32 %v3978, %v3979
  %v3981 = vsel %vm3336, %v2222, -inf
  %v3982 = vrot.slane %v3981, 4
  %v3983 = vmax.f32 %v3981, %v3982
  %v3984 = vrot.slane %v3983, 2
  %v3985 = vmax.f32 %v3983, %v3984
  %v3986 = vrot.slane %v3985, 1
  %v3987 = vmax.f32 %v3985, %v3986
  %v3988 = vsel %vm3336, %v2230, -inf
  %v3989 = vrot.slane %v3988, 4
  %v3990 = vmax.f32 %v3988, %v3989
  %v3991 = vrot.slane %v3990, 2
  %v3992 = vmax.f32 %v3990, %v3991
  %v3993 = vrot.slane %v3992, 1
  %v3994 = vmax.f32 %v3992, %v3993
  %v3995 = vsel %vm3336, %v2229, -inf
  %v3996 = vrot.slane %v3995, 4
  %v3997 = vmax.f32 %v3995, %v3996
  %v3998 = vrot.slane %v3997, 2
  %v3999 = vmax.f32 %v3997, %v3998
  %v4000 = vrot.slane %v3999, 1
  %v4001 = vmax.f32 %v3999, %v4000
  %v4002 = vsel %vm3336, %v2231, -inf
  %v4003 = vrot.slane %v4002, 4
  %v4004 = vmax.f32 %v4002, %v4003
  %v4005 = vrot.slane %v4004, 2
  %v4006 = vmax.f32 %v4004, %v4005
  %v4007 = vrot.slane %v4006, 1
  %v4008 = vmax.f32 %v4006, %v4007
  %v4009 = vsel %vm3336, %v2239, -inf
  %v4010 = vrot.slane %v4009, 4
  %v4011 = vmax.f32 %v4009, %v4010
  %v4012 = vrot.slane %v4011, 2
  %v4013 = vmax.f32 %v4011, %v4012
  %v4014 = vrot.slane %v4013, 1
  %v4015 = vmax.f32 %v4013, %v4014
  %v4016 = vsel %vm3336, %v2247, -inf
  %v4017 = vrot.slane %v4016, 4
  %v4018 = vmax.f32 %v4016, %v4017
  %v4019 = vrot.slane %v4018, 2
  %v4020 = vmax.f32 %v4018, %v4019
  %v4021 = vrot.slane %v4020, 1
  %v4022 = vmax.f32 %v4020, %v4021
  %v4023 = vsel %vm3336, %v2246, -inf
  %v4024 = vrot.slane %v4023, 4
  %v4025 = vmax.f32 %v4023, %v4024
  %v4026 = vrot.slane %v4025, 2
  %v4027 = vmax.f32 %v4025, %v4026
  %v4028 = vrot.slane %v4027, 1
  %v4029 = vmax.f32 %v4027, %v4028
  %v4030 = vsel %vm3336, %v2248, -inf
  %v4031 = vrot.slane %v4030, 4
  %v4032 = vmax.f32 %v4030, %v4031
  %v4033 = vrot.slane %v4032, 2
  %v4034 = vmax.f32 %v4032, %v4033
  %v4035 = vrot.slane %v4034, 1
  %v4036 = vmax.f32 %v4034, %v4035
  %v4037 = vsel %vm3336, %v2256, -inf
  %v4038 = vrot.slane %v4037, 4
  %v4039 = vmax.f32 %v4037, %v4038
  %v4040 = vrot.slane %v4039, 2
  %v4041 = vmax.f32 %v4039, %v4040
  %v4042 = vrot.slane %v4041, 1
  %v4043 = vmax.f32 %v4041, %v4042
  %v4044 = vsel %vm3336, %v2264, -inf
  %v4045 = vrot.slane %v4044, 4
  %v4046 = vmax.f32 %v4044, %v4045
  %v4047 = vrot.slane %v4046, 2
  %v4048 = vmax.f32 %v4046, %v4047
  %v4049 = vrot.slane %v4048, 1
  %v4050 = vmax.f32 %v4048, %v4049
  %v4051 = vsel %vm3336, %v2263, -inf
  %v4052 = vrot.slane %v4051, 4
  %v4053 = vmax.f32 %v4051, %v4052
  %v4054 = vrot.slane %v4053, 2
  %v4055 = vmax.f32 %v4053, %v4054
  %v4056 = vrot.slane %v4055, 1
  %v4057 = vmax.f32 %v4055, %v4056
  %v4058 = vsel %vm3336, %v2265, -inf
  %v4059 = vrot.slane %v4058, 4
  %v4060 = vmax.f32 %v4058, %v4059
  %v4061 = vrot.slane %v4060, 2
  %v4062 = vmax.f32 %v4060, %v4061
  %v4063 = vrot.slane %v4062, 1
  %v4064 = vmax.f32 %v4062, %v4063
  %v4065 = vsel %vm3336, %v2273, -inf
  %v4066 = vrot.slane %v4065, 4
  %v4067 = vmax.f32 %v4065, %v4066
  %v4068 = vrot.slane %v4067, 2
  %v4069 = vmax.f32 %v4067, %v4068
  %v4070 = vrot.slane %v4069, 1
  %v4071 = vmax.f32 %v4069, %v4070
  %v4072 = vsel %vm3336, %v2281, -inf
  %v4073 = vrot.slane %v4072, 4
  %v4074 = vmax.f32 %v4072, %v4073
  %v4075 = vrot.slane %v4074, 2
  %v4076 = vmax.f32 %v4074, %v4075
  %v4077 = vrot.slane %v4076, 1
  %v4078 = vmax.f32 %v4076, %v4077
  %v4079 = vsel %vm3336, %v2280, -inf
  %v4080 = vrot.slane %v4079, 4
  %v4081 = vmax.f32 %v4079, %v4080
  %v4082 = vrot.slane %v4081, 2
  %v4083 = vmax.f32 %v4081, %v4082
  %v4084 = vrot.slane %v4083, 1
  %v4085 = vmax.f32 %v4083, %v4084
  %v4086 = vsel %vm3336, %v2282, -inf
  %v4087 = vrot.slane %v4086, 4
  %v4088 = vmax.f32 %v4086, %v4087
  %v4089 = vrot.slane %v4088, 2
  %v4090 = vmax.f32 %v4088, %v4089
  %v4091 = vrot.slane %v4090, 1
  %v4092 = vmax.f32 %v4090, %v4091
  %v4093 = vsel %vm3336, %v2290, -inf
  %v4094 = vrot.slane %v4093, 4
  %v4095 = vmax.f32 %v4093, %v4094
  %v4096 = vrot.slane %v4095, 2
  %v4097 = vmax.f32 %v4095, %v4096
  %v4098 = vrot.slane %v4097, 1
  %v4099 = vmax.f32 %v4097, %v4098
  %v4100 = vsel %vm3336, %v2298, -inf
  %v4101 = vrot.slane %v4100, 4
  %v4102 = vmax.f32 %v4100, %v4101
  %v4103 = vrot.slane %v4102, 2
  %v4104 = vmax.f32 %v4102, %v4103
  %v4105 = vrot.slane %v4104, 1
  %v4106 = vmax.f32 %v4104, %v4105
  %v4107 = vsel %vm3336, %v2297, -inf
  %v4108 = vrot.slane %v4107, 4
  %v4109 = vmax.f32 %v4107, %v4108
  %v4110 = vrot.slane %v4109, 2
  %v4111 = vmax.f32 %v4109, %v4110
  %v4112 = vrot.slane %v4111, 1
  %v4113 = vmax.f32 %v4111, %v4112
  %v4114 = vsel %vm3336, %v2299, -inf
  %v4115 = vrot.slane %v4114, 4
  %v4116 = vmax.f32 %v4114, %v4115
  %v4117 = vrot.slane %v4116, 2
  %v4118 = vmax.f32 %v4116, %v4117
  %v4119 = vrot.slane %v4118, 1
  %v4120 = vmax.f32 %v4118, %v4119
  %v4121 = vsel %vm3336, %v2307, -inf
  %v4122 = vrot.slane %v4121, 4
  %v4123 = vmax.f32 %v4121, %v4122
  %v4124 = vrot.slane %v4123, 2
  %v4125 = vmax.f32 %v4123, %v4124
  %v4126 = vrot.slane %v4125, 1
  %v4127 = vmax.f32 %v4125, %v4126
  %v4128 = vsel %vm3336, %v2315, -inf
  %v4129 = vrot.slane %v4128, 4
  %v4130 = vmax.f32 %v4128, %v4129
  %v4131 = vrot.slane %v4130, 2
  %v4132 = vmax.f32 %v4130, %v4131
  %v4133 = vrot.slane %v4132, 1
  %v4134 = vmax.f32 %v4132, %v4133
  %v4135 = vsel %vm3336, %v2314, -inf
  %v4136 = vrot.slane %v4135, 4
  %v4137 = vmax.f32 %v4135, %v4136
  %v4138 = vrot.slane %v4137, 2
  %v4139 = vmax.f32 %v4137, %v4138
  %v4140 = vrot.slane %v4139, 1
  %v4141 = vmax.f32 %v4139, %v4140
  %v4142 = vsel %vm3336, %v2316, -inf
  %v4143 = vrot.slane %v4142, 4
  %v4144 = vmax.f32 %v4142, %v4143
  %v4145 = vrot.slane %v4144, 2
  %v4146 = vmax.f32 %v4144, %v4145
  %v4147 = vrot.slane %v4146, 1
  %v4148 = vmax.f32 %v4146, %v4147
  %v4149 = vsel %vm3336, %v2324, -inf
  %v4150 = vrot.slane %v4149, 4
  %v4151 = vmax.f32 %v4149, %v4150
  %v4152 = vrot.slane %v4151, 2
  %v4153 = vmax.f32 %v4151, %v4152
  %v4154 = vrot.slane %v4153, 1
  %v4155 = vmax.f32 %v4153, %v4154
  %v4156 = vsel %vm3336, %v2332, -inf
  %v4157 = vrot.slane %v4156, 4
  %v4158 = vmax.f32 %v4156, %v4157
  %v4159 = vrot.slane %v4158, 2
  %v4160 = vmax.f32 %v4158, %v4159
  %v4161 = vrot.slane %v4160, 1
  %v4162 = vmax.f32 %v4160, %v4161
  %v4163 = vsel %vm3336, %v2331, -inf
  %v4164 = vrot.slane %v4163, 4
  %v4165 = vmax.f32 %v4163, %v4164
  %v4166 = vrot.slane %v4165, 2
  %v4167 = vmax.f32 %v4165, %v4166
  %v4168 = vrot.slane %v4167, 1
  %v4169 = vmax.f32 %v4167, %v4168
  %v4170 = vsel %vm3336, %v2333, -inf
  %v4171 = vrot.slane %v4170, 4
  %v4172 = vmax.f32 %v4170, %v4171
  %v4173 = vrot.slane %v4172, 2
  %v4174 = vmax.f32 %v4172, %v4173
  %v4175 = vrot.slane %v4174, 1
  %v4176 = vmax.f32 %v4174, %v4175
  %v4177 = vsel %vm3336, %v2341, -inf
  %v4178 = vrot.slane %v4177, 4
  %v4179 = vmax.f32 %v4177, %v4178
  %v4180 = vrot.slane %v4179, 2
  %v4181 = vmax.f32 %v4179, %v4180
  %v4182 = vrot.slane %v4181, 1
  %v4183 = vmax.f32 %v4181, %v4182
  %v4184 = vsel %vm3336, %v2349, -inf
  %v4185 = vrot.slane %v4184, 4
  %v4186 = vmax.f32 %v4184, %v4185
  %v4187 = vrot.slane %v4186, 2
  %v4188 = vmax.f32 %v4186, %v4187
  %v4189 = vrot.slane %v4188, 1
  %v4190 = vmax.f32 %v4188, %v4189
  %v4191 = vsel %vm3336, %v2348, -inf
  %v4192 = vrot.slane %v4191, 4
  %v4193 = vmax.f32 %v4191, %v4192
  %v4194 = vrot.slane %v4193, 2
  %v4195 = vmax.f32 %v4193, %v4194
  %v4196 = vrot.slane %v4195, 1
  %v4197 = vmax.f32 %v4195, %v4196
  %v4198 = vsel %vm3336, %v2350, -inf
  %v4199 = vrot.slane %v4198, 4
  %v4200 = vmax.f32 %v4198, %v4199
  %v4201 = vrot.slane %v4200, 2
  %v4202 = vmax.f32 %v4200, %v4201
  %v4203 = vrot.slane %v4202, 1
  %v4204 = vmax.f32 %v4202, %v4203
  %v4205 = vsel %vm3336, %v2358, -inf
  %v4206 = vrot.slane %v4205, 4
  %v4207 = vmax.f32 %v4205, %v4206
  %v4208 = vrot.slane %v4207, 2
  %v4209 = vmax.f32 %v4207, %v4208
  %v4210 = vrot.slane %v4209, 1
  %v4211 = vmax.f32 %v4209, %v4210
  %v4212 = vsel %vm3336, %v2366, -inf
  %v4213 = vrot.slane %v4212, 4
  %v4214 = vmax.f32 %v4212, %v4213
  %v4215 = vrot.slane %v4214, 2
  %v4216 = vmax.f32 %v4214, %v4215
  %v4217 = vrot.slane %v4216, 1
  %v4218 = vmax.f32 %v4216, %v4217
  %v4219 = vsel %vm3336, %v2365, -inf
  %v4220 = vrot.slane %v4219, 4
  %v4221 = vmax.f32 %v4219, %v4220
  %v4222 = vrot.slane %v4221, 2
  %v4223 = vmax.f32 %v4221, %v4222
  %v4224 = vrot.slane %v4223, 1
  %v4225 = vmax.f32 %v4223, %v4224
  %v4226 = vsel %vm3336, %v2367, -inf
  %v4227 = vrot.slane %v4226, 4
  %v4228 = vmax.f32 %v4226, %v4227
  %v4229 = vrot.slane %v4228, 2
  %v4230 = vmax.f32 %v4228, %v4229
  %v4231 = vrot.slane %v4230, 1
  %v4232 = vmax.f32 %v4230, %v4231
  %v4233 = vsel %vm3336, %v2375, -inf
  %v4234 = vrot.slane %v4233, 4
  %v4235 = vmax.f32 %v4233, %v4234
  %v4236 = vrot.slane %v4235, 2
  %v4237 = vmax.f32 %v4235, %v4236
  %v4238 = vrot.slane %v4237, 1
  %v4239 = vmax.f32 %v4237, %v4238
  %v4240 = vsel %vm3336, %v2383, -inf
  %v4241 = vrot.slane %v4240, 4
  %v4242 = vmax.f32 %v4240, %v4241
  %v4243 = vrot.slane %v4242, 2
  %v4244 = vmax.f32 %v4242, %v4243
  %v4245 = vrot.slane %v4244, 1
  %v4246 = vmax.f32 %v4244, %v4245
  %v4247 = vsel %vm3336, %v2382, -inf
  %v4248 = vrot.slane %v4247, 4
  %v4249 = vmax.f32 %v4247, %v4248
  %v4250 = vrot.slane %v4249, 2
  %v4251 = vmax.f32 %v4249, %v4250
  %v4252 = vrot.slane %v4251, 1
  %v4253 = vmax.f32 %v4251, %v4252
  %v4254 = vsel %vm3336, %v2384, -inf
  %v4255 = vrot.slane %v4254, 4
  %v4256 = vmax.f32 %v4254, %v4255
  %v4257 = vrot.slane %v4256, 2
  %v4258 = vmax.f32 %v4256, %v4257
  %v4259 = vrot.slane %v4258, 1
  %v4260 = vmax.f32 %v4258, %v4259
  %v4261 = vsel %vm3336, %v2392, -inf
  %v4262 = vrot.slane %v4261, 4
  %v4263 = vmax.f32 %v4261, %v4262
  %v4264 = vrot.slane %v4263, 2
  %v4265 = vmax.f32 %v4263, %v4264
  %v4266 = vrot.slane %v4265, 1
  %v4267 = vmax.f32 %v4265, %v4266
  %v4268 = vsel %vm3336, %v2400, -inf
  %v4269 = vrot.slane %v4268, 4
  %v4270 = vmax.f32 %v4268, %v4269
  %v4271 = vrot.slane %v4270, 2
  %v4272 = vmax.f32 %v4270, %v4271
  %v4273 = vrot.slane %v4272, 1
  %v4274 = vmax.f32 %v4272, %v4273
  %v4275 = vsel %vm3336, %v2399, -inf
  %v4276 = vrot.slane %v4275, 4
  %v4277 = vmax.f32 %v4275, %v4276
  %v4278 = vrot.slane %v4277, 2
  %v4279 = vmax.f32 %v4277, %v4278
  %v4280 = vrot.slane %v4279, 1
  %v4281 = vmax.f32 %v4279, %v4280
  %v4282 = vsel %vm3336, %v2401, -inf
  %v4283 = vrot.slane %v4282, 4
  %v4284 = vmax.f32 %v4282, %v4283
  %v4285 = vrot.slane %v4284, 2
  %v4286 = vmax.f32 %v4284, %v4285
  %v4287 = vrot.slane %v4286, 1
  %v4288 = vmax.f32 %v4286, %v4287
  %v4289 = vsel %vm3336, %v2409, -inf
  %v4290 = vrot.slane %v4289, 4
  %v4291 = vmax.f32 %v4289, %v4290
  %v4292 = vrot.slane %v4291, 2
  %v4293 = vmax.f32 %v4291, %v4292
  %v4294 = vrot.slane %v4293, 1
  %v4295 = vmax.f32 %v4293, %v4294
  %v4296 = vsel %vm3336, %v2417, -inf
  %v4297 = vrot.slane %v4296, 4
  %v4298 = vmax.f32 %v4296, %v4297
  %v4299 = vrot.slane %v4298, 2
  %v4300 = vmax.f32 %v4298, %v4299
  %v4301 = vrot.slane %v4300, 1
  %v4302 = vmax.f32 %v4300, %v4301
  %v4303 = vsel %vm3336, %v2416, -inf
  %v4304 = vrot.slane %v4303, 4
  %v4305 = vmax.f32 %v4303, %v4304
  %v4306 = vrot.slane %v4305, 2
  %v4307 = vmax.f32 %v4305, %v4306
  %v4308 = vrot.slane %v4307, 1
  %v4309 = vmax.f32 %v4307, %v4308
  %v4310 = vsel %vm3336, %v2418, -inf
  %v4311 = vrot.slane %v4310, 4
  %v4312 = vmax.f32 %v4310, %v4311
  %v4313 = vrot.slane %v4312, 2
  %v4314 = vmax.f32 %v4312, %v4313
  %v4315 = vrot.slane %v4314, 1
  %v4316 = vmax.f32 %v4314, %v4315
  %v4317 = vsel %vm3336, %v2426, -inf
  %v4318 = vrot.slane %v4317, 4
  %v4319 = vmax.f32 %v4317, %v4318
  %v4320 = vrot.slane %v4319, 2
  %v4321 = vmax.f32 %v4319, %v4320
  %v4322 = vrot.slane %v4321, 1
  %v4323 = vmax.f32 %v4321, %v4322
  %v4324 = vsel %vm3336, %v2434, -inf
  %v4325 = vrot.slane %v4324, 4
  %v4326 = vmax.f32 %v4324, %v4325
  %v4327 = vrot.slane %v4326, 2
  %v4328 = vmax.f32 %v4326, %v4327
  %v4329 = vrot.slane %v4328, 1
  %v4330 = vmax.f32 %v4328, %v4329
  %v4331 = vsel %vm3336, %v2433, -inf
  %v4332 = vrot.slane %v4331, 4
  %v4333 = vmax.f32 %v4331, %v4332
  %v4334 = vrot.slane %v4333, 2
  %v4335 = vmax.f32 %v4333, %v4334
  %v4336 = vrot.slane %v4335, 1
  %v4337 = vmax.f32 %v4335, %v4336
  %v4338 = vsel %vm3336, %v2435, -inf
  %v4339 = vrot.slane %v4338, 4
  %v4340 = vmax.f32 %v4338, %v4339
  %v4341 = vrot.slane %v4340, 2
  %v4342 = vmax.f32 %v4340, %v4341
  %v4343 = vrot.slane %v4342, 1
  %v4344 = vmax.f32 %v4342, %v4343
  %v4345 = vsel %vm3336, %v2443, -inf
  %v4346 = vrot.slane %v4345, 4
  %v4347 = vmax.f32 %v4345, %v4346
  %v4348 = vrot.slane %v4347, 2
  %v4349 = vmax.f32 %v4347, %v4348
  %v4350 = vrot.slane %v4349, 1
  %v4351 = vmax.f32 %v4349, %v4350
  %v4352 = vsel %vm3336, %v2451, -inf
  %v4353 = vrot.slane %v4352, 4
  %v4354 = vmax.f32 %v4352, %v4353
  %v4355 = vrot.slane %v4354, 2
  %v4356 = vmax.f32 %v4354, %v4355
  %v4357 = vrot.slane %v4356, 1
  %v4358 = vmax.f32 %v4356, %v4357
  %v4359 = vsel %vm3336, %v2450, -inf
  %v4360 = vrot.slane %v4359, 4
  %v4361 = vmax.f32 %v4359, %v4360
  %v4362 = vrot.slane %v4361, 2
  %v4363 = vmax.f32 %v4361, %v4362
  %v4364 = vrot.slane %v4363, 1
  %v4365 = vmax.f32 %v4363, %v4364
  %v4366 = vsel %vm3336, %v2452, -inf
  %v4367 = vrot.slane %v4366, 4
  %v4368 = vmax.f32 %v4366, %v4367
  %v4369 = vrot.slane %v4368, 2
  %v4370 = vmax.f32 %v4368, %v4369
  %v4371 = vrot.slane %v4370, 1
  %v4372 = vmax.f32 %v4370, %v4371
  %v4373 = vsel %vm3336, %v2460, -inf
  %v4374 = vrot.slane %v4373, 4
  %v4375 = vmax.f32 %v4373, %v4374
  %v4376 = vrot.slane %v4375, 2
  %v4377 = vmax.f32 %v4375, %v4376
  %v4378 = vrot.slane %v4377, 1
  %v4379 = vmax.f32 %v4377, %v4378
  %v4380 = vsel %vm3336, %v2468, -inf
  %v4381 = vrot.slane %v4380, 4
  %v4382 = vmax.f32 %v4380, %v4381
  %v4383 = vrot.slane %v4382, 2
  %v4384 = vmax.f32 %v4382, %v4383
  %v4385 = vrot.slane %v4384, 1
  %v4386 = vmax.f32 %v4384, %v4385
  %v4387 = vsel %vm3336, %v2467, -inf
  %v4388 = vrot.slane %v4387, 4
  %v4389 = vmax.f32 %v4387, %v4388
  %v4390 = vrot.slane %v4389, 2
  %v4391 = vmax.f32 %v4389, %v4390
  %v4392 = vrot.slane %v4391, 1
  %v4393 = vmax.f32 %v4391, %v4392
  %v4394 = vsel %vm3336, %v2469, -inf
  %v4395 = vrot.slane %v4394, 4
  %v4396 = vmax.f32 %v4394, %v4395
  %v4397 = vrot.slane %v4396, 2
  %v4398 = vmax.f32 %v4396, %v4397
  %v4399 = vrot.slane %v4398, 1
  %v4400 = vmax.f32 %v4398, %v4399
  %v4401 = vsel %vm3336, %v2477, -inf
  %v4402 = vrot.slane %v4401, 4
  %v4403 = vmax.f32 %v4401, %v4402
  %v4404 = vrot.slane %v4403, 2
  %v4405 = vmax.f32 %v4403, %v4404
  %v4406 = vrot.slane %v4405, 1
  %v4407 = vmax.f32 %v4405, %v4406
  %v4408 = vsel %vm3336, %v2485, -inf
  %v4409 = vrot.slane %v4408, 4
  %v4410 = vmax.f32 %v4408, %v4409
  %v4411 = vrot.slane %v4410, 2
  %v4412 = vmax.f32 %v4410, %v4411
  %v4413 = vrot.slane %v4412, 1
  %v4414 = vmax.f32 %v4412, %v4413
  %v4415 = vsel %vm3336, %v2484, -inf
  %v4416 = vrot.slane %v4415, 4
  %v4417 = vmax.f32 %v4415, %v4416
  %v4418 = vrot.slane %v4417, 2
  %v4419 = vmax.f32 %v4417, %v4418
  %v4420 = vrot.slane %v4419, 1
  %v4421 = vmax.f32 %v4419, %v4420
  %v4422 = vsel %vm3336, %v2486, -inf
  %v4423 = vrot.slane %v4422, 4
  %v4424 = vmax.f32 %v4422, %v4423
  %v4425 = vrot.slane %v4424, 2
  %v4426 = vmax.f32 %v4424, %v4425
  %v4427 = vrot.slane %v4426, 1
  %v4428 = vmax.f32 %v4426, %v4427
  %v4429 = vsel %vm3336, %v2494, -inf
  %v4430 = vrot.slane %v4429, 4
  %v4431 = vmax.f32 %v4429, %v4430
  %v4432 = vrot.slane %v4431, 2
  %v4433 = vmax.f32 %v4431, %v4432
  %v4434 = vrot.slane %v4433, 1
  %v4435 = vmax.f32 %v4433, %v4434
  %v4436 = vsel %vm3336, %v2502, -inf
  %v4437 = vrot.slane %v4436, 4
  %v4438 = vmax.f32 %v4436, %v4437
  %v4439 = vrot.slane %v4438, 2
  %v4440 = vmax.f32 %v4438, %v4439
  %v4441 = vrot.slane %v4440, 1
  %v4442 = vmax.f32 %v4440, %v4441
  %v4443 = vsel %vm3336, %v2501, -inf
  %v4444 = vrot.slane %v4443, 4
  %v4445 = vmax.f32 %v4443, %v4444
  %v4446 = vrot.slane %v4445, 2
  %v4447 = vmax.f32 %v4445, %v4446
  %v4448 = vrot.slane %v4447, 1
  %v4449 = vmax.f32 %v4447, %v4448
  %v4450 = vsel %vm3336, %v2503, -inf
  %v4451 = vrot.slane %v4450, 4
  %v4452 = vmax.f32 %v4450, %v4451
  %v4453 = vrot.slane %v4452, 2
  %v4454 = vmax.f32 %v4452, %v4453
  %v4455 = vrot.slane %v4454, 1
  %v4456 = vmax.f32 %v4454, %v4455
  %v4457 = vsel %vm3336, %v2511, -inf
  %v4458 = vrot.slane %v4457, 4
  %v4459 = vmax.f32 %v4457, %v4458
  %v4460 = vrot.slane %v4459, 2
  %v4461 = vmax.f32 %v4459, %v4460
  %v4462 = vrot.slane %v4461, 1
  %v4463 = vmax.f32 %v4461, %v4462
  %v4464 = vsel %vm3336, %v2519, -inf
  %v4465 = vrot.slane %v4464, 4
  %v4466 = vmax.f32 %v4464, %v4465
  %v4467 = vrot.slane %v4466, 2
  %v4468 = vmax.f32 %v4466, %v4467
  %v4469 = vrot.slane %v4468, 1
  %v4470 = vmax.f32 %v4468, %v4469
  %v4471 = vsel %vm3336, %v2518, -inf
  %v4472 = vrot.slane %v4471, 4
  %v4473 = vmax.f32 %v4471, %v4472
  %v4474 = vrot.slane %v4473, 2
  %v4475 = vmax.f32 %v4473, %v4474
  %v4476 = vrot.slane %v4475, 1
  %v4477 = vmax.f32 %v4475, %v4476
  %v4478 = vsel %vm3336, %v2520, -inf
  %v4479 = vrot.slane %v4478, 4
  %v4480 = vmax.f32 %v4478, %v4479
  %v4481 = vrot.slane %v4480, 2
  %v4482 = vmax.f32 %v4480, %v4481
  %v4483 = vrot.slane %v4482, 1
  %v4484 = vmax.f32 %v4482, %v4483
  %v4485 = vsel %vm3336, %v2528, -inf
  %v4486 = vrot.slane %v4485, 4
  %v4487 = vmax.f32 %v4485, %v4486
  %v4488 = vrot.slane %v4487, 2
  %v4489 = vmax.f32 %v4487, %v4488
  %v4490 = vrot.slane %v4489, 1
  %v4491 = vmax.f32 %v4489, %v4490
  %v4492 = vsel %vm3336, %v2536, -inf
  %v4493 = vrot.slane %v4492, 4
  %v4494 = vmax.f32 %v4492, %v4493
  %v4495 = vrot.slane %v4494, 2
  %v4496 = vmax.f32 %v4494, %v4495
  %v4497 = vrot.slane %v4496, 1
  %v4498 = vmax.f32 %v4496, %v4497
  %v4499 = vsel %vm3336, %v2535, -inf
  %v4500 = vrot.slane %v4499, 4
  %v4501 = vmax.f32 %v4499, %v4500
  %v4502 = vrot.slane %v4501, 2
  %v4503 = vmax.f32 %v4501, %v4502
  %v4504 = vrot.slane %v4503, 1
  %v4505 = vmax.f32 %v4503, %v4504
  %v4506 = vsel %vm3336, %v2537, -inf
  %v4507 = vrot.slane %v4506, 4
  %v4508 = vmax.f32 %v4506, %v4507
  %v4509 = vrot.slane %v4508, 2
  %v4510 = vmax.f32 %v4508, %v4509
  %v4511 = vrot.slane %v4510, 1
  %v4512 = vmax.f32 %v4510, %v4511
  %v4513 = vsel %vm3336, %v2545, -inf
  %v4514 = vrot.slane %v4513, 4
  %v4515 = vmax.f32 %v4513, %v4514
  %v4516 = vrot.slane %v4515, 2
  %v4517 = vmax.f32 %v4515, %v4516
  %v4518 = vrot.slane %v4517, 1
  %v4519 = vmax.f32 %v4517, %v4518
  %v4520 = vsel %vm3336, %v2553, -inf
  %v4521 = vrot.slane %v4520, 4
  %v4522 = vmax.f32 %v4520, %v4521
  %v4523 = vrot.slane %v4522, 2
  %v4524 = vmax.f32 %v4522, %v4523
  %v4525 = vrot.slane %v4524, 1
  %v4526 = vmax.f32 %v4524, %v4525
  %v4527 = vsel %vm3336, %v2552, -inf
  %v4528 = vrot.slane %v4527, 4
  %v4529 = vmax.f32 %v4527, %v4528
  %v4530 = vrot.slane %v4529, 2
  %v4531 = vmax.f32 %v4529, %v4530
  %v4532 = vrot.slane %v4531, 1
  %v4533 = vmax.f32 %v4531, %v4532
  %v4534 = vsel %vm3336, %v2554, -inf
  %v4535 = vrot.slane %v4534, 4
  %v4536 = vmax.f32 %v4534, %v4535
  %v4537 = vrot.slane %v4536, 2
  %v4538 = vmax.f32 %v4536, %v4537
  %v4539 = vrot.slane %v4538, 1
  %v4540 = vmax.f32 %v4538, %v4539
  %v4541 = vsel %vm3336, %v2562, -inf
  %v4542 = vrot.slane %v4541, 4
  %v4543 = vmax.f32 %v4541, %v4542
  %v4544 = vrot.slane %v4543, 2
  %v4545 = vmax.f32 %v4543, %v4544
  %v4546 = vrot.slane %v4545, 1
  %v4547 = vmax.f32 %v4545, %v4546
  %v4548 = vsel %vm3336, %v2570, -inf
  %v4549 = vrot.slane %v4548, 4
  %v4550 = vmax.f32 %v4548, %v4549
  %v4551 = vrot.slane %v4550, 2
  %v4552 = vmax.f32 %v4550, %v4551
  %v4553 = vrot.slane %v4552, 1
  %v4554 = vmax.f32 %v4552, %v4553
  %v4555 = vsel %vm3336, %v2569, -inf
  %v4556 = vrot.slane %v4555, 4
  %v4557 = vmax.f32 %v4555, %v4556
  %v4558 = vrot.slane %v4557, 2
  %v4559 = vmax.f32 %v4557, %v4558
  %v4560 = vrot.slane %v4559, 1
  %v4561 = vmax.f32 %v4559, %v4560
  %v4562 = vsel %vm3336, %v2571, -inf
  %v4563 = vrot.slane %v4562, 4
  %v4564 = vmax.f32 %v4562, %v4563
  %v4565 = vrot.slane %v4564, 2
  %v4566 = vmax.f32 %v4564, %v4565
  %v4567 = vrot.slane %v4566, 1
  %v4568 = vmax.f32 %v4566, %v4567
  %v4569 = vsel %vm3336, %v2579, -inf
  %v4570 = vrot.slane %v4569, 4
  %v4571 = vmax.f32 %v4569, %v4570
  %v4572 = vrot.slane %v4571, 2
  %v4573 = vmax.f32 %v4571, %v4572
  %v4574 = vrot.slane %v4573, 1
  %v4575 = vmax.f32 %v4573, %v4574
  %v4576 = vsel %vm3336, %v2587, -inf
  %v4577 = vrot.slane %v4576, 4
  %v4578 = vmax.f32 %v4576, %v4577
  %v4579 = vrot.slane %v4578, 2
  %v4580 = vmax.f32 %v4578, %v4579
  %v4581 = vrot.slane %v4580, 1
  %v4582 = vmax.f32 %v4580, %v4581
  %v4583 = vsel %vm3336, %v2586, -inf
  %v4584 = vrot.slane %v4583, 4
  %v4585 = vmax.f32 %v4583, %v4584
  %v4586 = vrot.slane %v4585, 2
  %v4587 = vmax.f32 %v4585, %v4586
  %v4588 = vrot.slane %v4587, 1
  %v4589 = vmax.f32 %v4587, %v4588
  %v4590 = vsel %vm3336, %v2588, -inf
  %v4591 = vrot.slane %v4590, 4
  %v4592 = vmax.f32 %v4590, %v4591
  %v4593 = vrot.slane %v4592, 2
  %v4594 = vmax.f32 %v4592, %v4593
  %v4595 = vrot.slane %v4594, 1
  %v4596 = vmax.f32 %v4594, %v4595
  %v4597 = vsel %vm3336, %v2596, -inf
  %v4598 = vrot.slane %v4597, 4
  %v4599 = vmax.f32 %v4597, %v4598
  %v4600 = vrot.slane %v4599, 2
  %v4601 = vmax.f32 %v4599, %v4600
  %v4602 = vrot.slane %v4601, 1
  %v4603 = vmax.f32 %v4601, %v4602
  %v4604 = vsel %vm3336, %v2604, -inf
  %v4605 = vrot.slane %v4604, 4
  %v4606 = vmax.f32 %v4604, %v4605
  %v4607 = vrot.slane %v4606, 2
  %v4608 = vmax.f32 %v4606, %v4607
  %v4609 = vrot.slane %v4608, 1
  %v4610 = vmax.f32 %v4608, %v4609
  %v4611 = vsel %vm3336, %v2603, -inf
  %v4612 = vrot.slane %v4611, 4
  %v4613 = vmax.f32 %v4611, %v4612
  %v4614 = vrot.slane %v4613, 2
  %v4615 = vmax.f32 %v4613, %v4614
  %v4616 = vrot.slane %v4615, 1
  %v4617 = vmax.f32 %v4615, %v4616
  %v4618 = vsel %vm3336, %v2605, -inf
  %v4619 = vrot.slane %v4618, 4
  %v4620 = vmax.f32 %v4618, %v4619
  %v4621 = vrot.slane %v4620, 2
  %v4622 = vmax.f32 %v4620, %v4621
  %v4623 = vrot.slane %v4622, 1
  %v4624 = vmax.f32 %v4622, %v4623
  %v4625 = vsel %vm3336, %v2613, -inf
  %v4626 = vrot.slane %v4625, 4
  %v4627 = vmax.f32 %v4625, %v4626
  %v4628 = vrot.slane %v4627, 2
  %v4629 = vmax.f32 %v4627, %v4628
  %v4630 = vrot.slane %v4629, 1
  %v4631 = vmax.f32 %v4629, %v4630
  %v4632 = vsel %vm3336, %v2621, -inf
  %v4633 = vrot.slane %v4632, 4
  %v4634 = vmax.f32 %v4632, %v4633
  %v4635 = vrot.slane %v4634, 2
  %v4636 = vmax.f32 %v4634, %v4635
  %v4637 = vrot.slane %v4636, 1
  %v4638 = vmax.f32 %v4636, %v4637
  %v4639 = vsel %vm3336, %v2620, -inf
  %v4640 = vrot.slane %v4639, 4
  %v4641 = vmax.f32 %v4639, %v4640
  %v4642 = vrot.slane %v4641, 2
  %v4643 = vmax.f32 %v4641, %v4642
  %v4644 = vrot.slane %v4643, 1
  %v4645 = vmax.f32 %v4643, %v4644
  %v4646 = vsel %vm3336, %v2622, -inf
  %v4647 = vrot.slane %v4646, 4
  %v4648 = vmax.f32 %v4646, %v4647
  %v4649 = vrot.slane %v4648, 2
  %v4650 = vmax.f32 %v4648, %v4649
  %v4651 = vrot.slane %v4650, 1
  %v4652 = vmax.f32 %v4650, %v4651
  %v4653 = vsel %vm3336, %v2630, -inf
  %v4654 = vrot.slane %v4653, 4
  %v4655 = vmax.f32 %v4653, %v4654
  %v4656 = vrot.slane %v4655, 2
  %v4657 = vmax.f32 %v4655, %v4656
  %v4658 = vrot.slane %v4657, 1
  %v4659 = vmax.f32 %v4657, %v4658
  %v4660 = vsel %vm3336, %v2638, -inf
  %v4661 = vrot.slane %v4660, 4
  %v4662 = vmax.f32 %v4660, %v4661
  %v4663 = vrot.slane %v4662, 2
  %v4664 = vmax.f32 %v4662, %v4663
  %v4665 = vrot.slane %v4664, 1
  %v4666 = vmax.f32 %v4664, %v4665
  %v4667 = vsel %vm3336, %v2637, -inf
  %v4668 = vrot.slane %v4667, 4
  %v4669 = vmax.f32 %v4667, %v4668
  %v4670 = vrot.slane %v4669, 2
  %v4671 = vmax.f32 %v4669, %v4670
  %v4672 = vrot.slane %v4671, 1
  %v4673 = vmax.f32 %v4671, %v4672
  %v4674 = vsel %vm3336, %v2639, -inf
  %v4675 = vrot.slane %v4674, 4
  %v4676 = vmax.f32 %v4674, %v4675
  %v4677 = vrot.slane %v4676, 2
  %v4678 = vmax.f32 %v4676, %v4677
  %v4679 = vrot.slane %v4678, 1
  %v4680 = vmax.f32 %v4678, %v4679
  %v4681 = vsel %vm3336, %v2647, -inf
  %v4682 = vrot.slane %v4681, 4
  %v4683 = vmax.f32 %v4681, %v4682
  %v4684 = vrot.slane %v4683, 2
  %v4685 = vmax.f32 %v4683, %v4684
  %v4686 = vrot.slane %v4685, 1
  %v4687 = vmax.f32 %v4685, %v4686
  %v4688 = vsel %vm3336, %v2655, -inf
  %v4689 = vrot.slane %v4688, 4
  %v4690 = vmax.f32 %v4688, %v4689
  %v4691 = vrot.slane %v4690, 2
  %v4692 = vmax.f32 %v4690, %v4691
  %v4693 = vrot.slane %v4692, 1
  %v4694 = vmax.f32 %v4692, %v4693
  %v4695 = vsel %vm3336, %v2654, -inf
  %v4696 = vrot.slane %v4695, 4
  %v4697 = vmax.f32 %v4695, %v4696
  %v4698 = vrot.slane %v4697, 2
  %v4699 = vmax.f32 %v4697, %v4698
  %v4700 = vrot.slane %v4699, 1
  %v4701 = vmax.f32 %v4699, %v4700
  %v4702 = vsel %vm3336, %v2656, -inf
  %v4703 = vrot.slane %v4702, 4
  %v4704 = vmax.f32 %v4702, %v4703
  %v4705 = vrot.slane %v4704, 2
  %v4706 = vmax.f32 %v4704, %v4705
  %v4707 = vrot.slane %v4706, 1
  %v4708 = vmax.f32 %v4706, %v4707
  %v4709 = vsel %vm3336, %v2664, -inf
  %v4710 = vrot.slane %v4709, 4
  %v4711 = vmax.f32 %v4709, %v4710
  %v4712 = vrot.slane %v4711, 2
  %v4713 = vmax.f32 %v4711, %v4712
  %v4714 = vrot.slane %v4713, 1
  %v4715 = vmax.f32 %v4713, %v4714
  %v4716 = vsel %vm3336, %v2672, -inf
  %v4717 = vrot.slane %v4716, 4
  %v4718 = vmax.f32 %v4716, %v4717
  %v4719 = vrot.slane %v4718, 2
  %v4720 = vmax.f32 %v4718, %v4719
  %v4721 = vrot.slane %v4720, 1
  %v4722 = vmax.f32 %v4720, %v4721
  %v4723 = vsel %vm3336, %v2671, -inf
  %v4724 = vrot.slane %v4723, 4
  %v4725 = vmax.f32 %v4723, %v4724
  %v4726 = vrot.slane %v4725, 2
  %v4727 = vmax.f32 %v4725, %v4726
  %v4728 = vrot.slane %v4727, 1
  %v4729 = vmax.f32 %v4727, %v4728
  %v4730 = vsel %vm3336, %v2673, -inf
  %v4731 = vrot.slane %v4730, 4
  %v4732 = vmax.f32 %v4730, %v4731
  %v4733 = vrot.slane %v4732, 2
  %v4734 = vmax.f32 %v4732, %v4733
  %v4735 = vrot.slane %v4734, 1
  %v4736 = vmax.f32 %v4734, %v4735
  %v4737 = vsel %vm3336, %v2681, -inf
  %v4738 = vrot.slane %v4737, 4
  %v4739 = vmax.f32 %v4737, %v4738
  %v4740 = vrot.slane %v4739, 2
  %v4741 = vmax.f32 %v4739, %v4740
  %v4742 = vrot.slane %v4741, 1
  %v4743 = vmax.f32 %v4741, %v4742
  %v4744 = vsel %vm3336, %v2689, -inf
  %v4745 = vrot.slane %v4744, 4
  %v4746 = vmax.f32 %v4744, %v4745
  %v4747 = vrot.slane %v4746, 2
  %v4748 = vmax.f32 %v4746, %v4747
  %v4749 = vrot.slane %v4748, 1
  %v4750 = vmax.f32 %v4748, %v4749
  %v4751 = vsel %vm3336, %v2688, -inf
  %v4752 = vrot.slane %v4751, 4
  %v4753 = vmax.f32 %v4751, %v4752
  %v4754 = vrot.slane %v4753, 2
  %v4755 = vmax.f32 %v4753, %v4754
  %v4756 = vrot.slane %v4755, 1
  %v4757 = vmax.f32 %v4755, %v4756
  %v4758 = vsel %vm3336, %v2690, -inf
  %v4759 = vrot.slane %v4758, 4
  %v4760 = vmax.f32 %v4758, %v4759
  %v4761 = vrot.slane %v4760, 2
  %v4762 = vmax.f32 %v4760, %v4761
  %v4763 = vrot.slane %v4762, 1
  %v4764 = vmax.f32 %v4762, %v4763
  %v4765 = vsel %vm3336, %v2698, -inf
  %v4766 = vrot.slane %v4765, 4
  %v4767 = vmax.f32 %v4765, %v4766
  %v4768 = vrot.slane %v4767, 2
  %v4769 = vmax.f32 %v4767, %v4768
  %v4770 = vrot.slane %v4769, 1
  %v4771 = vmax.f32 %v4769, %v4770
  %v4772 = vsel %vm3336, %v2706, -inf
  %v4773 = vrot.slane %v4772, 4
  %v4774 = vmax.f32 %v4772, %v4773
  %v4775 = vrot.slane %v4774, 2
  %v4776 = vmax.f32 %v4774, %v4775
  %v4777 = vrot.slane %v4776, 1
  %v4778 = vmax.f32 %v4776, %v4777
  %v4779 = vsel %vm3336, %v2705, -inf
  %v4780 = vrot.slane %v4779, 4
  %v4781 = vmax.f32 %v4779, %v4780
  %v4782 = vrot.slane %v4781, 2
  %v4783 = vmax.f32 %v4781, %v4782
  %v4784 = vrot.slane %v4783, 1
  %v4785 = vmax.f32 %v4783, %v4784
  %v4786 = vsel %vm3336, %v2707, -inf
  %v4787 = vrot.slane %v4786, 4
  %v4788 = vmax.f32 %v4786, %v4787
  %v4789 = vrot.slane %v4788, 2
  %v4790 = vmax.f32 %v4788, %v4789
  %v4791 = vrot.slane %v4790, 1
  %v4792 = vmax.f32 %v4790, %v4791
  %v4793 = vsel %vm3336, %v2715, -inf
  %v4794 = vrot.slane %v4793, 4
  %v4795 = vmax.f32 %v4793, %v4794
  %v4796 = vrot.slane %v4795, 2
  %v4797 = vmax.f32 %v4795, %v4796
  %v4798 = vrot.slane %v4797, 1
  %v4799 = vmax.f32 %v4797, %v4798
  %v4800 = vsel %vm3336, %v2723, -inf
  %v4801 = vrot.slane %v4800, 4
  %v4802 = vmax.f32 %v4800, %v4801
  %v4803 = vrot.slane %v4802, 2
  %v4804 = vmax.f32 %v4802, %v4803
  %v4805 = vrot.slane %v4804, 1
  %v4806 = vmax.f32 %v4804, %v4805
  %v4807 = vsel %vm3336, %v2722, -inf
  %v4808 = vrot.slane %v4807, 4
  %v4809 = vmax.f32 %v4807, %v4808
  %v4810 = vrot.slane %v4809, 2
  %v4811 = vmax.f32 %v4809, %v4810
  %v4812 = vrot.slane %v4811, 1
  %v4813 = vmax.f32 %v4811, %v4812
  %v4814 = vsel %vm3336, %v2724, -inf
  %v4815 = vrot.slane %v4814, 4
  %v4816 = vmax.f32 %v4814, %v4815
  %v4817 = vrot.slane %v4816, 2
  %v4818 = vmax.f32 %v4816, %v4817
  %v4819 = vrot.slane %v4818, 1
  %v4820 = vmax.f32 %v4818, %v4819
  %v4821 = vsel %vm3336, %v2732, -inf
  %v4822 = vrot.slane %v4821, 4
  %v4823 = vmax.f32 %v4821, %v4822
  %v4824 = vrot.slane %v4823, 2
  %v4825 = vmax.f32 %v4823, %v4824
  %v4826 = vrot.slane %v4825, 1
  %v4827 = vmax.f32 %v4825, %v4826
  %v4828 = vsel %vm3336, %v2740, -inf
  %v4829 = vrot.slane %v4828, 4
  %v4830 = vmax.f32 %v4828, %v4829
  %v4831 = vrot.slane %v4830, 2
  %v4832 = vmax.f32 %v4830, %v4831
  %v4833 = vrot.slane %v4832, 1
  %v4834 = vmax.f32 %v4832, %v4833
  %v4835 = vsel %vm3336, %v2739, -inf
  %v4836 = vrot.slane %v4835, 4
  %v4837 = vmax.f32 %v4835, %v4836
  %v4838 = vrot.slane %v4837, 2
  %v4839 = vmax.f32 %v4837, %v4838
  %v4840 = vrot.slane %v4839, 1
  %v4841 = vmax.f32 %v4839, %v4840
  %v4842 = vsel %vm3336, %v2741, -inf
  %v4843 = vrot.slane %v4842, 4
  %v4844 = vmax.f32 %v4842, %v4843
  %v4845 = vrot.slane %v4844, 2
  %v4846 = vmax.f32 %v4844, %v4845
  %v4847 = vrot.slane %v4846, 1
  %v4848 = vmax.f32 %v4846, %v4847
  %v4849 = vsel %vm3336, %v2749, -inf
  %v4850 = vrot.slane %v4849, 4
  %v4851 = vmax.f32 %v4849, %v4850
  %v4852 = vrot.slane %v4851, 2
  %v4853 = vmax.f32 %v4851, %v4852
  %v4854 = vrot.slane %v4853, 1
  %v4855 = vmax.f32 %v4853, %v4854
  %v4856 = vsel %vm3336, %v2757, -inf
  %v4857 = vrot.slane %v4856, 4
  %v4858 = vmax.f32 %v4856, %v4857
  %v4859 = vrot.slane %v4858, 2
  %v4860 = vmax.f32 %v4858, %v4859
  %v4861 = vrot.slane %v4860, 1
  %v4862 = vmax.f32 %v4860, %v4861
  %v4863 = vsel %vm3336, %v2756, -inf
  %v4864 = vrot.slane %v4863, 4
  %v4865 = vmax.f32 %v4863, %v4864
  %v4866 = vrot.slane %v4865, 2
  %v4867 = vmax.f32 %v4865, %v4866
  %v4868 = vrot.slane %v4867, 1
  %v4869 = vmax.f32 %v4867, %v4868
  %v4870 = vsel %vm3336, %v2758, -inf
  %v4871 = vrot.slane %v4870, 4
  %v4872 = vmax.f32 %v4870, %v4871
  %v4873 = vrot.slane %v4872, 2
  %v4874 = vmax.f32 %v4872, %v4873
  %v4875 = vrot.slane %v4874, 1
  %v4876 = vmax.f32 %v4874, %v4875
  %v4877 = vsel %vm3336, %v2766, -inf
  %v4878 = vrot.slane %v4877, 4
  %v4879 = vmax.f32 %v4877, %v4878
  %v4880 = vrot.slane %v4879, 2
  %v4881 = vmax.f32 %v4879, %v4880
  %v4882 = vrot.slane %v4881, 1
  %v4883 = vmax.f32 %v4881, %v4882
  %v4884 = vsel %vm3336, %v2774, -inf
  %v4885 = vrot.slane %v4884, 4
  %v4886 = vmax.f32 %v4884, %v4885
  %v4887 = vrot.slane %v4886, 2
  %v4888 = vmax.f32 %v4886, %v4887
  %v4889 = vrot.slane %v4888, 1
  %v4890 = vmax.f32 %v4888, %v4889
  %v4891 = vsel %vm3336, %v2773, -inf
  %v4892 = vrot.slane %v4891, 4
  %v4893 = vmax.f32 %v4891, %v4892
  %v4894 = vrot.slane %v4893, 2
  %v4895 = vmax.f32 %v4893, %v4894
  %v4896 = vrot.slane %v4895, 1
  %v4897 = vmax.f32 %v4895, %v4896
  %v4898 = vsel %vm3336, %v2775, -inf
  %v4899 = vrot.slane %v4898, 4
  %v4900 = vmax.f32 %v4898, %v4899
  %v4901 = vrot.slane %v4900, 2
  %v4902 = vmax.f32 %v4900, %v4901
  %v4903 = vrot.slane %v4902, 1
  %v4904 = vmax.f32 %v4902, %v4903
  %v4905 = vsel %vm3336, %v2783, -inf
  %v4906 = vrot.slane %v4905, 4
  %v4907 = vmax.f32 %v4905, %v4906
  %v4908 = vrot.slane %v4907, 2
  %v4909 = vmax.f32 %v4907, %v4908
  %v4910 = vrot.slane %v4909, 1
  %v4911 = vmax.f32 %v4909, %v4910
  %v4912 = vsel %vm3336, %v2791, -inf
  %v4913 = vrot.slane %v4912, 4
  %v4914 = vmax.f32 %v4912, %v4913
  %v4915 = vrot.slane %v4914, 2
  %v4916 = vmax.f32 %v4914, %v4915
  %v4917 = vrot.slane %v4916, 1
  %v4918 = vmax.f32 %v4916, %v4917
  %v4919 = vsel %vm3336, %v2790, -inf
  %v4920 = vrot.slane %v4919, 4
  %v4921 = vmax.f32 %v4919, %v4920
  %v4922 = vrot.slane %v4921, 2
  %v4923 = vmax.f32 %v4921, %v4922
  %v4924 = vrot.slane %v4923, 1
  %v4925 = vmax.f32 %v4923, %v4924
  %v4926 = vsel %vm3336, %v2792, -inf
  %v4927 = vrot.slane %v4926, 4
  %v4928 = vmax.f32 %v4926, %v4927
  %v4929 = vrot.slane %v4928, 2
  %v4930 = vmax.f32 %v4928, %v4929
  %v4931 = vrot.slane %v4930, 1
  %v4932 = vmax.f32 %v4930, %v4931
  %v4933 = vsel %vm3336, %v2800, -inf
  %v4934 = vrot.slane %v4933, 4
  %v4935 = vmax.f32 %v4933, %v4934
  %v4936 = vrot.slane %v4935, 2
  %v4937 = vmax.f32 %v4935, %v4936
  %v4938 = vrot.slane %v4937, 1
  %v4939 = vmax.f32 %v4937, %v4938
  %v4940 = vsel %vm3336, %v2808, -inf
  %v4941 = vrot.slane %v4940, 4
  %v4942 = vmax.f32 %v4940, %v4941
  %v4943 = vrot.slane %v4942, 2
  %v4944 = vmax.f32 %v4942, %v4943
  %v4945 = vrot.slane %v4944, 1
  %v4946 = vmax.f32 %v4944, %v4945
  %v4947 = vsel %vm3336, %v2807, -inf
  %v4948 = vrot.slane %v4947, 4
  %v4949 = vmax.f32 %v4947, %v4948
  %v4950 = vrot.slane %v4949, 2
  %v4951 = vmax.f32 %v4949, %v4950
  %v4952 = vrot.slane %v4951, 1
  %v4953 = vmax.f32 %v4951, %v4952
  %v4954 = vsel %vm3336, %v2809, -inf
  %v4955 = vrot.slane %v4954, 4
  %v4956 = vmax.f32 %v4954, %v4955
  %v4957 = vrot.slane %v4956, 2
  %v4958 = vmax.f32 %v4956, %v4957
  %v4959 = vrot.slane %v4958, 1
  %v4960 = vmax.f32 %v4958, %v4959
  %v4961 = vsel %vm3336, %v2817, -inf
  %v4962 = vrot.slane %v4961, 4
  %v4963 = vmax.f32 %v4961, %v4962
  %v4964 = vrot.slane %v4963, 2
  %v4965 = vmax.f32 %v4963, %v4964
  %v4966 = vrot.slane %v4965, 1
  %v4967 = vmax.f32 %v4965, %v4966
  %v4968 = vsel %vm3336, %v2825, -inf
  %v4969 = vrot.slane %v4968, 4
  %v4970 = vmax.f32 %v4968, %v4969
  %v4971 = vrot.slane %v4970, 2
  %v4972 = vmax.f32 %v4970, %v4971
  %v4973 = vrot.slane %v4972, 1
  %v4974 = vmax.f32 %v4972, %v4973
  %v4975 = vsel %vm3336, %v2824, -inf
  %v4976 = vrot.slane %v4975, 4
  %v4977 = vmax.f32 %v4975, %v4976
  %v4978 = vrot.slane %v4977, 2
  %v4979 = vmax.f32 %v4977, %v4978
  %v4980 = vrot.slane %v4979, 1
  %v4981 = vmax.f32 %v4979, %v4980
  %v4982 = vsel %vm3336, %v2826, -inf
  %v4983 = vrot.slane %v4982, 4
  %v4984 = vmax.f32 %v4982, %v4983
  %v4985 = vrot.slane %v4984, 2
  %v4986 = vmax.f32 %v4984, %v4985
  %v4987 = vrot.slane %v4986, 1
  %v4988 = vmax.f32 %v4986, %v4987
  %v4989 = vsel %vm3336, %v2834, -inf
  %v4990 = vrot.slane %v4989, 4
  %v4991 = vmax.f32 %v4989, %v4990
  %v4992 = vrot.slane %v4991, 2
  %v4993 = vmax.f32 %v4991, %v4992
  %v4994 = vrot.slane %v4993, 1
  %v4995 = vmax.f32 %v4993, %v4994
  %v4996 = vsel %vm3336, %v2842, -inf
  %v4997 = vrot.slane %v4996, 4
  %v4998 = vmax.f32 %v4996, %v4997
  %v4999 = vrot.slane %v4998, 2
  %v5000 = vmax.f32 %v4998, %v4999
  %v5001 = vrot.slane %v5000, 1
  %v5002 = vmax.f32 %v5000, %v5001
  %v5003 = vsel %vm3336, %v2841, -inf
  %v5004 = vrot.slane %v5003, 4
  %v5005 = vmax.f32 %v5003, %v5004
  %v5006 = vrot.slane %v5005, 2
  %v5007 = vmax.f32 %v5005, %v5006
  %v5008 = vrot.slane %v5007, 1
  %v5009 = vmax.f32 %v5007, %v5008
  %v5010 = vsel %vm3336, %v2843, -inf
  %v5011 = vrot.slane %v5010, 4
  %v5012 = vmax.f32 %v5010, %v5011
  %v5013 = vrot.slane %v5012, 2
  %v5014 = vmax.f32 %v5012, %v5013
  %v5015 = vrot.slane %v5014, 1
  %v5016 = vmax.f32 %v5014, %v5015
  %v5017 = vsel %vm3336, %v2851, -inf
  %v5018 = vrot.slane %v5017, 4
  %v5019 = vmax.f32 %v5017, %v5018
  %v5020 = vrot.slane %v5019, 2
  %v5021 = vmax.f32 %v5019, %v5020
  %v5022 = vrot.slane %v5021, 1
  %v5023 = vmax.f32 %v5021, %v5022
  %v5024 = vsel %vm3336, %v2859, -inf
  %v5025 = vrot.slane %v5024, 4
  %v5026 = vmax.f32 %v5024, %v5025
  %v5027 = vrot.slane %v5026, 2
  %v5028 = vmax.f32 %v5026, %v5027
  %v5029 = vrot.slane %v5028, 1
  %v5030 = vmax.f32 %v5028, %v5029
  %v5031 = vsel %vm3336, %v2858, -inf
  %v5032 = vrot.slane %v5031, 4
  %v5033 = vmax.f32 %v5031, %v5032
  %v5034 = vrot.slane %v5033, 2
  %v5035 = vmax.f32 %v5033, %v5034
  %v5036 = vrot.slane %v5035, 1
  %v5037 = vmax.f32 %v5035, %v5036
  %v5038 = vsel %vm3336, %v2860, -inf
  %v5039 = vrot.slane %v5038, 4
  %v5040 = vmax.f32 %v5038, %v5039
  %v5041 = vrot.slane %v5040, 2
  %v5042 = vmax.f32 %v5040, %v5041
  %v5043 = vrot.slane %v5042, 1
  %v5044 = vmax.f32 %v5042, %v5043
  %v5045 = vsel %vm3336, %v2868, -inf
  %v5046 = vrot.slane %v5045, 4
  %v5047 = vmax.f32 %v5045, %v5046
  %v5048 = vrot.slane %v5047, 2
  %v5049 = vmax.f32 %v5047, %v5048
  %v5050 = vrot.slane %v5049, 1
  %v5051 = vmax.f32 %v5049, %v5050
  %v5052 = vsel %vm3336, %v2876, -inf
  %v5053 = vrot.slane %v5052, 4
  %v5054 = vmax.f32 %v5052, %v5053
  %v5055 = vrot.slane %v5054, 2
  %v5056 = vmax.f32 %v5054, %v5055
  %v5057 = vrot.slane %v5056, 1
  %v5058 = vmax.f32 %v5056, %v5057
  %v5059 = vsel %vm3336, %v2875, -inf
  %v5060 = vrot.slane %v5059, 4
  %v5061 = vmax.f32 %v5059, %v5060
  %v5062 = vrot.slane %v5061, 2
  %v5063 = vmax.f32 %v5061, %v5062
  %v5064 = vrot.slane %v5063, 1
  %v5065 = vmax.f32 %v5063, %v5064
  %v5066 = vsel %vm3336, %v2877, -inf
  %v5067 = vrot.slane %v5066, 4
  %v5068 = vmax.f32 %v5066, %v5067
  %v5069 = vrot.slane %v5068, 2
  %v5070 = vmax.f32 %v5068, %v5069
  %v5071 = vrot.slane %v5070, 1
  %v5072 = vmax.f32 %v5070, %v5071
  %v5073 = vsel %vm3336, %v2885, -inf
  %v5074 = vrot.slane %v5073, 4
  %v5075 = vmax.f32 %v5073, %v5074
  %v5076 = vrot.slane %v5075, 2
  %v5077 = vmax.f32 %v5075, %v5076
  %v5078 = vrot.slane %v5077, 1
  %v5079 = vmax.f32 %v5077, %v5078
  %v5080 = vsel %vm3336, %v2893, -inf
  %v5081 = vrot.slane %v5080, 4
  %v5082 = vmax.f32 %v5080, %v5081
  %v5083 = vrot.slane %v5082, 2
  %v5084 = vmax.f32 %v5082, %v5083
  %v5085 = vrot.slane %v5084, 1
  %v5086 = vmax.f32 %v5084, %v5085
  %v5087 = vsel %vm3336, %v2892, -inf
  %v5088 = vrot.slane %v5087, 4
  %v5089 = vmax.f32 %v5087, %v5088
  %v5090 = vrot.slane %v5089, 2
  %v5091 = vmax.f32 %v5089, %v5090
  %v5092 = vrot.slane %v5091, 1
  %v5093 = vmax.f32 %v5091, %v5092
  %v5094 = vsel %vm3336, %v2894, -inf
  %v5095 = vrot.slane %v5094, 4
  %v5096 = vmax.f32 %v5094, %v5095
  %v5097 = vrot.slane %v5096, 2
  %v5098 = vmax.f32 %v5096, %v5097
  %v5099 = vrot.slane %v5098, 1
  %v5100 = vmax.f32 %v5098, %v5099
  %v5101 = vsel %vm3336, %v2902, -inf
  %v5102 = vrot.slane %v5101, 4
  %v5103 = vmax.f32 %v5101, %v5102
  %v5104 = vrot.slane %v5103, 2
  %v5105 = vmax.f32 %v5103, %v5104
  %v5106 = vrot.slane %v5105, 1
  %v5107 = vmax.f32 %v5105, %v5106
  %v5108 = vsel %vm3336, %v2910, -inf
  %v5109 = vrot.slane %v5108, 4
  %v5110 = vmax.f32 %v5108, %v5109
  %v5111 = vrot.slane %v5110, 2
  %v5112 = vmax.f32 %v5110, %v5111
  %v5113 = vrot.slane %v5112, 1
  %v5114 = vmax.f32 %v5112, %v5113
  %v5115 = vsel %vm3336, %v2909, -inf
  %v5116 = vrot.slane %v5115, 4
  %v5117 = vmax.f32 %v5115, %v5116
  %v5118 = vrot.slane %v5117, 2
  %v5119 = vmax.f32 %v5117, %v5118
  %v5120 = vrot.slane %v5119, 1
  %v5121 = vmax.f32 %v5119, %v5120
  %v5122 = vsel %vm3336, %v2911, -inf
  %v5123 = vrot.slane %v5122, 4
  %v5124 = vmax.f32 %v5122, %v5123
  %v5125 = vrot.slane %v5124, 2
  %v5126 = vmax.f32 %v5124, %v5125
  %v5127 = vrot.slane %v5126, 1
  %v5128 = vmax.f32 %v5126, %v5127
  %v5129 = vsel %vm3336, %v2919, -inf
  %v5130 = vrot.slane %v5129, 4
  %v5131 = vmax.f32 %v5129, %v5130
  %v5132 = vrot.slane %v5131, 2
  %v5133 = vmax.f32 %v5131, %v5132
  %v5134 = vrot.slane %v5133, 1
  %v5135 = vmax.f32 %v5133, %v5134
  %v5136 = vsel %vm3336, %v2927, -inf
  %v5137 = vrot.slane %v5136, 4
  %v5138 = vmax.f32 %v5136, %v5137
  %v5139 = vrot.slane %v5138, 2
  %v5140 = vmax.f32 %v5138, %v5139
  %v5141 = vrot.slane %v5140, 1
  %v5142 = vmax.f32 %v5140, %v5141
  %v5143 = vsel %vm3336, %v2926, -inf
  %v5144 = vrot.slane %v5143, 4
  %v5145 = vmax.f32 %v5143, %v5144
  %v5146 = vrot.slane %v5145, 2
  %v5147 = vmax.f32 %v5145, %v5146
  %v5148 = vrot.slane %v5147, 1
  %v5149 = vmax.f32 %v5147, %v5148
  %v5150 = vsel %vm3336, %v2928, -inf
  %v5151 = vrot.slane %v5150, 4
  %v5152 = vmax.f32 %v5150, %v5151
  %v5153 = vrot.slane %v5152, 2
  %v5154 = vmax.f32 %v5152, %v5153
  %v5155 = vrot.slane %v5154, 1
  %v5156 = vmax.f32 %v5154, %v5155
  %v5157 = vsel %vm3336, %v2936, -inf
  %v5158 = vrot.slane %v5157, 4
  %v5159 = vmax.f32 %v5157, %v5158
  %v5160 = vrot.slane %v5159, 2
  %v5161 = vmax.f32 %v5159, %v5160
  %v5162 = vrot.slane %v5161, 1
  %v5163 = vmax.f32 %v5161, %v5162
  %v5164 = vsel %vm3336, %v2944, -inf
  %v5165 = vrot.slane %v5164, 4
  %v5166 = vmax.f32 %v5164, %v5165
  %v5167 = vrot.slane %v5166, 2
  %v5168 = vmax.f32 %v5166, %v5167
  %v5169 = vrot.slane %v5168, 1
  %v5170 = vmax.f32 %v5168, %v5169
  %v5171 = vsel %vm3336, %v2943, -inf
  %v5172 = vrot.slane %v5171, 4
  %v5173 = vmax.f32 %v5171, %v5172
  %v5174 = vrot.slane %v5173, 2
  %v5175 = vmax.f32 %v5173, %v5174
  %v5176 = vrot.slane %v5175, 1
  %v5177 = vmax.f32 %v5175, %v5176
  %v5178 = vsel %vm3336, %v2945, -inf
  %v5179 = vrot.slane %v5178, 4
  %v5180 = vmax.f32 %v5178, %v5179
  %v5181 = vrot.slane %v5180, 2
  %v5182 = vmax.f32 %v5180, %v5181
  %v5183 = vrot.slane %v5182, 1
  %v5184 = vmax.f32 %v5182, %v5183
  %v5185 = vsel %vm3336, %v2953, -inf
  %v5186 = vrot.slane %v5185, 4
  %v5187 = vmax.f32 %v5185, %v5186
  %v5188 = vrot.slane %v5187, 2
  %v5189 = vmax.f32 %v5187, %v5188
  %v5190 = vrot.slane %v5189, 1
  %v5191 = vmax.f32 %v5189, %v5190
  %v5192 = vsel %vm3336, %v2961, -inf
  %v5193 = vrot.slane %v5192, 4
  %v5194 = vmax.f32 %v5192, %v5193
  %v5195 = vrot.slane %v5194, 2
  %v5196 = vmax.f32 %v5194, %v5195
  %v5197 = vrot.slane %v5196, 1
  %v5198 = vmax.f32 %v5196, %v5197
  %v5199 = vsel %vm3336, %v2960, -inf
  %v5200 = vrot.slane %v5199, 4
  %v5201 = vmax.f32 %v5199, %v5200
  %v5202 = vrot.slane %v5201, 2
  %v5203 = vmax.f32 %v5201, %v5202
  %v5204 = vrot.slane %v5203, 1
  %v5205 = vmax.f32 %v5203, %v5204
  %v5206 = vsel %vm3336, %v2962, -inf
  %v5207 = vrot.slane %v5206, 4
  %v5208 = vmax.f32 %v5206, %v5207
  %v5209 = vrot.slane %v5208, 2
  %v5210 = vmax.f32 %v5208, %v5209
  %v5211 = vrot.slane %v5210, 1
  %v5212 = vmax.f32 %v5210, %v5211
  %v5213 = vsel %vm3336, %v2970, -inf
  %v5214 = vrot.slane %v5213, 4
  %v5215 = vmax.f32 %v5213, %v5214
  %v5216 = vrot.slane %v5215, 2
  %v5217 = vmax.f32 %v5215, %v5216
  %v5218 = vrot.slane %v5217, 1
  %v5219 = vmax.f32 %v5217, %v5218
  %v5220 = vsel %vm3336, %v2978, -inf
  %v5221 = vrot.slane %v5220, 4
  %v5222 = vmax.f32 %v5220, %v5221
  %v5223 = vrot.slane %v5222, 2
  %v5224 = vmax.f32 %v5222, %v5223
  %v5225 = vrot.slane %v5224, 1
  %v5226 = vmax.f32 %v5224, %v5225
  %v5227 = vsel %vm3336, %v2977, -inf
  %v5228 = vrot.slane %v5227, 4
  %v5229 = vmax.f32 %v5227, %v5228
  %v5230 = vrot.slane %v5229, 2
  %v5231 = vmax.f32 %v5229, %v5230
  %v5232 = vrot.slane %v5231, 1
  %v5233 = vmax.f32 %v5231, %v5232
  %v5234 = vsel %vm3336, %v2979, -inf
  %v5235 = vrot.slane %v5234, 4
  %v5236 = vmax.f32 %v5234, %v5235
  %v5237 = vrot.slane %v5236, 2
  %v5238 = vmax.f32 %v5236, %v5237
  %v5239 = vrot.slane %v5238, 1
  %v5240 = vmax.f32 %v5238, %v5239
  %v5241 = vsel %vm3336, %v2987, -inf
  %v5242 = vrot.slane %v5241, 4
  %v5243 = vmax.f32 %v5241, %v5242
  %v5244 = vrot.slane %v5243, 2
  %v5245 = vmax.f32 %v5243, %v5244
  %v5246 = vrot.slane %v5245, 1
  %v5247 = vmax.f32 %v5245, %v5246
  %v5248 = vsel %vm3336, %v2995, -inf
  %v5249 = vrot.slane %v5248, 4
  %v5250 = vmax.f32 %v5248, %v5249
  %v5251 = vrot.slane %v5250, 2
  %v5252 = vmax.f32 %v5250, %v5251
  %v5253 = vrot.slane %v5252, 1
  %v5254 = vmax.f32 %v5252, %v5253
  %v5255 = vsel %vm3336, %v2994, -inf
  %v5256 = vrot.slane %v5255, 4
  %v5257 = vmax.f32 %v5255, %v5256
  %v5258 = vrot.slane %v5257, 2
  %v5259 = vmax.f32 %v5257, %v5258
  %v5260 = vrot.slane %v5259, 1
  %v5261 = vmax.f32 %v5259, %v5260
  %v5262 = vsel %vm3336, %v2996, -inf
  %v5263 = vrot.slane %v5262, 4
  %v5264 = vmax.f32 %v5262, %v5263
  %v5265 = vrot.slane %v5264, 2
  %v5266 = vmax.f32 %v5264, %v5265
  %v5267 = vrot.slane %v5266, 1
  %v5268 = vmax.f32 %v5266, %v5267
  %v5269 = vsel %vm3336, %v3004, -inf
  %v5270 = vrot.slane %v5269, 4
  %v5271 = vmax.f32 %v5269, %v5270
  %v5272 = vrot.slane %v5271, 2
  %v5273 = vmax.f32 %v5271, %v5272
  %v5274 = vrot.slane %v5273, 1
  %v5275 = vmax.f32 %v5273, %v5274
  %v5276 = vsel %vm3336, %v3012, -inf
  %v5277 = vrot.slane %v5276, 4
  %v5278 = vmax.f32 %v5276, %v5277
  %v5279 = vrot.slane %v5278, 2
  %v5280 = vmax.f32 %v5278, %v5279
  %v5281 = vrot.slane %v5280, 1
  %v5282 = vmax.f32 %v5280, %v5281
  %v5283 = vsel %vm3336, %v3011, -inf
  %v5284 = vrot.slane %v5283, 4
  %v5285 = vmax.f32 %v5283, %v5284
  %v5286 = vrot.slane %v5285, 2
  %v5287 = vmax.f32 %v5285, %v5286
  %v5288 = vrot.slane %v5287, 1
  %v5289 = vmax.f32 %v5287, %v5288
  %v5290 = vsel %vm3336, %v3013, -inf
  %v5291 = vrot.slane %v5290, 4
  %v5292 = vmax.f32 %v5290, %v5291
  %v5293 = vrot.slane %v5292, 2
  %v5294 = vmax.f32 %v5292, %v5293
  %v5295 = vrot.slane %v5294, 1
  %v5296 = vmax.f32 %v5294, %v5295
  %v5297 = vsel %vm3336, %v3021, -inf
  %v5298 = vrot.slane %v5297, 4
  %v5299 = vmax.f32 %v5297, %v5298
  %v5300 = vrot.slane %v5299, 2
  %v5301 = vmax.f32 %v5299, %v5300
  %v5302 = vrot.slane %v5301, 1
  %v5303 = vmax.f32 %v5301, %v5302
  %v5304 = vsel %vm3336, %v3029, -inf
  %v5305 = vrot.slane %v5304, 4
  %v5306 = vmax.f32 %v5304, %v5305
  %v5307 = vrot.slane %v5306, 2
  %v5308 = vmax.f32 %v5306, %v5307
  %v5309 = vrot.slane %v5308, 1
  %v5310 = vmax.f32 %v5308, %v5309
  %v5311 = vsel %vm3336, %v3028, -inf
  %v5312 = vrot.slane %v5311, 4
  %v5313 = vmax.f32 %v5311, %v5312
  %v5314 = vrot.slane %v5313, 2
  %v5315 = vmax.f32 %v5313, %v5314
  %v5316 = vrot.slane %v5315, 1
  %v5317 = vmax.f32 %v5315, %v5316
  %v5318 = vsel %vm3336, %v3030, -inf
  %v5319 = vrot.slane %v5318, 4
  %v5320 = vmax.f32 %v5318, %v5319
  %v5321 = vrot.slane %v5320, 2
  %v5322 = vmax.f32 %v5320, %v5321
  %v5323 = vrot.slane %v5322, 1
  %v5324 = vmax.f32 %v5322, %v5323
  %v5325 = vsel %vm3336, %v3038, -inf
  %v5326 = vrot.slane %v5325, 4
  %v5327 = vmax.f32 %v5325, %v5326
  %v5328 = vrot.slane %v5327, 2
  %v5329 = vmax.f32 %v5327, %v5328
  %v5330 = vrot.slane %v5329, 1
  %v5331 = vmax.f32 %v5329, %v5330
  %v5332 = vsel %vm3336, %v3046, -inf
  %v5333 = vrot.slane %v5332, 4
  %v5334 = vmax.f32 %v5332, %v5333
  %v5335 = vrot.slane %v5334, 2
  %v5336 = vmax.f32 %v5334, %v5335
  %v5337 = vrot.slane %v5336, 1
  %v5338 = vmax.f32 %v5336, %v5337
  %v5339 = vsel %vm3336, %v3045, -inf
  %v5340 = vrot.slane %v5339, 4
  %v5341 = vmax.f32 %v5339, %v5340
  %v5342 = vrot.slane %v5341, 2
  %v5343 = vmax.f32 %v5341, %v5342
  %v5344 = vrot.slane %v5343, 1
  %v5345 = vmax.f32 %v5343, %v5344
  %v5346 = vsel %vm3336, %v3047, -inf
  %v5347 = vrot.slane %v5346, 4
  %v5348 = vmax.f32 %v5346, %v5347
  %v5349 = vrot.slane %v5348, 2
  %v5350 = vmax.f32 %v5348, %v5349
  %v5351 = vrot.slane %v5350, 1
  %v5352 = vmax.f32 %v5350, %v5351
  %vm5641 = vcmask 1041409
  %v5642 = vsel %vm5641, %v3350, %v3343
  %vm5643 = vcmask 1042434
  %v5644 = vsel %vm5643, %v3357, %v5642
  %vm5645 = vcmask 1043459
  %v5646 = vsel %vm5645, %v3364, %v5644
  %vm5647 = vcmask 1044484
  %v5648 = vsel %vm5647, %v3371, %v5646
  %vm5649 = vcmask 1045509
  %v5650 = vsel %vm5649, %v3378, %v5648
  %vm5651 = vcmask 1046534
  %v5652 = vsel %vm5651, %v3385, %v5650
  %vm5653 = vcmask 1047559
  %v5654 = vsel %vm5653, %v3392, %v5652
  %v5655 = vsel %vm5641, %v3406, %v3399
  %v5656 = vsel %vm5643, %v3413, %v5655
  %v5657 = vsel %vm5645, %v3420, %v5656
  %v5658 = vsel %vm5641, %v3434, %v3427
  %v5659 = vsel %vm5643, %v3441, %v5658
  %v5660 = vsel %vm5645, %v3448, %v5659
  %v5661 = vsel %vm5647, %v3455, %v5660
  %v5662 = vsel %vm5649, %v3462, %v5661
  %v5663 = vsel %vm5651, %v3469, %v5662
  %v5664 = vsel %vm5653, %v3476, %v5663
  %v5665 = vsel %vm5641, %v3490, %v3483
  %v5666 = vsel %vm5643, %v3497, %v5665
  %v5667 = vsel %vm5645, %v3504, %v5666
  %v5668 = vsel %vm5641, %v3518, %v3511
  %v5669 = vsel %vm5643, %v3525, %v5668
  %v5670 = vsel %vm5645, %v3532, %v5669
  %v5671 = vsel %vm5647, %v3539, %v5670
  %v5672 = vsel %vm5649, %v3546, %v5671
  %v5673 = vsel %vm5651, %v3553, %v5672
  %v5674 = vsel %vm5653, %v3560, %v5673
  %v5675 = vsel %vm5641, %v3574, %v3567
  %v5676 = vsel %vm5643, %v3581, %v5675
  %v5677 = vsel %vm5645, %v3588, %v5676
  %v5678 = vsel %vm5641, %v3602, %v3595
  %v5679 = vsel %vm5643, %v3609, %v5678
  %v5680 = vsel %vm5645, %v3616, %v5679
  %v5681 = vsel %vm5647, %v3623, %v5680
  %v5682 = vsel %vm5649, %v3630, %v5681
  %v5683 = vsel %vm5651, %v3637, %v5682
  %v5684 = vsel %vm5653, %v3644, %v5683
  %v5685 = vsel %vm5641, %v3658, %v3651
  %v5686 = vsel %vm5643, %v3665, %v5685
  %v5687 = vsel %vm5645, %v3672, %v5686
  %v5688 = vsel %vm5641, %v3686, %v3679
  %v5689 = vsel %vm5643, %v3693, %v5688
  %v5690 = vsel %vm5645, %v3700, %v5689
  %v5691 = vsel %vm5647, %v3707, %v5690
  %v5692 = vsel %vm5649, %v3714, %v5691
  %v5693 = vsel %vm5651, %v3721, %v5692
  %v5694 = vsel %vm5653, %v3728, %v5693
  %v5695 = vsel %vm5641, %v3742, %v3735
  %v5696 = vsel %vm5643, %v3749, %v5695
  %v5697 = vsel %vm5645, %v3756, %v5696
  %v5698 = vsel %vm5641, %v3770, %v3763
  %v5699 = vsel %vm5643, %v3777, %v5698
  %v5700 = vsel %vm5645, %v3784, %v5699
  %v5701 = vsel %vm5647, %v3791, %v5700
  %v5702 = vsel %vm5649, %v3798, %v5701
  %v5703 = vsel %vm5651, %v3805, %v5702
  %v5704 = vsel %vm5653, %v3812, %v5703
  %v5705 = vsel %vm5641, %v3826, %v3819
  %v5706 = vsel %vm5643, %v3833, %v5705
  %v5707 = vsel %vm5645, %v3840, %v5706
  %v5708 = vsel %vm5641, %v3854, %v3847
  %v5709 = vsel %vm5643, %v3861, %v5708
  %v5710 = vsel %vm5645, %v3868, %v5709
  %v5711 = vsel %vm5647, %v3875, %v5710
  %v5712 = vsel %vm5649, %v3882, %v5711
  %v5713 = vsel %vm5651, %v3889, %v5712
  %v5714 = vsel %vm5653, %v3896, %v5713
  %v5715 = vsel %vm5641, %v3910, %v3903
  %v5716 = vsel %vm5643, %v3917, %v5715
  %v5717 = vsel %vm5645, %v3924, %v5716
  %v5718 = vsel %vm5641, %v3938, %v3931
  %v5719 = vsel %vm5643, %v3945, %v5718
  %v5720 = vsel %vm5645, %v3952, %v5719
  %v5721 = vsel %vm5647, %v3959, %v5720
  %v5722 = vsel %vm5649, %v3966, %v5721
  %v5723 = vsel %vm5651, %v3973, %v5722
  %v5724 = vsel %vm5653, %v3980, %v5723
  %v5725 = vsel %vm5641, %v3994, %v3987
  %v5726 = vsel %vm5643, %v4001, %v5725
  %v5727 = vsel %vm5645, %v4008, %v5726
  %v5728 = vsel %vm5641, %v4022, %v4015
  %v5729 = vsel %vm5643, %v4029, %v5728
  %v5730 = vsel %vm5645, %v4036, %v5729
  %v5731 = vsel %vm5647, %v4043, %v5730
  %v5732 = vsel %vm5649, %v4050, %v5731
  %v5733 = vsel %vm5651, %v4057, %v5732
  %v5734 = vsel %vm5653, %v4064, %v5733
  %v5735 = vsel %vm5641, %v4078, %v4071
  %v5736 = vsel %vm5643, %v4085, %v5735
  %v5737 = vsel %vm5645, %v4092, %v5736
  %v5738 = vsel %vm5641, %v4106, %v4099
  %v5739 = vsel %vm5643, %v4113, %v5738
  %v5740 = vsel %vm5645, %v4120, %v5739
  %v5741 = vsel %vm5647, %v4127, %v5740
  %v5742 = vsel %vm5649, %v4134, %v5741
  %v5743 = vsel %vm5651, %v4141, %v5742
  %v5744 = vsel %vm5653, %v4148, %v5743
  %v5745 = vsel %vm5641, %v4162, %v4155
  %v5746 = vsel %vm5643, %v4169, %v5745
  %v5747 = vsel %vm5645, %v4176, %v5746
  %v5748 = vsel %vm5641, %v4190, %v4183
  %v5749 = vsel %vm5643, %v4197, %v5748
  %v5750 = vsel %vm5645, %v4204, %v5749
  %v5751 = vsel %vm5647, %v4211, %v5750
  %v5752 = vsel %vm5649, %v4218, %v5751
  %v5753 = vsel %vm5651, %v4225, %v5752
  %v5754 = vsel %vm5653, %v4232, %v5753
  %v5755 = vsel %vm5641, %v4246, %v4239
  %v5756 = vsel %vm5643, %v4253, %v5755
  %v5757 = vsel %vm5645, %v4260, %v5756
  %v5758 = vsel %vm5641, %v4274, %v4267
  %v5759 = vsel %vm5643, %v4281, %v5758
  %v5760 = vsel %vm5645, %v4288, %v5759
  %v5761 = vsel %vm5647, %v4295, %v5760
  %v5762 = vsel %vm5649, %v4302, %v5761
  %v5763 = vsel %vm5651, %v4309, %v5762
  %v5764 = vsel %vm5653, %v4316, %v5763
  %v5765 = vsel %vm5641, %v4330, %v4323
  %v5766 = vsel %vm5643, %v4337, %v5765
  %v5767 = vsel %vm5645, %v4344, %v5766
  %v5768 = vsel %vm5641, %v4358, %v4351
  %v5769 = vsel %vm5643, %v4365, %v5768
  %v5770 = vsel %vm5645, %v4372, %v5769
  %v5771 = vsel %vm5647, %v4379, %v5770
  %v5772 = vsel %vm5649, %v4386, %v5771
  %v5773 = vsel %vm5651, %v4393, %v5772
  %v5774 = vsel %vm5653, %v4400, %v5773
  %v5775 = vsel %vm5641, %v4414, %v4407
  %v5776 = vsel %vm5643, %v4421, %v5775
  %v5777 = vsel %vm5645, %v4428, %v5776
  %v5778 = vsel %vm5641, %v4442, %v4435
  %v5779 = vsel %vm5643, %v4449, %v5778
  %v5780 = vsel %vm5645, %v4456, %v5779
  %v5781 = vsel %vm5647, %v4463, %v5780
  %v5782 = vsel %vm5649, %v4470, %v5781
  %v5783 = vsel %vm5651, %v4477, %v5782
  %v5784 = vsel %vm5653, %v4484, %v5783
  %v5785 = vsel %vm5641, %v4498, %v4491
  %v5786 = vsel %vm5643, %v4505, %v5785
  %v5787 = vsel %vm5645, %v4512, %v5786
  %v5788 = vsel %vm5641, %v4526, %v4519
  %v5789 = vsel %vm5643, %v4533, %v5788
  %v5790 = vsel %vm5645, %v4540, %v5789
  %v5791 = vsel %vm5647, %v4547, %v5790
  %v5792 = vsel %vm5649, %v4554, %v5791
  %v5793 = vsel %vm5651, %v4561, %v5792
  %v5794 = vsel %vm5653, %v4568, %v5793
  %v5795 = vsel %vm5641, %v4582, %v4575
  %v5796 = vsel %vm5643, %v4589, %v5795
  %v5797 = vsel %vm5645, %v4596, %v5796
  %v5798 = vsel %vm5641, %v4610, %v4603
  %v5799 = vsel %vm5643, %v4617, %v5798
  %v5800 = vsel %vm5645, %v4624, %v5799
  %v5801 = vsel %vm5647, %v4631, %v5800
  %v5802 = vsel %vm5649, %v4638, %v5801
  %v5803 = vsel %vm5651, %v4645, %v5802
  %v5804 = vsel %vm5653, %v4652, %v5803
  %v5805 = vsel %vm5641, %v4666, %v4659
  %v5806 = vsel %vm5643, %v4673, %v5805
  %v5807 = vsel %vm5645, %v4680, %v5806
  %v5808 = vsel %vm5641, %v4694, %v4687
  %v5809 = vsel %vm5643, %v4701, %v5808
  %v5810 = vsel %vm5645, %v4708, %v5809
  %v5811 = vsel %vm5647, %v4715, %v5810
  %v5812 = vsel %vm5649, %v4722, %v5811
  %v5813 = vsel %vm5651, %v4729, %v5812
  %v5814 = vsel %vm5653, %v4736, %v5813
  %v5815 = vsel %vm5641, %v4750, %v4743
  %v5816 = vsel %vm5643, %v4757, %v5815
  %v5817 = vsel %vm5645, %v4764, %v5816
  %v5818 = vsel %vm5641, %v4778, %v4771
  %v5819 = vsel %vm5643, %v4785, %v5818
  %v5820 = vsel %vm5645, %v4792, %v5819
  %v5821 = vsel %vm5647, %v4799, %v5820
  %v5822 = vsel %vm5649, %v4806, %v5821
  %v5823 = vsel %vm5651, %v4813, %v5822
  %v5824 = vsel %vm5653, %v4820, %v5823
  %v5825 = vsel %vm5641, %v4834, %v4827
  %v5826 = vsel %vm5643, %v4841, %v5825
  %v5827 = vsel %vm5645, %v4848, %v5826
  %v5828 = vsel %vm5641, %v4862, %v4855
  %v5829 = vsel %vm5643, %v4869, %v5828
  %v5830 = vsel %vm5645, %v4876, %v5829
  %v5831 = vsel %vm5647, %v4883, %v5830
  %v5832 = vsel %vm5649, %v4890, %v5831
  %v5833 = vsel %vm5651, %v4897, %v5832
  %v5834 = vsel %vm5653, %v4904, %v5833
  %v5835 = vsel %vm5641, %v4918, %v4911
  %v5836 = vsel %vm5643, %v4925, %v5835
  %v5837 = vsel %vm5645, %v4932, %v5836
  %v5838 = vsel %vm5641, %v4946, %v4939
  %v5839 = vsel %vm5643, %v4953, %v5838
  %v5840 = vsel %vm5645, %v4960, %v5839
  %v5841 = vsel %vm5647, %v4967, %v5840
  %v5842 = vsel %vm5649, %v4974, %v5841
  %v5843 = vsel %vm5651, %v4981, %v5842
  %v5844 = vsel %vm5653, %v4988, %v5843
  %v5845 = vsel %vm5641, %v5002, %v4995
  %v5846 = vsel %vm5643, %v5009, %v5845
  %v5847 = vsel %vm5645, %v5016, %v5846
  %v5848 = vsel %vm5641, %v5030, %v5023
  %v5849 = vsel %vm5643, %v5037, %v5848
  %v5850 = vsel %vm5645, %v5044, %v5849
  %v5851 = vsel %vm5647, %v5051, %v5850
  %v5852 = vsel %vm5649, %v5058, %v5851
  %v5853 = vsel %vm5651, %v5065, %v5852
  %v5854 = vsel %vm5653, %v5072, %v5853
  %v5855 = vsel %vm5641, %v5086, %v5079
  %v5856 = vsel %vm5643, %v5093, %v5855
  %v5857 = vsel %vm5645, %v5100, %v5856
  %v5858 = vsel %vm5641, %v5114, %v5107
  %v5859 = vsel %vm5643, %v5121, %v5858
  %v5860 = vsel %vm5645, %v5128, %v5859
  %v5861 = vsel %vm5647, %v5135, %v5860
  %v5862 = vsel %vm5649, %v5142, %v5861
  %v5863 = vsel %vm5651, %v5149, %v5862
  %v5864 = vsel %vm5653, %v5156, %v5863
  %v5865 = vsel %vm5641, %v5170, %v5163
  %v5866 = vsel %vm5643, %v5177, %v5865
  %v5867 = vsel %vm5645, %v5184, %v5866
  %v5868 = vsel %vm5641, %v5198, %v5191
  %v5869 = vsel %vm5643, %v5205, %v5868
  %v5870 = vsel %vm5645, %v5212, %v5869
  %v5871 = vsel %vm5647, %v5219, %v5870
  %v5872 = vsel %vm5649, %v5226, %v5871
  %v5873 = vsel %vm5651, %v5233, %v5872
  %v5874 = vsel %vm5653, %v5240, %v5873
  %v5875 = vsel %vm5641, %v5254, %v5247
  %v5876 = vsel %vm5643, %v5261, %v5875
  %v5877 = vsel %vm5645, %v5268, %v5876
  %v5878 = vsel %vm5641, %v5282, %v5275
  %v5879 = vsel %vm5643, %v5289, %v5878
  %v5880 = vsel %vm5645, %v5296, %v5879
  %v5881 = vsel %vm5647, %v5303, %v5880
  %v5882 = vsel %vm5649, %v5310, %v5881
  %v5883 = vsel %vm5651, %v5317, %v5882
  %v5884 = vsel %vm5653, %v5324, %v5883
  %v5885 = vsel %vm5641, %v5338, %v5331
  %v5886 = vsel %vm5643, %v5345, %v5885
  %v5887 = vsel %vm5645, %v5352, %v5886
  %5936 = vst.msk [vmem:[%s3] sm:$0xff] %vm1535, %v5654
  %vm5937 = vcmask 44032
  %5938 = vst.msk [vmem:[%s3 + $0x8] sm:$0xf] %vm5937, %v5657
  %5939 = vst.msk [vmem:[%s3 + $0x10] sm:$0xff] %vm1535, %v5664
  %5940 = vst.msk [vmem:[%s3 + $0x18] sm:$0xf] %vm5937, %v5667
  %5941 = vst.msk [vmem:[%s3 + $0x20] sm:$0xff] %vm1535, %v5674
  %5942 = vst.msk [vmem:[%s3 + $0x28] sm:$0xf] %vm5937, %v5677
  %5943 = vst.msk [vmem:[%s3 + $0x30] sm:$0xff] %vm1535, %v5684
  %5944 = vst.msk [vmem:[%s3 + $0x38] sm:$0xf] %vm5937, %v5687
  %5945 = vst.msk [vmem:[%s3 + $0x40] sm:$0xff] %vm1535, %v5694
  %5946 = vst.msk [vmem:[%s3 + $0x48] sm:$0xf] %vm5937, %v5697
  %5947 = vst.msk [vmem:[%s3 + $0x50] sm:$0xff] %vm1535, %v5704
  %5948 = vst.msk [vmem:[%s3 + $0x58] sm:$0xf] %vm5937, %v5707
  %5949 = vst.msk [vmem:[%s3 + $0x60] sm:$0xff] %vm1535, %v5714
  %5950 = vst.msk [vmem:[%s3 + $0x68] sm:$0xf] %vm5937, %v5717
  %5951 = vst.msk [vmem:[%s3 + $0x70] sm:$0xff] %vm1535, %v5724
  %5952 = vst.msk [vmem:[%s3 + $0x78] sm:$0xf] %vm5937, %v5727
  %5953 = vst.msk [vmem:[%s3 + $0x80] sm:$0xff] %vm1535, %v5734
  %5954 = vst.msk [vmem:[%s3 + $0x88] sm:$0xf] %vm5937, %v5737
  %5955 = vst.msk [vmem:[%s3 + $0x90] sm:$0xff] %vm1535, %v5744
  %5956 = vst.msk [vmem:[%s3 + $0x98] sm:$0xf] %vm5937, %v5747
  %5957 = vst.msk [vmem:[%s3 + $0xa0] sm:$0xff] %vm1535, %v5754
  %5958 = vst.msk [vmem:[%s3 + $0xa8] sm:$0xf] %vm5937, %v5757
  %5959 = vst.msk [vmem:[%s3 + $0xb0] sm:$0xff] %vm1535, %v5764
  %5960 = vst.msk [vmem:[%s3 + $0xb8] sm:$0xf] %vm5937, %v5767
  %5961 = vst.msk [vmem:[%s3 + $0xc0] sm:$0xff] %vm1535, %v5774
  %5962 = vst.msk [vmem:[%s3 + $0xc8] sm:$0xf] %vm5937, %v5777
  %5963 = vst.msk [vmem:[%s3 + $0xd0] sm:$0xff] %vm1535, %v5784
  %5964 = vst.msk [vmem:[%s3 + $0xd8] sm:$0xf] %vm5937, %v5787
  %5965 = vst.msk [vmem:[%s3 + $0xe0] sm:$0xff] %vm1535, %v5794
  %5966 = vst.msk [vmem:[%s3 + $0xe8] sm:$0xf] %vm5937, %v5797
  %5967 = vst.msk [vmem:[%s3 + $0xf0] sm:$0xff] %vm1535, %v5804
  %5968 = vst.msk [vmem:[%s3 + $0xf8] sm:$0xf] %vm5937, %v5807
  %5969 = vst.msk [vmem:[%s3 + $0x100] sm:$0xff] %vm1535, %v5814
  %5970 = vst.msk [vmem:[%s3 + $0x108] sm:$0xf] %vm5937, %v5817
  %5971 = vst.msk [vmem:[%s3 + $0x110] sm:$0xff] %vm1535, %v5824
  %5972 = vst.msk [vmem:[%s3 + $0x118] sm:$0xf] %vm5937, %v5827
  %5973 = vst.msk [vmem:[%s3 + $0x120] sm:$0xff] %vm1535, %v5834
  %5974 = vst.msk [vmem:[%s3 + $0x128] sm:$0xf] %vm5937, %v5837
  %5975 = vst.msk [vmem:[%s3 + $0x130] sm:$0xff] %vm1535, %v5844
  %5976 = vst.msk [vmem:[%s3 + $0x138] sm:$0xf] %vm5937, %v5847
  %5977 = vst.msk [vmem:[%s3 + $0x140] sm:$0xff] %vm1535, %v5854
  %5978 = vst.msk [vmem:[%s3 + $0x148] sm:$0xf] %vm5937, %v5857
  %5979 = vst.msk [vmem:[%s3 + $0x150] sm:$0xff] %vm1535, %v5864
  %5980 = vst.msk [vmem:[%s3 + $0x158] sm:$0xf] %vm5937, %v5867
  %5981 = vst.msk [vmem:[%s3 + $0x160] sm:$0xff] %vm1535, %v5874
  %5982 = vst.msk [vmem:[%s3 + $0x168] sm:$0xf] %vm5937, %v5877
  %5983 = vst.msk [vmem:[%s3 + $0x170] sm:$0xff] %vm1535, %v5884
  %5984 = vst.msk [vmem:[%s3 + $0x178] sm:$0xf] %vm5937, %v5887
  // Predicated region
  $region14: #{cnn_forward.3} parent=0 // pred_check
    _
  $region15: #{cnn_forward.3} parent=0 // pred_check_branch
    %5986 = sbr.rel (0) target = $region17
  $region16: #{cnn_forward.3} parent=0 // pred_region
    _
  $region17: #{cnn_forward.3} parent=0 // pred_fallthru
    _
  // Predicated region
  $region18: #{cnn_forward.3} parent=0 // pred_check
    _
  $region19: #{cnn_forward.3} parent=0 // pred_check_branch
    %5988 = sbr.rel (0) target = $region21
  $region20: #{cnn_forward.3} parent=0 // pred_region
    _
  $region21: #{cnn_forward.3} parent=0 // pred_fallthru
    _

// kernel: cnn_forward.4
$region0: #{cnn_forward.4}
  #allocation0 [shape = 'u32[]', space=smem, size = 0x4, offset = 0x4, fixed_abs, tag = 'smem constant byte address 0x4 - core index']
  #allocation1 [shape = 'u32[144,128]{1,0:T(1,128)}', space=vmem, size = 0x12000, scoped, tag = 'internal scratch']
  %s0 = inlined_call_operand.vmem [shape: f32[128,150], index: 0, kind: input, shape index: {}]
  %s1 = inlined_call_operand.vmem [shape: f32[150,16], index: 1, kind: input, shape index: {}]
  %s2 = inlined_call_operand.vmem [shape: f32[1,16], index: 2, kind: input, shape index: {}]
  %s3 = inlined_call_operand.vmem [shape: f32[2,4,4,16], index: 3, kind: output, shape index: {}]
  %s4 = sld [smem:[#allocation0]]
  $region22: #{cnn_forward.4} parent=0
    _
  %s6 = ssub.s32 1, %s4
  %s7 = scalar_select 0, %s6, %s4
  // Predicated region
  $region2: #{cnn_forward.4} parent=0 // pred_check
    _
  $region3: #{cnn_forward.4} parent=0 // pred_check_branch
    %9 = sbr.rel (0) target = $region5
  $region4: #{cnn_forward.4} parent=0 // pred_region
    _
  $region5: #{cnn_forward.4} parent=0 // pred_fallthru
    _
  // Predicated region
  $region6: #{cnn_forward.4} parent=0 // pred_check
    _
  $region7: #{cnn_forward.4} parent=0 // pred_check_branch
    %11 = sbr.rel (0) target = $region9
  $region8: #{cnn_forward.4} parent=0 // pred_region
    _
  $region9: #{cnn_forward.4} parent=0 // pred_fallthru
    _
  // Predicated region
  $region10: #{cnn_forward.4} parent=0 // pred_check
    _
  $region11: #{cnn_forward.4} parent=0 // pred_check_branch
    %13 = sbr.rel (0) target = $region13
  $region12: #{cnn_forward.4} parent=0 // pred_region
    _
  $region13: #{cnn_forward.4} parent=0 // pred_fallthru
    _
  %v14 = vld [vmem:[%s0] sm:$0xff]
  %v15 = vld [vmem:[%s0 + $0x8] sm:$0xff]
  %v16 = vld [vmem:[%s0 + $0x10] sm:$0xff]
  %v17 = vld [vmem:[%s0 + $0x18] sm:$0xff]
  %v18 = vld [vmem:[%s0 + $0x20] sm:$0xff]
  %v19 = vld [vmem:[%s0 + $0x28] sm:$0xff]
  %v20 = vld [vmem:[%s0 + $0x30] sm:$0xff]
  %v21 = vld [vmem:[%s0 + $0x38] sm:$0xff]
  %v22 = vld [vmem:[%s0 + $0x40] sm:$0xff]
  %v23 = vld [vmem:[%s0 + $0x48] sm:$0xff]
  %v24 = vld [vmem:[%s0 + $0x50] sm:$0xff]
  %v25 = vld [vmem:[%s0 + $0x58] sm:$0xff]
  %v26 = vld [vmem:[%s0 + $0x60] sm:$0xff]
  %v27 = vld [vmem:[%s0 + $0x68] sm:$0xff]
  %v28 = vld [vmem:[%s0 + $0x70] sm:$0xff]
  %v29 = vld [vmem:[%s0 + $0x78] sm:$0xff]
  %v30 = vld [vmem:[%s0 + $0x80] sm:$0xff]
  %v31 = vld [vmem:[%s0 + $0x88] sm:$0xff]
  %v32 = vld [vmem:[%s0 + $0x90] sm:$0xff]
  %v33 = vld [vmem:[%s0 + $0x98] sm:$0xff]
  %v34 = vld [vmem:[%s0 + $0xa0] sm:$0xff]
  %v35 = vld [vmem:[%s0 + $0xa8] sm:$0xff]
  %v36 = vld [vmem:[%s0 + $0xb0] sm:$0xff]
  %v37 = vld [vmem:[%s0 + $0xb8] sm:$0xff]
  %v38 = vld [vmem:[%s0 + $0xc0] sm:$0xff]
  %v39 = vld [vmem:[%s0 + $0xc8] sm:$0xff]
  %v40 = vld [vmem:[%s0 + $0xd0] sm:$0xff]
  %v41 = vld [vmem:[%s0 + $0xd8] sm:$0xff]
  %v42 = vld [vmem:[%s0 + $0xe0] sm:$0xff]
  %v43 = vld [vmem:[%s0 + $0xe8] sm:$0xff]
  %v44 = vld [vmem:[%s0 + $0xf0] sm:$0xff]
  %v45 = vld [vmem:[%s0 + $0xf8] sm:$0xff]
  %v46 = vld [vmem:[%s1] sm:$0xff]
  %v47 = vld [vmem:[%s1 + $0x8] sm:$0xff]
  %v48 = vld [vmem:[%s1 + $0x10] sm:$0xff]
  %v49 = vld [vmem:[%s1 + $0x18] sm:$0xff]
  %v50 = vld [vmem:[%s1 + $0x20] sm:$0xff]
  %v51 = vld [vmem:[%s1 + $0x28] sm:$0xff]
  %v52 = vld [vmem:[%s1 + $0x30] sm:$0xff]
  %v53 = vld [vmem:[%s1 + $0x38] sm:$0xff]
  %v54 = vld [vmem:[%s1 + $0x40] sm:$0xff]
  %v55 = vld [vmem:[%s1 + $0x48] sm:$0xff]
  %v56 = vld [vmem:[%s1 + $0x50] sm:$0xff]
  %v57 = vld [vmem:[%s1 + $0x58] sm:$0xff]
  %v58 = vld [vmem:[%s1 + $0x60] sm:$0xff]
  %v59 = vld [vmem:[%s1 + $0x68] sm:$0xff]
  %v60 = vld [vmem:[%s1 + $0x70] sm:$0xff]
  %v61 = vld [vmem:[%s1 + $0x78] sm:$0xff]
  %v62 = vld [vmem:[%s1 + $0x80] sm:$0xff]
  %v63 = vld [vmem:[%s1 + $0x88] sm:$0xff]
  %v64 = vld [vmem:[%s1 + $0x90] sm:$0x3f]
  %v65 = vld [vmem:[%s2] sm:$0x1]
  %v67 = vlaneseq
  %v68 = vshrl.u32 %v67, 7
  %v69 = vsub.s32 0, %v68
  %v70 = vrot.slane %v65, %v69
  %vm72 = vcmask 179200
  %v74 = vsel %vm72, %v15, 0
  %v77 = vsel %vm72, %v17, 0
  %v80 = vsel %vm72, %v19, 0
  %v83 = vsel %vm72, %v21, 0
  %v86 = vsel %vm72, %v23, 0
  %v89 = vsel %vm72, %v25, 0
  %v92 = vsel %vm72, %v27, 0
  %v95 = vsel %vm72, %v29, 0
  %v98 = vsel %vm72, %v31, 0
  %v101 = vsel %vm72, %v33, 0
  %v104 = vsel %vm72, %v35, 0
  %v107 = vsel %vm72, %v37, 0
  %v110 = vsel %vm72, %v39, 0
  %v113 = vsel %vm72, %v41, 0
  %v116 = vsel %vm72, %v43, 0
  %v119 = vsel %vm72, %v45, 0
  %vm121 = vcmask 1045504
  %v123 = vsel %vm121, %v64, 0
  %125 = vmatprep.subr.mxu0 0.0
  %126 = vmatpush1.msra.mxu0 %v46
  %127 = vmatprep.subr.mxu0 0.0
  %128 = vmatpush1.msra.mxu0 %v47
  %129 = vmatprep.subr.mxu0 0.0
  %130 = vmatpush1.msra.mxu0 %v48
  %131 = vmatprep.subr.mxu0 0.0
  %132 = vmatpush1.msra.mxu0 %v49
  %133 = vmatprep.subr.mxu0 0.0
  %134 = vmatpush1.msra.mxu0 %v50
  %135 = vmatprep.subr.mxu0 0.0
  %136 = vmatpush1.msra.mxu0 %v51
  %137 = vmatprep.subr.mxu0 0.0
  %138 = vmatpush1.msra.mxu0 %v52
  %139 = vmatprep.subr.mxu0 0.0
  %140 = vmatpush1.msra.mxu0 %v53
  %141 = vmatprep.subr.mxu0 0.0
  %142 = vmatpush1.msra.mxu0 %v54
  %143 = vmatprep.subr.mxu0 0.0
  %144 = vmatpush1.msra.mxu0 %v55
  %145 = vmatprep.subr.mxu0 0.0
  %146 = vmatpush1.msra.mxu0 %v56
  %147 = vmatprep.subr.mxu0 0.0
  %148 = vmatpush1.msra.mxu0 %v57
  %149 = vmatprep.subr.mxu0 0.0
  %150 = vmatpush1.msra.mxu0 %v58
  %151 = vmatprep.subr.mxu0 0.0
  %152 = vmatpush1.msra.mxu0 %v59
  %153 = vmatprep.subr.mxu0 0.0
  %154 = vmatpush1.msra.mxu0 %v60
  %155 = vmatprep.subr.mxu0 0.0
  %156 = vmatpush1.msra.mxu0 %v61
  %157 = vmatprep.subr.mxu0 0.0
  %158 = vmatpush1.msra.mxu0 %v62
  %159 = vmatprep.subr.mxu0 0.0
  %160 = vmatpush1.msra.mxu0 %v63
  %161 = vmatprep.subr.mxu0 0.0
  %162 = vmatpush1.msra.mxu0 %v123
  %163 = vmatprep.subr.mxu0 0.0
  %164 = vmatpush1.msra.mxu0 0.0
  %165 = vmatprep.subr.mxu0 0.0
  %166 = vmatpush1.msra.mxu0 0.0
  %167 = vmatprep.subr.mxu0 0.0
  %168 = vmatpush1.msra.mxu0 0.0
  %169 = vmatprep.subr.mxu0 0.0
  %170 = vmatpush1.msra.mxu0 0.0
  %171 = vmatprep.subr.mxu0 0.0
  %172 = vmatpush1.msra.mxu0 0.0
  %173 = vmatprep.subr.mxu0 0.0
  %174 = vmatpush1.msra.mxu0 0.0
  %175 = vmatprep.subr.mxu0 0.0
  %176 = vmatpush1.msra.mxu0 0.0
  %177 = vmatprep.subr.mxu0 0.0
  %178 = vmatpush1.msra.mxu0 0.0
  %179 = vmatprep.subr.mxu0 0.0
  %180 = vmatpush1.msra.mxu0 0.0
  %181 = vmatprep.subr.mxu0 0.0
  %182 = vmatpush1.msra.mxu0 0.0
  %183 = vmatprep.subr.mxu0 0.0
  %184 = vmatpush1.msra.mxu0 0.0
  %185 = vmatprep.subr.mxu0 0.0
  %186 = vmatpush1.msra.mxu0 0.0
  %187 = vmatprep.subr.mxu0 0.0
  %188 = vmatpush1.msra.mxu0 0.0
  %189 = vmatprep.mubr.f32.mxu0 %v74
  %190 = vmatmul.mubr.f32.gmra.mrb[0].mxu0 %v14
  %v191 = vpop.f32.mrb[0].mxu0
  %v192 = vadd.f32 %v70, %v191
  %v193 = vpop.f32.mrb[0].mxu0
  %194 = vmatprep.mubr.f32.mxu0 %v77
  %195 = vmatmul.mubr.f32.gmra.mrb[0].mxu0 %v16
  %v196 = vpop.f32.mrb[0].mxu0
  %v197 = vadd.f32 %v70, %v196
  %v198 = vpop.f32.mrb[0].mxu0
  %199 = vmatprep.mubr.f32.mxu0 %v80
  %200 = vmatmul.mubr.f32.gmra.mrb[0].mxu0 %v18
  %v201 = vpop.f32.mrb[0].mxu0
  %v202 = vadd.f32 %v70, %v201
  %v203 = vpop.f32.mrb[0].mxu0
  %204 = vmatprep.mubr.f32.mxu0 %v83
  %205 = vmatmul.mubr.f32.gmra.mrb[0].mxu0 %v20
  %v206 = vpop.f32.mrb[0].mxu0
  %v207 = vadd.f32 %v70, %v206
  %v208 = vpop.f32.mrb[0].mxu0
  %209 = vmatprep.mubr.f32.mxu0 %v86
  %210 = vmatmul.mubr.f32.gmra.mrb[0].mxu0 %v22
  %v211 = vpop.f32.mrb[0].mxu0
  %v212 = vadd.f32 %v70, %v211
  %v213 = vpop.f32.mrb[0].mxu0
  %214 = vmatprep.mubr.f32.mxu0 %v89
  %215 = vmatmul.mubr.f32.gmra.mrb[0].mxu0 %v24
  %v216 = vpop.f32.mrb[0].mxu0
  %v217 = vadd.f32 %v70, %v216
  %v218 = vpop.f32.mrb[0].mxu0
  %219 = vmatprep.mubr.f32.mxu0 %v92
  %220 = vmatmul.mubr.f32.gmra.mrb[0].mxu0 %v26
  %v221 = vpop.f32.mrb[0].mxu0
  %v222 = vadd.f32 %v70, %v221
  %v223 = vpop.f32.mrb[0].mxu0
  %224 = vmatprep.mubr.f32.mxu0 %v95
  %225 = vmatmul.mubr.f32.gmra.mrb[0].mxu0 %v28
  %v226 = vpop.f32.mrb[0].mxu0
  %v227 = vadd.f32 %v70, %v226
  %v228 = vpop.f32.mrb[0].mxu0
  %229 = vmatprep.mubr.f32.mxu0 %v98
  %230 = vmatmul.mubr.f32.gmra.mrb[0].mxu0 %v30
  %v231 = vpop.f32.mrb[0].mxu0
  %v232 = vadd.f32 %v70, %v231
  %v233 = vpop.f32.mrb[0].mxu0
  %234 = vmatprep.mubr.f32.mxu0 %v101
  %235 = vmatmul.mubr.f32.gmra.mrb[0].mxu0 %v32
  %v236 = vpop.f32.mrb[0].mxu0
  %v237 = vadd.f32 %v70, %v236
  %v238 = vpop.f32.mrb[0].mxu0
  %239 = vmatprep.mubr.f32.mxu0 %v104
  %240 = vmatmul.mubr.f32.gmra.mrb[0].mxu0 %v34
  %v241 = vpop.f32.mrb[0].mxu0
  %v242 = vadd.f32 %v70, %v241
  %v243 = vpop.f32.mrb[0].mxu0
  %244 = vmatprep.mubr.f32.mxu0 %v107
  %245 = vmatmul.mubr.f32.gmra.mrb[0].mxu0 %v36
  %v246 = vpop.f32.mrb[0].mxu0
  %v247 = vadd.f32 %v70, %v246
  %v248 = vpop.f32.mrb[0].mxu0
  %249 = vmatprep.mubr.f32.mxu0 %v110
  %250 = vmatmul.mubr.f32.gmra.mrb[0].mxu0 %v38
  %v251 = vpop.f32.mrb[0].mxu0
  %v252 = vadd.f32 %v70, %v251
  %v253 = vpop.f32.mrb[0].mxu0
  %254 = vmatprep.mubr.f32.mxu0 %v113
  %255 = vmatmul.mubr.f32.gmra.mrb[0].mxu0 %v40
  %v256 = vpop.f32.mrb[0].mxu0
  %v257 = vadd.f32 %v70, %v256
  %v258 = vpop.f32.mrb[0].mxu0
  %259 = vmatprep.mubr.f32.mxu0 %v116
  %260 = vmatmul.mubr.f32.gmra.mrb[0].mxu0 %v42
  %v261 = vpop.f32.mrb[0].mxu0
  %v262 = vadd.f32 %v70, %v261
  %v263 = vpop.f32.mrb[0].mxu0
  %264 = vmatprep.mubr.f32.mxu0 %v119
  %265 = vmatmul.mubr.f32.gmra.mrb[0].mxu0 %v44
  %v266 = vpop.f32.mrb[0].mxu0
  %v267 = vadd.f32 %v70, %v266
  %v268 = vpop.f32.mrb[0].mxu0
  %269 = vdwg.mxu0
  %v270 = vmax.f32 %v192, 0.0
  %v271 = vmax.f32 %v197, 0.0
  %v272 = vmax.f32 %v202, 0.0
  %v273 = vmax.f32 %v207, 0.0
  %v274 = vmax.f32 %v212, 0.0
  %v275 = vmax.f32 %v217, 0.0
  %v276 = vmax.f32 %v222, 0.0
  %v277 = vmax.f32 %v227, 0.0
  %v278 = vmax.f32 %v232, 0.0
  %v279 = vmax.f32 %v237, 0.0
  %v280 = vmax.f32 %v242, 0.0
  %v281 = vmax.f32 %v247, 0.0
  %v282 = vmax.f32 %v252, 0.0
  %v283 = vmax.f32 %v257, 0.0
  %v284 = vmax.f32 %v262, 0.0
  %v285 = vmax.f32 %v267, 0.0
  %vm286 = vcmask 130048
  %v287 = vsel %vm286, %v270, -inf
  %v288 = vsel %vm286, %v271, -inf
  %v289 = vmax.f32 %v287, %v288
  %v290 = vsel %vm286, %v272, -inf
  %v291 = vsel %vm286, %v273, -inf
  %v292 = vmax.f32 %v290, %v291
  %v293 = vsel %vm286, %v274, -inf
  %v294 = vsel %vm286, %v275, -inf
  %v295 = vmax.f32 %v293, %v294
  %v296 = vsel %vm286, %v276, -inf
  %v297 = vsel %vm286, %v277, -inf
  %v298 = vmax.f32 %v296, %v297
  %v299 = vsel %vm286, %v278, -inf
  %v300 = vsel %vm286, %v279, -inf
  %v301 = vmax.f32 %v299, %v300
  %v302 = vsel %vm286, %v280, -inf
  %v303 = vsel %vm286, %v281, -inf
  %v304 = vmax.f32 %v302, %v303
  %v305 = vsel %vm286, %v282, -inf
  %v306 = vsel %vm286, %v283, -inf
  %v307 = vmax.f32 %v305, %v306
  %v308 = vsel %vm286, %v284, -inf
  %v309 = vsel %vm286, %v285, -inf
  %v310 = vmax.f32 %v308, %v309
  %v319 = vcombine.high %v289, %v289
  %v321 = vunpack.c.l.s4 1983009808
  %v322 = vunpack.c.0.s8 %v321
  %v323 = vlaneseq
  %v324 = vshrl.u32 %v323, 7
  %v325 = vsub.s32 %v322, %v324
  %v326 = vrot.slane %v289, %v325
  %v328 = vunpack.c.l.s4 1983009808
  %v329 = vunpack.c.0.s8 %v328
  %v330 = vlaneseq
  %v331 = vshrl.u32 %v330, 7
  %v332 = vsub.s32 %v329, %v331
  %v333 = vrot.slane %v319, %v332
  %v334 = vcombine.high %v326, %v326
  %v335 = vcombine.high %v333, %v333
  %v336 = vcombine.high %v292, %v292
  %v338 = vunpack.c.l.s4 1983009808
  %v339 = vunpack.c.0.s8 %v338
  %v340 = vlaneseq
  %v341 = vshrl.u32 %v340, 7
  %v342 = vsub.s32 %v339, %v341
  %v343 = vrot.slane %v292, %v342
  %v345 = vunpack.c.l.s4 1983009808
  %v346 = vunpack.c.0.s8 %v345
  %v347 = vlaneseq
  %v348 = vshrl.u32 %v347, 7
  %v349 = vsub.s32 %v346, %v348
  %v350 = vrot.slane %v336, %v349
  %v351 = vcombine.high %v343, %v343
  %v352 = vcombine.high %v350, %v350
  %v353 = vcombine.high %v295, %v295
  %v355 = vunpack.c.l.s4 1983009808
  %v356 = vunpack.c.0.s8 %v355
  %v357 = vlaneseq
  %v358 = vshrl.u32 %v357, 7
  %v359 = vsub.s32 %v356, %v358
  %v360 = vrot.slane %v295, %v359
  %v362 = vunpack.c.l.s4 1983009808
  %v363 = vunpack.c.0.s8 %v362
  %v364 = vlaneseq
  %v365 = vshrl.u32 %v364, 7
  %v366 = vsub.s32 %v363, %v365
  %v367 = vrot.slane %v353, %v366
  %v368 = vcombine.high %v360, %v360
  %v369 = vcombine.high %v367, %v367
  %v370 = vcombine.high %v298, %v298
  %v372 = vunpack.c.l.s4 1983009808
  %v373 = vunpack.c.0.s8 %v372
  %v374 = vlaneseq
  %v375 = vshrl.u32 %v374, 7
  %v376 = vsub.s32 %v373, %v375
  %v377 = vrot.slane %v298, %v376
  %v379 = vunpack.c.l.s4 1983009808
  %v380 = vunpack.c.0.s8 %v379
  %v381 = vlaneseq
  %v382 = vshrl.u32 %v381, 7
  %v383 = vsub.s32 %v380, %v382
  %v384 = vrot.slane %v370, %v383
  %v385 = vcombine.high %v377, %v377
  %v386 = vcombine.high %v384, %v384
  %v387 = vcombine.high %v301, %v301
  %v389 = vunpack.c.l.s4 1983009808
  %v390 = vunpack.c.0.s8 %v389
  %v391 = vlaneseq
  %v392 = vshrl.u32 %v391, 7
  %v393 = vsub.s32 %v390, %v392
  %v394 = vrot.slane %v301, %v393
  %v396 = vunpack.c.l.s4 1983009808
  %v397 = vunpack.c.0.s8 %v396
  %v398 = vlaneseq
  %v399 = vshrl.u32 %v398, 7
  %v400 = vsub.s32 %v397, %v399
  %v401 = vrot.slane %v387, %v400
  %v402 = vcombine.high %v394, %v394
  %v403 = vcombine.high %v401, %v401
  %v404 = vcombine.high %v304, %v304
  %v406 = vunpack.c.l.s4 1983009808
  %v407 = vunpack.c.0.s8 %v406
  %v408 = vlaneseq
  %v409 = vshrl.u32 %v408, 7
  %v410 = vsub.s32 %v407, %v409
  %v411 = vrot.slane %v304, %v410
  %v413 = vunpack.c.l.s4 1983009808
  %v414 = vunpack.c.0.s8 %v413
  %v415 = vlaneseq
  %v416 = vshrl.u32 %v415, 7
  %v417 = vsub.s32 %v414, %v416
  %v418 = vrot.slane %v404, %v417
  %v419 = vcombine.high %v411, %v411
  %v420 = vcombine.high %v418, %v418
  %v421 = vcombine.high %v307, %v307
  %v423 = vunpack.c.l.s4 1983009808
  %v424 = vunpack.c.0.s8 %v423
  %v425 = vlaneseq
  %v426 = vshrl.u32 %v425, 7
  %v427 = vsub.s32 %v424, %v426
  %v428 = vrot.slane %v307, %v427
  %v430 = vunpack.c.l.s4 1983009808
  %v431 = vunpack.c.0.s8 %v430
  %v432 = vlaneseq
  %v433 = vshrl.u32 %v432, 7
  %v434 = vsub.s32 %v431, %v433
  %v435 = vrot.slane %v421, %v434
  %v436 = vcombine.high %v428, %v428
  %v437 = vcombine.high %v435, %v435
  %v438 = vcombine.high %v310, %v310
  %v440 = vunpack.c.l.s4 1983009808
  %v441 = vunpack.c.0.s8 %v440
  %v442 = vlaneseq
  %v443 = vshrl.u32 %v442, 7
  %v444 = vsub.s32 %v441, %v443
  %v445 = vrot.slane %v310, %v444
  %v447 = vunpack.c.l.s4 1983009808
  %v448 = vunpack.c.0.s8 %v447
  %v449 = vlaneseq
  %v450 = vshrl.u32 %v449, 7
  %v451 = vsub.s32 %v448, %v450
  %v452 = vrot.slane %v438, %v451
  %v453 = vcombine.high %v445, %v445
  %v454 = vcombine.high %v452, %v452
  %vm487 = vcmask 123904
  %v488 = vsel %vm487, %v326, -inf
  %v489 = vrot.slane %v488, 4
  %v490 = vmax.f32 %v488, %v489
  %v491 = vrot.slane %v490, 2
  %v492 = vmax.f32 %v490, %v491
  %v493 = vrot.slane %v492, 1
  %v494 = vmax.f32 %v492, %v493
  %v495 = vsel %vm487, %v334, -inf
  %v496 = vrot.slane %v495, 4
  %v497 = vmax.f32 %v495, %v496
  %v498 = vrot.slane %v497, 2
  %v499 = vmax.f32 %v497, %v498
  %v500 = vrot.slane %v499, 1
  %v501 = vmax.f32 %v499, %v500
  %v502 = vsel %vm487, %v333, -inf
  %v503 = vrot.slane %v502, 4
  %v504 = vmax.f32 %v502, %v503
  %v505 = vrot.slane %v504, 2
  %v506 = vmax.f32 %v504, %v505
  %v507 = vrot.slane %v506, 1
  %v508 = vmax.f32 %v506, %v507
  %v509 = vsel %vm487, %v335, -inf
  %v510 = vrot.slane %v509, 4
  %v511 = vmax.f32 %v509, %v510
  %v512 = vrot.slane %v511, 2
  %v513 = vmax.f32 %v511, %v512
  %v514 = vrot.slane %v513, 1
  %v515 = vmax.f32 %v513, %v514
  %v516 = vsel %vm487, %v343, -inf
  %v517 = vrot.slane %v516, 4
  %v518 = vmax.f32 %v516, %v517
  %v519 = vrot.slane %v518, 2
  %v520 = vmax.f32 %v518, %v519
  %v521 = vrot.slane %v520, 1
  %v522 = vmax.f32 %v520, %v521
  %v523 = vsel %vm487, %v351, -inf
  %v524 = vrot.slane %v523, 4
  %v525 = vmax.f32 %v523, %v524
  %v526 = vrot.slane %v525, 2
  %v527 = vmax.f32 %v525, %v526
  %v528 = vrot.slane %v527, 1
  %v529 = vmax.f32 %v527, %v528
  %v530 = vsel %vm487, %v350, -inf
  %v531 = vrot.slane %v530, 4
  %v532 = vmax.f32 %v530, %v531
  %v533 = vrot.slane %v532, 2
  %v534 = vmax.f32 %v532, %v533
  %v535 = vrot.slane %v534, 1
  %v536 = vmax.f32 %v534, %v535
  %v537 = vsel %vm487, %v352, -inf
  %v538 = vrot.slane %v537, 4
  %v539 = vmax.f32 %v537, %v538
  %v540 = vrot.slane %v539, 2
  %v541 = vmax.f32 %v539, %v540
  %v542 = vrot.slane %v541, 1
  %v543 = vmax.f32 %v541, %v542
  %v544 = vsel %vm487, %v360, -inf
  %v545 = vrot.slane %v544, 4
  %v546 = vmax.f32 %v544, %v545
  %v547 = vrot.slane %v546, 2
  %v548 = vmax.f32 %v546, %v547
  %v549 = vrot.slane %v548, 1
  %v550 = vmax.f32 %v548, %v549
  %v551 = vsel %vm487, %v368, -inf
  %v552 = vrot.slane %v551, 4
  %v553 = vmax.f32 %v551, %v552
  %v554 = vrot.slane %v553, 2
  %v555 = vmax.f32 %v553, %v554
  %v556 = vrot.slane %v555, 1
  %v557 = vmax.f32 %v555, %v556
  %v558 = vsel %vm487, %v367, -inf
  %v559 = vrot.slane %v558, 4
  %v560 = vmax.f32 %v558, %v559
  %v561 = vrot.slane %v560, 2
  %v562 = vmax.f32 %v560, %v561
  %v563 = vrot.slane %v562, 1
  %v564 = vmax.f32 %v562, %v563
  %v565 = vsel %vm487, %v369, -inf
  %v566 = vrot.slane %v565, 4
  %v567 = vmax.f32 %v565, %v566
  %v568 = vrot.slane %v567, 2
  %v569 = vmax.f32 %v567, %v568
  %v570 = vrot.slane %v569, 1
  %v571 = vmax.f32 %v569, %v570
  %v572 = vsel %vm487, %v377, -inf
  %v573 = vrot.slane %v572, 4
  %v574 = vmax.f32 %v572, %v573
  %v575 = vrot.slane %v574, 2
  %v576 = vmax.f32 %v574, %v575
  %v577 = vrot.slane %v576, 1
  %v578 = vmax.f32 %v576, %v577
  %v579 = vsel %vm487, %v385, -inf
  %v580 = vrot.slane %v579, 4
  %v581 = vmax.f32 %v579, %v580
  %v582 = vrot.slane %v581, 2
  %v583 = vmax.f32 %v581, %v582
  %v584 = vrot.slane %v583, 1
  %v585 = vmax.f32 %v583, %v584
  %v586 = vsel %vm487, %v384, -inf
  %v587 = vrot.slane %v586, 4
  %v588 = vmax.f32 %v586, %v587
  %v589 = vrot.slane %v588, 2
  %v590 = vmax.f32 %v588, %v589
  %v591 = vrot.slane %v590, 1
  %v592 = vmax.f32 %v590, %v591
  %v593 = vsel %vm487, %v386, -inf
  %v594 = vrot.slane %v593, 4
  %v595 = vmax.f32 %v593, %v594
  %v596 = vrot.slane %v595, 2
  %v597 = vmax.f32 %v595, %v596
  %v598 = vrot.slane %v597, 1
  %v599 = vmax.f32 %v597, %v598
  %v600 = vsel %vm487, %v394, -inf
  %v601 = vrot.slane %v600, 4
  %v602 = vmax.f32 %v600, %v601
  %v603 = vrot.slane %v602, 2
  %v604 = vmax.f32 %v602, %v603
  %v605 = vrot.slane %v604, 1
  %v606 = vmax.f32 %v604, %v605
  %v607 = vsel %vm487, %v402, -inf
  %v608 = vrot.slane %v607, 4
  %v609 = vmax.f32 %v607, %v608
  %v610 = vrot.slane %v609, 2
  %v611 = vmax.f32 %v609, %v610
  %v612 = vrot.slane %v611, 1
  %v613 = vmax.f32 %v611, %v612
  %v614 = vsel %vm487, %v401, -inf
  %v615 = vrot.slane %v614, 4
  %v616 = vmax.f32 %v614, %v615
  %v617 = vrot.slane %v616, 2
  %v618 = vmax.f32 %v616, %v617
  %v619 = vrot.slane %v618, 1
  %v620 = vmax.f32 %v618, %v619
  %v621 = vsel %vm487, %v403, -inf
  %v622 = vrot.slane %v621, 4
  %v623 = vmax.f32 %v621, %v622
  %v624 = vrot.slane %v623, 2
  %v625 = vmax.f32 %v623, %v624
  %v626 = vrot.slane %v625, 1
  %v627 = vmax.f32 %v625, %v626
  %v628 = vsel %vm487, %v411, -inf
  %v629 = vrot.slane %v628, 4
  %v630 = vmax.f32 %v628, %v629
  %v631 = vrot.slane %v630, 2
  %v632 = vmax.f32 %v630, %v631
  %v633 = vrot.slane %v632, 1
  %v634 = vmax.f32 %v632, %v633
  %v635 = vsel %vm487, %v419, -inf
  %v636 = vrot.slane %v635, 4
  %v637 = vmax.f32 %v635, %v636
  %v638 = vrot.slane %v637, 2
  %v639 = vmax.f32 %v637, %v638
  %v640 = vrot.slane %v639, 1
  %v641 = vmax.f32 %v639, %v640
  %v642 = vsel %vm487, %v418, -inf
  %v643 = vrot.slane %v642, 4
  %v644 = vmax.f32 %v642, %v643
  %v645 = vrot.slane %v644, 2
  %v646 = vmax.f32 %v644, %v645
  %v647 = vrot.slane %v646, 1
  %v648 = vmax.f32 %v646, %v647
  %v649 = vsel %vm487, %v420, -inf
  %v650 = vrot.slane %v649, 4
  %v651 = vmax.f32 %v649, %v650
  %v652 = vrot.slane %v651, 2
  %v653 = vmax.f32 %v651, %v652
  %v654 = vrot.slane %v653, 1
  %v655 = vmax.f32 %v653, %v654
  %v656 = vsel %vm487, %v428, -inf
  %v657 = vrot.slane %v656, 4
  %v658 = vmax.f32 %v656, %v657
  %v659 = vrot.slane %v658, 2
  %v660 = vmax.f32 %v658, %v659
  %v661 = vrot.slane %v660, 1
  %v662 = vmax.f32 %v660, %v661
  %v663 = vsel %vm487, %v436, -inf
  %v664 = vrot.slane %v663, 4
  %v665 = vmax.f32 %v663, %v664
  %v666 = vrot.slane %v665, 2
  %v667 = vmax.f32 %v665, %v666
  %v668 = vrot.slane %v667, 1
  %v669 = vmax.f32 %v667, %v668
  %v670 = vsel %vm487, %v435, -inf
  %v671 = vrot.slane %v670, 4
  %v672 = vmax.f32 %v670, %v671
  %v673 = vrot.slane %v672, 2
  %v674 = vmax.f32 %v672, %v673
  %v675 = vrot.slane %v674, 1
  %v676 = vmax.f32 %v674, %v675
  %v677 = vsel %vm487, %v437, -inf
  %v678 = vrot.slane %v677, 4
  %v679 = vmax.f32 %v677, %v678
  %v680 = vrot.slane %v679, 2
  %v681 = vmax.f32 %v679, %v680
  %v682 = vrot.slane %v681, 1
  %v683 = vmax.f32 %v681, %v682
  %v684 = vsel %vm487, %v445, -inf
  %v685 = vrot.slane %v684, 4
  %v686 = vmax.f32 %v684, %v685
  %v687 = vrot.slane %v686, 2
  %v688 = vmax.f32 %v686, %v687
  %v689 = vrot.slane %v688, 1
  %v690 = vmax.f32 %v688, %v689
  %v691 = vsel %vm487, %v453, -inf
  %v692 = vrot.slane %v691, 4
  %v693 = vmax.f32 %v691, %v692
  %v694 = vrot.slane %v693, 2
  %v695 = vmax.f32 %v693, %v694
  %v696 = vrot.slane %v695, 1
  %v697 = vmax.f32 %v695, %v696
  %v698 = vsel %vm487, %v452, -inf
  %v699 = vrot.slane %v698, 4
  %v700 = vmax.f32 %v698, %v699
  %v701 = vrot.slane %v700, 2
  %v702 = vmax.f32 %v700, %v701
  %v703 = vrot.slane %v702, 1
  %v704 = vmax.f32 %v702, %v703
  %v705 = vsel %vm487, %v454, -inf
  %v706 = vrot.slane %v705, 4
  %v707 = vmax.f32 %v705, %v706
  %v708 = vrot.slane %v707, 2
  %v709 = vmax.f32 %v707, %v708
  %v710 = vrot.slane %v709, 1
  %v711 = vmax.f32 %v709, %v710
  %vm744 = vcmask 1041409
  %v745 = vsel %vm744, %v501, %v494
  %vm746 = vcmask 1042434
  %v747 = vsel %vm746, %v508, %v745
  %vm748 = vcmask 1043459
  %v749 = vsel %vm748, %v515, %v747
  %v750 = vsel %vm744, %v529, %v522
  %v751 = vsel %vm746, %v536, %v750
  %v752 = vsel %vm748, %v543, %v751
  %v753 = vsel %vm744, %v557, %v550
  %v754 = vsel %vm746, %v564, %v753
  %v755 = vsel %vm748, %v571, %v754
  %v756 = vsel %vm744, %v585, %v578
  %v757 = vsel %vm746, %v592, %v756
  %v758 = vsel %vm748, %v599, %v757
  %v759 = vsel %vm744, %v613, %v606
  %v760 = vsel %vm746, %v620, %v759
  %v761 = vsel %vm748, %v627, %v760
  %v762 = vsel %vm744, %v641, %v634
  %v763 = vsel %vm746, %v648, %v762
  %v764 = vsel %vm748, %v655, %v763
  %v765 = vsel %vm744, %v669, %v662
  %v766 = vsel %vm746, %v676, %v765
  %v767 = vsel %vm748, %v683, %v766
  %v768 = vsel %vm744, %v697, %v690
  %v769 = vsel %vm746, %v704, %v768
  %v770 = vsel %vm748, %v711, %v769
  %vm779 = vcmask 125952
  %780 = vst.msk [vmem:[%s3] sm:$0xf] %vm779, %v749
  %781 = vst.msk [vmem:[%s3 + $0x4] sm:$0xf] %vm779, %v752
  %782 = vst.msk [vmem:[%s3 + $0x8] sm:$0xf] %vm779, %v755
  %783 = vst.msk [vmem:[%s3 + $0xc] sm:$0xf] %vm779, %v758
  %784 = vst.msk [vmem:[%s3 + $0x10] sm:$0xf] %vm779, %v761
  %785 = vst.msk [vmem:[%s3 + $0x14] sm:$0xf] %vm779, %v764
  %786 = vst.msk [vmem:[%s3 + $0x18] sm:$0xf] %vm779, %v767
  %787 = vst.msk [vmem:[%s3 + $0x1c] sm:$0xf] %vm779, %v770
  // Predicated region
  $region14: #{cnn_forward.4} parent=0 // pred_check
    _
  $region15: #{cnn_forward.4} parent=0 // pred_check_branch
    %789 = sbr.rel (0) target = $region17
  $region16: #{cnn_forward.4} parent=0 // pred_region
    _
  $region17: #{cnn_forward.4} parent=0 // pred_fallthru
    _
  // Predicated region
  $region18: #{cnn_forward.4} parent=0 // pred_check
    _
  $region19: #{cnn_forward.4} parent=0 // pred_check_branch
    %791 = sbr.rel (0) target = $region21
  $region20: #{cnn_forward.4} parent=0 // pred_region
    _
  $region21: #{cnn_forward.4} parent=0 // pred_fallthru
    _

// kernel: cnn_forward.5
$region0: #{cnn_forward.5}
  #allocation0 [shape = 'u32[]', space=smem, size = 0x4, offset = 0x4, fixed_abs, tag = 'smem constant byte address 0x4 - core index']
  #allocation1 [shape = 'u32[144,128]{1,0:T(1,128)}', space=vmem, size = 0x12000, scoped, tag = 'internal scratch']
  %s0 = inlined_call_operand.vmem [shape: f32[8,256], index: 0, kind: input, shape index: {}]
  %s1 = inlined_call_operand.vmem [shape: f32[256,128], index: 1, kind: input, shape index: {}]
  %s2 = inlined_call_operand.vmem [shape: f32[1,128], index: 2, kind: input, shape index: {}]
  %s3 = inlined_call_operand.vmem [shape: f32[128,128], index: 3, kind: input, shape index: {}]
  %s4 = inlined_call_operand.vmem [shape: f32[1,128], index: 4, kind: input, shape index: {}]
  %s5 = inlined_call_operand.vmem [shape: f32[128,128], index: 5, kind: input, shape index: {}]
  %s6 = inlined_call_operand.vmem [shape: f32[1,128], index: 6, kind: input, shape index: {}]
  %s7 = inlined_call_operand.vmem [shape: f32[8,128], index: 7, kind: output, shape index: {}]
  %s8 = sld [smem:[#allocation0]]
  $region38: #{cnn_forward.5} parent=0
    _
  %s10 = ssub.s32 1, %s8
  %s11 = scalar_select 0, %s10, %s8
  // Predicated region
  $region2: #{cnn_forward.5} parent=0 // pred_check
    _
  $region3: #{cnn_forward.5} parent=0 // pred_check_branch
    %13 = sbr.rel (0) target = $region5
  $region4: #{cnn_forward.5} parent=0 // pred_region
    _
  $region5: #{cnn_forward.5} parent=0 // pred_fallthru
    _
  // Predicated region
  $region6: #{cnn_forward.5} parent=0 // pred_check
    _
  $region7: #{cnn_forward.5} parent=0 // pred_check_branch
    %15 = sbr.rel (0) target = $region9
  $region8: #{cnn_forward.5} parent=0 // pred_region
    _
  $region9: #{cnn_forward.5} parent=0 // pred_fallthru
    _
  // Predicated region
  $region10: #{cnn_forward.5} parent=0 // pred_check
    _
  $region11: #{cnn_forward.5} parent=0 // pred_check_branch
    %17 = sbr.rel (0) target = $region13
  $region12: #{cnn_forward.5} parent=0 // pred_region
    _
  $region13: #{cnn_forward.5} parent=0 // pred_fallthru
    _
  // Predicated region
  $region14: #{cnn_forward.5} parent=0 // pred_check
    _
  $region15: #{cnn_forward.5} parent=0 // pred_check_branch
    %19 = sbr.rel (0) target = $region17
  $region16: #{cnn_forward.5} parent=0 // pred_region
    _
  $region17: #{cnn_forward.5} parent=0 // pred_fallthru
    _
  // Predicated region
  $region18: #{cnn_forward.5} parent=0 // pred_check
    _
  $region19: #{cnn_forward.5} parent=0 // pred_check_branch
    %21 = sbr.rel (0) target = $region21
  $region20: #{cnn_forward.5} parent=0 // pred_region
    _
  $region21: #{cnn_forward.5} parent=0 // pred_fallthru
    _
  // Predicated region
  $region22: #{cnn_forward.5} parent=0 // pred_check
    _
  $region23: #{cnn_forward.5} parent=0 // pred_check_branch
    %23 = sbr.rel (0) target = $region25
  $region24: #{cnn_forward.5} parent=0 // pred_region
    _
  $region25: #{cnn_forward.5} parent=0 // pred_fallthru
    _
  // Predicated region
  $region26: #{cnn_forward.5} parent=0 // pred_check
    _
  $region27: #{cnn_forward.5} parent=0 // pred_check_branch
    %25 = sbr.rel (0) target = $region29
  $region28: #{cnn_forward.5} parent=0 // pred_region
    _
  $region29: #{cnn_forward.5} parent=0 // pred_fallthru
    _
  %v26 = vld [vmem:[%s0] sm:$0xff]
  %v27 = vld [vmem:[%s0 + $0x8] sm:$0xff]
  %v28 = vld [vmem:[%s1] sm:$0xff]
  %v29 = vld [vmem:[%s1 + $0x8] sm:$0xff]
  %v30 = vld [vmem:[%s1 + $0x10] sm:$0xff]
  %v31 = vld [vmem:[%s1 + $0x18] sm:$0xff]
  %v32 = vld [vmem:[%s1 + $0x20] sm:$0xff]
  %v33 = vld [vmem:[%s1 + $0x28] sm:$0xff]
  %v34 = vld [vmem:[%s1 + $0x30] sm:$0xff]
  %v35 = vld [vmem:[%s1 + $0x38] sm:$0xff]
  %v36 = vld [vmem:[%s1 + $0x40] sm:$0xff]
  %v37 = vld [vmem:[%s1 + $0x48] sm:$0xff]
  %v38 = vld [vmem:[%s1 + $0x50] sm:$0xff]
  %v39 = vld [vmem:[%s1 + $0x58] sm:$0xff]
  %v40 = vld [vmem:[%s1 + $0x60] sm:$0xff]
  %v41 = vld [vmem:[%s1 + $0x68] sm:$0xff]
  %v42 = vld [vmem:[%s1 + $0x70] sm:$0xff]
  %v43 = vld [vmem:[%s1 + $0x78] sm:$0xff]
  %v44 = vld [vmem:[%s1 + $0x80] sm:$0xff]
  %v45 = vld [vmem:[%s1 + $0x88] sm:$0xff]
  %v46 = vld [vmem:[%s1 + $0x90] sm:$0xff]
  %v47 = vld [vmem:[%s1 + $0x98] sm:$0xff]
  %v48 = vld [vmem:[%s1 + $0xa0] sm:$0xff]
  %v49 = vld [vmem:[%s1 + $0xa8] sm:$0xff]
  %v50 = vld [vmem:[%s1 + $0xb0] sm:$0xff]
  %v51 = vld [vmem:[%s1 + $0xb8] sm:$0xff]
  %v52 = vld [vmem:[%s1 + $0xc0] sm:$0xff]
  %v53 = vld [vmem:[%s1 + $0xc8] sm:$0xff]
  %v54 = vld [vmem:[%s1 + $0xd0] sm:$0xff]
  %v55 = vld [vmem:[%s1 + $0xd8] sm:$0xff]
  %v56 = vld [vmem:[%s1 + $0xe0] sm:$0xff]
  %v57 = vld [vmem:[%s1 + $0xe8] sm:$0xff]
  %v58 = vld [vmem:[%s1 + $0xf0] sm:$0xff]
  %v59 = vld [vmem:[%s1 + $0xf8] sm:$0xff]
  %v60 = vld [vmem:[%s2] sm:$0x1]
  %v62 = vlaneseq
  %v63 = vshrl.u32 %v62, 7
  %v64 = vsub.s32 0, %v63
  %v65 = vrot.slane %v60, %v64
  %67 = vmatprep.subr.mxu0 0.0
  %68 = vmatpush1.msra.mxu0 %v28
  %69 = vmatprep.subr.mxu0 0.0
  %70 = vmatpush1.msra.mxu0 %v29
  %71 = vmatprep.subr.mxu0 0.0
  %72 = vmatpush1.msra.mxu0 %v30
  %73 = vmatprep.subr.mxu0 0.0
  %74 = vmatpush1.msra.mxu0 %v31
  %75 = vmatprep.subr.mxu0 0.0
  %76 = vmatpush1.msra.mxu0 %v32
  %77 = vmatprep.subr.mxu0 0.0
  %78 = vmatpush1.msra.mxu0 %v33
  %79 = vmatprep.subr.mxu0 0.0
  %80 = vmatpush1.msra.mxu0 %v34
  %81 = vmatprep.subr.mxu0 0.0
  %82 = vmatpush1.msra.mxu0 %v35
  %83 = vmatprep.subr.mxu0 0.0
  %84 = vmatpush1.msra.mxu0 %v36
  %85 = vmatprep.subr.mxu0 0.0
  %86 = vmatpush1.msra.mxu0 %v37
  %87 = vmatprep.subr.mxu0 0.0
  %88 = vmatpush1.msra.mxu0 %v38
  %89 = vmatprep.subr.mxu0 0.0
  %90 = vmatpush1.msra.mxu0 %v39
  %91 = vmatprep.subr.mxu0 0.0
  %92 = vmatpush1.msra.mxu0 %v40
  %93 = vmatprep.subr.mxu0 0.0
  %94 = vmatpush1.msra.mxu0 %v41
  %95 = vmatprep.subr.mxu0 0.0
  %96 = vmatpush1.msra.mxu0 %v42
  %97 = vmatprep.subr.mxu0 0.0
  %98 = vmatpush1.msra.mxu0 %v43
  %99 = vmatprep.subr.mxu0 0.0
  %100 = vmatpush1.msra.mxu0 %v44
  %101 = vmatprep.subr.mxu0 0.0
  %102 = vmatpush1.msra.mxu0 %v45
  %103 = vmatprep.subr.mxu0 0.0
  %104 = vmatpush1.msra.mxu0 %v46
  %105 = vmatprep.subr.mxu0 0.0
  %106 = vmatpush1.msra.mxu0 %v47
  %107 = vmatprep.subr.mxu0 0.0
  %108 = vmatpush1.msra.mxu0 %v48
  %109 = vmatprep.subr.mxu0 0.0
  %110 = vmatpush1.msra.mxu0 %v49
  %111 = vmatprep.subr.mxu0 0.0
  %112 = vmatpush1.msra.mxu0 %v50
  %113 = vmatprep.subr.mxu0 0.0
  %114 = vmatpush1.msra.mxu0 %v51
  %115 = vmatprep.subr.mxu0 0.0
  %116 = vmatpush1.msra.mxu0 %v52
  %117 = vmatprep.subr.mxu0 0.0
  %118 = vmatpush1.msra.mxu0 %v53
  %119 = vmatprep.subr.mxu0 0.0
  %120 = vmatpush1.msra.mxu0 %v54
  %121 = vmatprep.subr.mxu0 0.0
  %122 = vmatpush1.msra.mxu0 %v55
  %123 = vmatprep.subr.mxu0 0.0
  %124 = vmatpush1.msra.mxu0 %v56
  %125 = vmatprep.subr.mxu0 0.0
  %126 = vmatpush1.msra.mxu0 %v57
  %127 = vmatprep.subr.mxu0 0.0
  %128 = vmatpush1.msra.mxu0 %v58
  %129 = vmatprep.subr.mxu0 0.0
  %130 = vmatpush1.msra.mxu0 %v59
  %131 = vmatprep.mubr.f32.mxu0 %v27
  %132 = vmatmul.mubr.f32.gmra.mrb[0].mxu0 %v26
  %v133 = vpop.f32.mrb[0].mxu0
  %v134 = vadd.f32 %v65, %v133
  %v135 = vpop.f32.mrb[0].mxu0
  %136 = vdwg.mxu0
  %v137 = vmax.f32 %v134, 0.0
  %v138 = vld [vmem:[%s3] sm:$0xff]
  %v139 = vld [vmem:[%s3 + $0x8] sm:$0xff]
  %v140 = vld [vmem:[%s3 + $0x10] sm:$0xff]
  %v141 = vld [vmem:[%s3 + $0x18] sm:$0xff]
  %v142 = vld [vmem:[%s3 + $0x20] sm:$0xff]
  %v143 = vld [vmem:[%s3 + $0x28] sm:$0xff]
  %v144 = vld [vmem:[%s3 + $0x30] sm:$0xff]
  %v145 = vld [vmem:[%s3 + $0x38] sm:$0xff]
  %v146 = vld [vmem:[%s3 + $0x40] sm:$0xff]
  %v147 = vld [vmem:[%s3 + $0x48] sm:$0xff]
  %v148 = vld [vmem:[%s3 + $0x50] sm:$0xff]
  %v149 = vld [vmem:[%s3 + $0x58] sm:$0xff]
  %v150 = vld [vmem:[%s3 + $0x60] sm:$0xff]
  %v151 = vld [vmem:[%s3 + $0x68] sm:$0xff]
  %v152 = vld [vmem:[%s3 + $0x70] sm:$0xff]
  %v153 = vld [vmem:[%s3 + $0x78] sm:$0xff]
  %v154 = vld [vmem:[%s4] sm:$0x1]
  %v156 = vlaneseq
  %v157 = vshrl.u32 %v156, 7
  %v158 = vsub.s32 0, %v157
  %v159 = vrot.slane %v154, %v158
  %161 = vmatprep.subr.mxu0 0.0
  %162 = vmatpush1.msra.mxu0 %v138
  %163 = vmatprep.subr.mxu0 0.0
  %164 = vmatpush1.msra.mxu0 %v139
  %165 = vmatprep.subr.mxu0 0.0
  %166 = vmatpush1.msra.mxu0 %v140
  %167 = vmatprep.subr.mxu0 0.0
  %168 = vmatpush1.msra.mxu0 %v141
  %169 = vmatprep.subr.mxu0 0.0
  %170 = vmatpush1.msra.mxu0 %v142
  %171 = vmatprep.subr.mxu0 0.0
  %172 = vmatpush1.msra.mxu0 %v143
  %173 = vmatprep.subr.mxu0 0.0
  %174 = vmatpush1.msra.mxu0 %v144
  %175 = vmatprep.subr.mxu0 0.0
  %176 = vmatpush1.msra.mxu0 %v145
  %177 = vmatprep.subr.mxu0 0.0
  %178 = vmatpush1.msra.mxu0 %v146
  %179 = vmatprep.subr.mxu0 0.0
  %180 = vmatpush1.msra.mxu0 %v147
  %181 = vmatprep.subr.mxu0 0.0
  %182 = vmatpush1.msra.mxu0 %v148
  %183 = vmatprep.subr.mxu0 0.0
  %184 = vmatpush1.msra.mxu0 %v149
  %185 = vmatprep.subr.mxu0 0.0
  %186 = vmatpush1.msra.mxu0 %v150
  %187 = vmatprep.subr.mxu0 0.0
  %188 = vmatpush1.msra.mxu0 %v151
  %189 = vmatprep.subr.mxu0 0.0
  %190 = vmatpush1.msra.mxu0 %v152
  %191 = vmatprep.subr.mxu0 0.0
  %192 = vmatpush1.msra.mxu0 %v153
  %193 = vmatprep.subr.mxu0 0.0
  %194 = vmatpush1.msra.mxu0 0.0
  %195 = vmatprep.subr.mxu0 0.0
  %196 = vmatpush1.msra.mxu0 0.0
  %197 = vmatprep.subr.mxu0 0.0
  %198 = vmatpush1.msra.mxu0 0.0
  %199 = vmatprep.subr.mxu0 0.0
  %200 = vmatpush1.msra.mxu0 0.0
  %201 = vmatprep.subr.mxu0 0.0
  %202 = vmatpush1.msra.mxu0 0.0
  %203 = vmatprep.subr.mxu0 0.0
  %204 = vmatpush1.msra.mxu0 0.0
  %205 = vmatprep.subr.mxu0 0.0
  %206 = vmatpush1.msra.mxu0 0.0
  %207 = vmatprep.subr.mxu0 0.0
  %208 = vmatpush1.msra.mxu0 0.0
  %209 = vmatprep.subr.mxu0 0.0
  %210 = vmatpush1.msra.mxu0 0.0
  %211 = vmatprep.subr.mxu0 0.0
  %212 = vmatpush1.msra.mxu0 0.0
  %213 = vmatprep.subr.mxu0 0.0
  %214 = vmatpush1.msra.mxu0 0.0
  %215 = vmatprep.subr.mxu0 0.0
  %216 = vmatpush1.msra.mxu0 0.0
  %217 = vmatprep.subr.mxu0 0.0
  %218 = vmatpush1.msra.mxu0 0.0
  %219 = vmatprep.subr.mxu0 0.0
  %220 = vmatpush1.msra.mxu0 0.0
  %221 = vmatprep.subr.mxu0 0.0
  %222 = vmatpush1.msra.mxu0 0.0
  %223 = vmatprep.subr.mxu0 0.0
  %224 = vmatpush1.msra.mxu0 0.0
  %225 = vmatprep.mubr.f32.mxu0 0.0
  %226 = vmatmul.mubr.f32.gmra.mrb[0].mxu0 %v137
  %v227 = vpop.f32.mrb[0].mxu0
  %v228 = vadd.f32 %v159, %v227
  %v229 = vpop.f32.mrb[0].mxu0
  %230 = vdwg.mxu0
  %v231 = vmax.f32 %v228, 0.0
  %v232 = vld [vmem:[%s5] sm:$0xff]
  %v233 = vld [vmem:[%s5 + $0x8] sm:$0xff]
  %v234 = vld [vmem:[%s5 + $0x10] sm:$0xff]
  %v235 = vld [vmem:[%s5 + $0x18] sm:$0xff]
  %v236 = vld [vmem:[%s5 + $0x20] sm:$0xff]
  %v237 = vld [vmem:[%s5 + $0x28] sm:$0xff]
  %v238 = vld [vmem:[%s5 + $0x30] sm:$0xff]
  %v239 = vld [vmem:[%s5 + $0x38] sm:$0xff]
  %v240 = vld [vmem:[%s5 + $0x40] sm:$0xff]
  %v241 = vld [vmem:[%s5 + $0x48] sm:$0xff]
  %v242 = vld [vmem:[%s5 + $0x50] sm:$0xff]
  %v243 = vld [vmem:[%s5 + $0x58] sm:$0xff]
  %v244 = vld [vmem:[%s5 + $0x60] sm:$0xff]
  %v245 = vld [vmem:[%s5 + $0x68] sm:$0xff]
  %v246 = vld [vmem:[%s5 + $0x70] sm:$0xff]
  %v247 = vld [vmem:[%s5 + $0x78] sm:$0xff]
  %v248 = vld [vmem:[%s6] sm:$0x1]
  %v250 = vlaneseq
  %v251 = vshrl.u32 %v250, 7
  %v252 = vsub.s32 0, %v251
  %v253 = vrot.slane %v248, %v252
  %255 = vmatprep.subr.mxu0 0.0
  %256 = vmatpush1.msra.mxu0 %v232
  %257 = vmatprep.subr.mxu0 0.0
  %258 = vmatpush1.msra.mxu0 %v233
  %259 = vmatprep.subr.mxu0 0.0
  %260 = vmatpush1.msra.mxu0 %v234
  %261 = vmatprep.subr.mxu0 0.0
  %262 = vmatpush1.msra.mxu0 %v235
  %263 = vmatprep.subr.mxu0 0.0
  %264 = vmatpush1.msra.mxu0 %v236
  %265 = vmatprep.subr.mxu0 0.0
  %266 = vmatpush1.msra.mxu0 %v237
  %267 = vmatprep.subr.mxu0 0.0
  %268 = vmatpush1.msra.mxu0 %v238
  %269 = vmatprep.subr.mxu0 0.0
  %270 = vmatpush1.msra.mxu0 %v239
  %271 = vmatprep.subr.mxu0 0.0
  %272 = vmatpush1.msra.mxu0 %v240
  %273 = vmatprep.subr.mxu0 0.0
  %274 = vmatpush1.msra.mxu0 %v241
  %275 = vmatprep.subr.mxu0 0.0
  %276 = vmatpush1.msra.mxu0 %v242
  %277 = vmatprep.subr.mxu0 0.0
  %278 = vmatpush1.msra.mxu0 %v243
  %279 = vmatprep.subr.mxu0 0.0
  %280 = vmatpush1.msra.mxu0 %v244
  %281 = vmatprep.subr.mxu0 0.0
  %282 = vmatpush1.msra.mxu0 %v245
  %283 = vmatprep.subr.mxu0 0.0
  %284 = vmatpush1.msra.mxu0 %v246
  %285 = vmatprep.subr.mxu0 0.0
  %286 = vmatpush1.msra.mxu0 %v247
  %287 = vmatprep.subr.mxu0 0.0
  %288 = vmatpush1.msra.mxu0 0.0
  %289 = vmatprep.subr.mxu0 0.0
  %290 = vmatpush1.msra.mxu0 0.0
  %291 = vmatprep.subr.mxu0 0.0
  %292 = vmatpush1.msra.mxu0 0.0
  %293 = vmatprep.subr.mxu0 0.0
  %294 = vmatpush1.msra.mxu0 0.0
  %295 = vmatprep.subr.mxu0 0.0
  %296 = vmatpush1.msra.mxu0 0.0
  %297 = vmatprep.subr.mxu0 0.0
  %298 = vmatpush1.msra.mxu0 0.0
  %299 = vmatprep.subr.mxu0 0.0
  %300 = vmatpush1.msra.mxu0 0.0
  %301 = vmatprep.subr.mxu0 0.0
  %302 = vmatpush1.msra.mxu0 0.0
  %303 = vmatprep.subr.mxu0 0.0
  %304 = vmatpush1.msra.mxu0 0.0
  %305 = vmatprep.subr.mxu0 0.0
  %306 = vmatpush1.msra.mxu0 0.0
  %307 = vmatprep.subr.mxu0 0.0
  %308 = vmatpush1.msra.mxu0 0.0
  %309 = vmatprep.subr.mxu0 0.0
  %310 = vmatpush1.msra.mxu0 0.0
  %311 = vmatprep.subr.mxu0 0.0
  %312 = vmatpush1.msra.mxu0 0.0
  %313 = vmatprep.subr.mxu0 0.0
  %314 = vmatpush1.msra.mxu0 0.0
  %315 = vmatprep.subr.mxu0 0.0
  %316 = vmatpush1.msra.mxu0 0.0
  %317 = vmatprep.subr.mxu0 0.0
  %318 = vmatpush1.msra.mxu0 0.0
  %319 = vmatprep.mubr.f32.mxu0 0.0
  %320 = vmatmul.mubr.f32.gmra.mrb[0].mxu0 %v231
  %v321 = vpop.f32.mrb[0].mxu0
  %v322 = vadd.f32 %v253, %v321
  %v323 = vpop.f32.mrb[0].mxu0
  %324 = vdwg.mxu0
  %325 = vst [vmem:[%s7] sm:$0xff] %v322
  // Predicated region
  $region30: #{cnn_forward.5} parent=0 // pred_check
    _
  $region31: #{cnn_forward.5} parent=0 // pred_check_branch
    %327 = sbr.rel (0) target = $region33
  $region32: #{cnn_forward.5} parent=0 // pred_region
    _
  $region33: #{cnn_forward.5} parent=0 // pred_fallthru
    _
  // Predicated region
  $region34: #{cnn_forward.5} parent=0 // pred_check
    _
  $region35: #{cnn_forward.5} parent=0 // pred_check_branch
    %329 = sbr.rel (0) target = $region37
  $region36: #{cnn_forward.5} parent=0 // pred_region
    _
  $region37: #{cnn_forward.5} parent=0 // pred_fallthru
    _

</llo_original>
